<compile_context>
chip_gen: v7x
topology: tpu7x:2x2x1
jax: 0.10.0
libtpu: 0.0.40
codegen_flags: <defaults>
</compile_context>

<pallas_src>
import math

import jax
import jax.numpy as jnp
from jax.experimental import pallas as pl
from jax.experimental.pallas import tpu as pltpu

# ----------------------------- problem sizes --------------------------------
B = 2            # batch (number of sentence pairs)
S = 16           # sequence length (real BERT caps at 512)
H = 128          # hidden size   (real BERT: 768)
F = 512          # FFN size      (real BERT: 3072)
VOCAB = 100
NUM_LAYERS = 2   # real BERT: 12
NUM_CLASSES = 2  # Siamese head: nn.Linear(3*hidden, 2)
LN_EPS = 1e-12   # BERT layer-norm eps
BS = B * S       # flattened matmul M dimension
INV_SQRT_H = 1.0 / math.sqrt(H)


# ------------------------------ kernel ---------------------------------------
def _layernorm(x, g, b, eps=LN_EPS):
    mu = jnp.mean(x, axis=-1, keepdims=True)
    var = jnp.mean((x - mu) ** 2, axis=-1, keepdims=True)
    return (x - mu) * jax.lax.rsqrt(var + eps) * g + b


def bert_stack_kernel(x_ref,          # (1, B, S, H)  embedded tokens, one sentence
                      emb_ln_ref,     # (2, H)        [emb_ln_gamma; emb_ln_beta]
                      wqkv_ref,       # (L, H, 3H)    fused Q/K/V projection
                      bqkv_ref,       # (L, 1, 3H)
                      wo_ref,         # (L, H, H)
                      w1_ref,         # (L, H, F)
                      b1_ref,         # (L, 1, F)
                      w2_ref,         # (L, F, H)
                      hvec_ref,       # (L, 6, H)     [bo, ln1_g, ln1_b, b2, ln2_g, ln2_b]
                      pooled_ref):    # out: (1, B, H)
    """Full synthetic-BERT encoder stack + mean pooling for one sentence batch."""
    # Flatten batch into matmul M dimension: (B*S, H).
    x = x_ref[0].reshape(BS, H)

    # Embedding LayerNorm (fused into the kernel).
    x = _layernorm(x, emb_ln_ref[0:1, :], emb_ln_ref[1:2, :])

    # Short fixed layer loop -> fully unrolled for LLO scheduler visibility.
    for l in range(NUM_LAYERS):
        hv = hvec_ref[l]                                   # (6, H)
        bo, g1, be1 = hv[0:1], hv[1:2], hv[2:3]
        b2, g2, be2 = hv[3:4], hv[4:5], hv[5:6]

        # Fused QKV projection: one (BS,H) @ (H,3H) matmul, lane-aligned slices.
        qkv = jnp.dot(x, wqkv_ref[l],
                      preferred_element_type=jnp.float32) + bqkv_ref[l]
        q = qkv[:, 0:H].reshape(B, S, H)
        k = qkv[:, H:2 * H].reshape(B, S, H)
        v = qkv[:, 2 * H:3 * H].reshape(B, S, H)

        # Batched attention scores without materializing k.T.
        scores = jnp.einsum("bqd,bkd->bqk", q, k,
                            preferred_element_type=jnp.float32) * INV_SQRT_H
        scores = scores - jnp.max(scores, axis=-1, keepdims=True)   # stable softmax
        p = jnp.exp(scores)
        p = p * pl.reciprocal(jnp.sum(p, axis=-1, keepdims=True), approx=True)
        ctx = jnp.einsum("bqk,bkd->bqd", p, v,
                         preferred_element_type=jnp.float32).reshape(BS, H)

        attn = jnp.dot(ctx, wo_ref[l],
                       preferred_element_type=jnp.float32) + bo
        h1 = _layernorm(x + attn, g1, be1)

        ff = jnp.dot(h1, w1_ref[l],
                     preferred_element_type=jnp.float32) + b1_ref[l]
        # TODO(synk): HF BERT uses exact erf GELU; tanh-approx GELU kept here.
        ff = jax.nn.gelu(ff)
        ff = jnp.dot(ff, w2_ref[l],
                     preferred_element_type=jnp.float32) + b2
        x = _layernorm(h1 + ff, g2, be2)

    # Mean-pool over the sequence dimension -> (B, H).
    pooled_ref[0] = jnp.sum(x.reshape(B, S, H), axis=1) * (1.0 / S)


# ------------------------------ wrappers --------------------------------------
def _full(shape):
    n = len(shape)
    return pl.BlockSpec(shape, lambda s: (0,) * n)


def bert_stack(x, bp):
    """x: (2, B, S, H) embedded tokens for both sentences -> pooled (2, B, H)."""
    L = NUM_LAYERS
    return pl.pallas_call(
        bert_stack_kernel,
        out_shape=jax.ShapeDtypeStruct((2, B, H), jnp.float32),
        grid=(2,),
        in_specs=[
            pl.BlockSpec((1, B, S, H), lambda s: (s, 0, 0, 0)),   # x (per sentence)
            _full((2, H)),              # emb LayerNorm gamma/beta
            _full((L, H, 3 * H)),       # wqkv
            _full((L, 1, 3 * H)),       # bqkv
            _full((L, H, H)),           # wo
            _full((L, H, F)),           # w1
            _full((L, 1, F)),           # b1
            _full((L, F, H)),           # w2
            _full((L, 6, H)),           # packed [bo, ln1_g, ln1_b, b2, ln2_g, ln2_b]
        ],
        out_specs=pl.BlockSpec((1, B, H), lambda s: (s, 0, 0)),
        compiler_params=pltpu.CompilerParams(
            dimension_semantics=("parallel",)),     # 2 TCs on v7x, loop elsewhere
    )(x, bp["emb_ln"], bp["wqkv"], bp["bqkv"], bp["wo"],
      bp["w1"], bp["b1"], bp["w2"], bp["hvec"])


@jax.jit
def network_forward(ids1, ids2, params):
    bp = params["bert"]
    # Stack both sentences into one forward pass (halves launches).
    ids = jnp.stack([ids1, ids2], axis=0)                          # (2, B, S)
    x = bp["tok_emb"][ids] + bp["pos_emb"][None, None, :, :]       # (2, B, S, H)
    pooled = bert_stack(x, bp)                                     # (2, B, H)
    p1, p2 = pooled[0], pooled[1]
    feat = jnp.concatenate([p1, p2, jnp.abs(p1 - p2)], axis=-1)    # (B, 3H)
    # Final Linear(3H, 2): width-2 output is lane-sparse -> leave to XLA (fused).
    return jnp.dot(feat, params["sia_w_t"]) + params["sia_b"]      # (B, 2)


# ------------------------------ parameters ------------------------------------
def init_params(key):
    def normal(k, shape, scale=0.02):
        return (scale * jax.random.normal(k, shape)).astype(jnp.float32)

    keys = iter(jax.random.split(key, 3 + NUM_LAYERS * 6))

    tok_emb = normal(next(keys), (VOCAB, H))
    pos_emb = normal(next(keys), (S, H))
    emb_ln = jnp.stack([jnp.ones((H,), jnp.float32),
                        jnp.zeros((H,), jnp.float32)], axis=0)      # (2, H)

    wqkv, wo, w1, w2 = [], [], [], []
    for _ in range(NUM_LAYERS):
        wq = normal(next(keys), (H, H))
        wk = normal(next(keys), (H, H))
        wv = normal(next(keys), (H, H))
        wqkv.append(jnp.concatenate([wq, wk, wv], axis=-1))          # (H, 3H)
        wo.append(normal(next(keys), (H, H)))
        w1.append(normal(next(keys), (H, F)))
        w2.append(normal(next(keys), (F, H)))

    zeros_h = jnp.zeros((H,), jnp.float32)
    ones_h = jnp.ones((H,), jnp.float32)
    # packed per-layer H-vectors: [bo, ln1_g, ln1_b, b2, ln2_g, ln2_b]
    hvec_layer = jnp.stack([zeros_h, ones_h, zeros_h,
                            zeros_h, ones_h, zeros_h], axis=0)       # (6, H)

    bert = {
        "tok_emb": tok_emb,
        "pos_emb": pos_emb,
        "emb_ln": emb_ln,
        "wqkv": jnp.stack(wqkv, axis=0),                             # (L, H, 3H)
        "bqkv": jnp.zeros((NUM_LAYERS, 1, 3 * H), jnp.float32),
        "wo": jnp.stack(wo, axis=0),                                 # (L, H, H)
        "w1": jnp.stack(w1, axis=0),                                 # (L, H, F)
        "b1": jnp.zeros((NUM_LAYERS, 1, F), jnp.float32),
        "w2": jnp.stack(w2, axis=0),                                 # (L, F, H)
        "hvec": jnp.tile(hvec_layer[None], (NUM_LAYERS, 1, 1)),      # (L, 6, H)
    }

    # Siamese head: torch nn.Linear(3*H, 2) has weight (2, 3H); store transposed.
    sia_w = normal(next(keys), (NUM_CLASSES, 3 * H), scale=1.0 / math.sqrt(3 * H))
    return {"bert": bert,
            "sia_w_t": jnp.asarray(sia_w.T),
            "sia_b": jnp.zeros((1, NUM_CLASSES), jnp.float32)}


# --------------------------------- main ---------------------------------------
if __name__ == "__main__":
    key = jax.random.PRNGKey(0)
    k_ids1, k_ids2, k_params = jax.random.split(key, 3)

    ids1 = jax.random.randint(k_ids1, (B, S), 0, VOCAB, dtype=jnp.int32)
    ids2 = jax.random.randint(k_ids2, (B, S), 0, VOCAB, dtype=jnp.int32)
    params = init_params(k_params)

    out = network_forward(ids1, ids2, params)
    out = jax.block_until_ready(out)

    assert out.shape == (B, NUM_CLASSES), out.shape
    assert out.dtype == jnp.float32
    assert bool(jnp.all(jnp.isfinite(out)))
    print("KERNEL_OK")
</pallas_src>

<mosaic_0001>
module attributes {stable_mosaic.version = 11 : i64} {
  func.func @bert_stack_kernel(%arg0: i32, %arg1: memref<1x2x16x128xf32, #tpu.memory_space<vmem>>, %arg2: memref<2x128xf32, #tpu.memory_space<vmem>>, %arg3: memref<2x128x384xf32, #tpu.memory_space<vmem>>, %arg4: memref<2x1x384xf32, #tpu.memory_space<vmem>>, %arg5: memref<2x128x128xf32, #tpu.memory_space<vmem>>, %arg6: memref<2x128x512xf32, #tpu.memory_space<vmem>>, %arg7: memref<2x1x512xf32, #tpu.memory_space<vmem>>, %arg8: memref<2x512x128xf32, #tpu.memory_space<vmem>>, %arg9: memref<2x6x128xf32, #tpu.memory_space<vmem>>, %arg10: memref<1x2x128xf32, #tpu.memory_space<vmem>>) attributes {dimension_semantics = [#tpu.dimension_semantics<parallel>], iteration_bounds = array<i64: 2>, scalar_prefetch = 0 : i64, scratch_operands = 0 : i64, tpu.core_type = #tpu.core_type<tc>, window_params = [{transform_indices = @transform_0, window_bounds = array<i64: 1, 2, 16, 128>}, {pipeline_mode = #tpu.pipeline_mode<synchronous>, transform_indices = @transform_1, window_bounds = array<i64: 2, 128>}, {pipeline_mode = #tpu.pipeline_mode<synchronous>, transform_indices = @transform_2, window_bounds = array<i64: 2, 128, 384>}, {pipeline_mode = #tpu.pipeline_mode<synchronous>, transform_indices = @transform_3, window_bounds = array<i64: 2, 1, 384>}, {pipeline_mode = #tpu.pipeline_mode<synchronous>, transform_indices = @transform_4, window_bounds = array<i64: 2, 128, 128>}, {pipeline_mode = #tpu.pipeline_mode<synchronous>, transform_indices = @transform_5, window_bounds = array<i64: 2, 128, 512>}, {pipeline_mode = #tpu.pipeline_mode<synchronous>, transform_indices = @transform_6, window_bounds = array<i64: 2, 1, 512>}, {pipeline_mode = #tpu.pipeline_mode<synchronous>, transform_indices = @transform_7, window_bounds = array<i64: 2, 512, 128>}, {pipeline_mode = #tpu.pipeline_mode<synchronous>, transform_indices = @transform_8, window_bounds = array<i64: 2, 6, 128>}, {transform_indices = @transform_9, window_bounds = array<i64: 1, 2, 128>}]} {
    %c0 = arith.constant 0 : index
    %c0_0 = arith.constant 0 : index
    %c0_1 = arith.constant 0 : index
    %c0_2 = arith.constant 0 : index
    %0 = vector.load %arg1[%c0, %c0_0, %c0_1, %c0_2] : memref<1x2x16x128xf32, #tpu.memory_space<vmem>>, vector<1x2x16x128xf32>
    %1 = vector.shape_cast %0 : vector<1x2x16x128xf32> to vector<2x16x128xf32>
    %2 = vector.shape_cast %1 : vector<2x16x128xf32> to vector<32x128xf32>
    %c0_3 = arith.constant 0 : index
    %c0_4 = arith.constant 0 : index
    %3 = vector.load %arg2[%c0_3, %c0_4] : memref<2x128xf32, #tpu.memory_space<vmem>>, vector<1x128xf32>
    %c1 = arith.constant 1 : index
    %c0_5 = arith.constant 0 : index
    %4 = vector.load %arg2[%c1, %c0_5] : memref<2x128xf32, #tpu.memory_space<vmem>>, vector<1x128xf32>
    %cst = arith.constant dense<0.000000e+00> : vector<32xf32>
    %5 = vector.multi_reduction <add>, %2, %cst [1] : vector<32x128xf32> to vector<32xf32>
    %6 = vector.shape_cast %5 : vector<32xf32> to vector<32x1xf32>
    %cst_6 = arith.constant 1.280000e+02 : f32
    %7 = vector.broadcast %cst_6 : f32 to vector<32x1xf32>
    %8 = arith.divf %6, %7 : vector<32x1xf32>
    %9 = vector.broadcast %8 : vector<32x1xf32> to vector<32x128xf32>
    %10 = arith.subf %2, %9 : vector<32x128xf32>
    %11 = arith.mulf %10, %10 : vector<32x128xf32>
    %cst_7 = arith.constant dense<0.000000e+00> : vector<32xf32>
    %12 = vector.multi_reduction <add>, %11, %cst_7 [1] : vector<32x128xf32> to vector<32xf32>
    %13 = vector.shape_cast %12 : vector<32xf32> to vector<32x1xf32>
    %cst_8 = arith.constant 1.280000e+02 : f32
    %14 = vector.broadcast %cst_8 : f32 to vector<32x1xf32>
    %15 = arith.divf %13, %14 : vector<32x1xf32>
    %16 = vector.broadcast %8 : vector<32x1xf32> to vector<32x128xf32>
    %17 = arith.subf %2, %16 : vector<32x128xf32>
    %cst_9 = arith.constant 9.99999996E-13 : f32
    %18 = vector.broadcast %cst_9 : f32 to vector<32x1xf32>
    %19 = arith.addf %15, %18 : vector<32x1xf32>
    %20 = math.rsqrt %19 : vector<32x1xf32>
    %21 = vector.broadcast %20 : vector<32x1xf32> to vector<32x128xf32>
    %22 = arith.mulf %17, %21 : vector<32x128xf32>
    %23 = vector.broadcast %3 : vector<1x128xf32> to vector<32x128xf32>
    %24 = arith.mulf %22, %23 : vector<32x128xf32>
    %25 = vector.broadcast %4 : vector<1x128xf32> to vector<32x128xf32>
    %26 = arith.addf %24, %25 : vector<32x128xf32>
    %c0_10 = arith.constant 0 : index
    %c0_11 = arith.constant 0 : index
    %c0_12 = arith.constant 0 : index
    %27 = vector.load %arg9[%c0_10, %c0_11, %c0_12] : memref<2x6x128xf32, #tpu.memory_space<vmem>>, vector<1x6x128xf32>
    %28 = vector.shape_cast %27 : vector<1x6x128xf32> to vector<6x128xf32>
    %29 = vector.extract_strided_slice %28 {offsets = [0, 0], sizes = [1, 128], strides = [1, 1]} : vector<6x128xf32> to vector<1x128xf32>
    %30 = vector.extract_strided_slice %28 {offsets = [1, 0], sizes = [1, 128], strides = [1, 1]} : vector<6x128xf32> to vector<1x128xf32>
    %31 = vector.extract_strided_slice %28 {offsets = [2, 0], sizes = [1, 128], strides = [1, 1]} : vector<6x128xf32> to vector<1x128xf32>
    %32 = vector.extract_strided_slice %28 {offsets = [3, 0], sizes = [1, 128], strides = [1, 1]} : vector<6x128xf32> to vector<1x128xf32>
    %33 = vector.extract_strided_slice %28 {offsets = [4, 0], sizes = [1, 128], strides = [1, 1]} : vector<6x128xf32> to vector<1x128xf32>
    %34 = vector.extract_strided_slice %28 {offsets = [5, 0], sizes = [1, 128], strides = [1, 1]} : vector<6x128xf32> to vector<1x128xf32>
    %c0_13 = arith.constant 0 : index
    %c0_14 = arith.constant 0 : index
    %c0_15 = arith.constant 0 : index
    %35 = vector.load %arg3[%c0_13, %c0_14, %c0_15] : memref<2x128x384xf32, #tpu.memory_space<vmem>>, vector<1x128x384xf32>
    %36 = vector.shape_cast %35 : vector<1x128x384xf32> to vector<128x384xf32>
    %cst_16 = arith.constant dense<0.000000e+00> : vector<32x384xf32>
    %37 = tpu.matmul %26, %36, %cst_16 {dimension_numbers = #tpu.dot_dimension_numbers<[1], [0], [0], [1], [0, 0, 1, 1], [], []>} : vector<32x128xf32>, vector<128x384xf32>, vector<32x384xf32> -> vector<32x384xf32>
    %c0_17 = arith.constant 0 : index
    %c0_18 = arith.constant 0 : index
    %c0_19 = arith.constant 0 : index
    %38 = vector.load %arg4[%c0_17, %c0_18, %c0_19] : memref<2x1x384xf32, #tpu.memory_space<vmem>>, vector<1x1x384xf32>
    %39 = vector.shape_cast %38 : vector<1x1x384xf32> to vector<1x384xf32>
    %40 = vector.broadcast %39 : vector<1x384xf32> to vector<32x384xf32>
    %41 = arith.addf %37, %40 : vector<32x384xf32>
    %42 = vector.extract_strided_slice %41 {offsets = [0, 0], sizes = [32, 128], strides = [1, 1]} : vector<32x384xf32> to vector<32x128xf32>
    %43 = vector.shape_cast %42 : vector<32x128xf32> to vector<2x16x128xf32>
    %44 = vector.extract_strided_slice %41 {offsets = [0, 128], sizes = [32, 128], strides = [1, 1]} : vector<32x384xf32> to vector<32x128xf32>
    %45 = vector.shape_cast %44 : vector<32x128xf32> to vector<2x16x128xf32>
    %46 = vector.extract_strided_slice %41 {offsets = [0, 256], sizes = [32, 128], strides = [1, 1]} : vector<32x384xf32> to vector<32x128xf32>
    %47 = vector.shape_cast %46 : vector<32x128xf32> to vector<2x16x128xf32>
    "tpu.trace_start"() <{level = 10 : i32, message = "bqd,bkd->bqk"}> : () -> ()
    %cst_20 = arith.constant dense<0.000000e+00> : vector<2x16x16xf32>
    %48 = tpu.matmul %43, %45, %cst_20 {dimension_numbers = #tpu.dot_dimension_numbers<[2], [2], [1], [1], [0, 0, 0, 1, 1, 1], [0], [0]>} : vector<2x16x128xf32>, vector<2x16x128xf32>, vector<2x16x16xf32> -> vector<2x16x16xf32>
    "tpu.trace_stop"() : () -> ()
    %cst_21 = arith.constant 0.0883883461 : f32
    %49 = vector.broadcast %cst_21 : f32 to vector<2x16x16xf32>
    %50 = arith.mulf %48, %49 : vector<2x16x16xf32>
    %cst_22 = arith.constant dense<0xFF800000> : vector<2x16xf32>
    %51 = vector.multi_reduction <maximumf>, %50, %cst_22 [2] : vector<2x16x16xf32> to vector<2x16xf32>
    %52 = vector.shape_cast %51 : vector<2x16xf32> to vector<2x16x1xf32>
    %53 = vector.broadcast %52 : vector<2x16x1xf32> to vector<2x16x16xf32>
    %54 = arith.subf %50, %53 : vector<2x16x16xf32>
    %55 = math.exp %54 : vector<2x16x16xf32>
    %cst_23 = arith.constant dense<0.000000e+00> : vector<2x16xf32>
    %56 = vector.multi_reduction <add>, %55, %cst_23 [2] : vector<2x16x16xf32> to vector<2x16xf32>
    %57 = vector.shape_cast %56 : vector<2x16xf32> to vector<2x16x1xf32>
    %58 = tpu.reciprocal %57 {approx = true} : vector<2x16x1xf32> -> vector<2x16x1xf32>
    %59 = vector.broadcast %58 : vector<2x16x1xf32> to vector<2x16x16xf32>
    %60 = arith.mulf %55, %59 : vector<2x16x16xf32>
    "tpu.trace_start"() <{level = 10 : i32, message = "bqk,bkd->bqd"}> : () -> ()
    %cst_24 = arith.constant dense<0.000000e+00> : vector<2x16x128xf32>
    %61 = tpu.matmul %60, %47, %cst_24 {dimension_numbers = #tpu.dot_dimension_numbers<[2], [1], [1], [2], [0, 0, 0, 1, 1, 2], [0], [0]>} : vector<2x16x16xf32>, vector<2x16x128xf32>, vector<2x16x128xf32> -> vector<2x16x128xf32>
    "tpu.trace_stop"() : () -> ()
    %62 = vector.shape_cast %61 : vector<2x16x128xf32> to vector<32x128xf32>
    %c0_25 = arith.constant 0 : index
    %c0_26 = arith.constant 0 : index
    %c0_27 = arith.constant 0 : index
    %63 = vector.load %arg5[%c0_25, %c0_26, %c0_27] : memref<2x128x128xf32, #tpu.memory_space<vmem>>, vector<1x128x128xf32>
    %64 = vector.shape_cast %63 : vector<1x128x128xf32> to vector<128x128xf32>
    %cst_28 = arith.constant dense<0.000000e+00> : vector<32x128xf32>
    %65 = tpu.matmul %62, %64, %cst_28 {dimension_numbers = #tpu.dot_dimension_numbers<[1], [0], [0], [1], [0, 0, 1, 1], [], []>} : vector<32x128xf32>, vector<128x128xf32>, vector<32x128xf32> -> vector<32x128xf32>
    %66 = vector.broadcast %29 : vector<1x128xf32> to vector<32x128xf32>
    %67 = arith.addf %65, %66 : vector<32x128xf32>
    %68 = arith.addf %26, %67 : vector<32x128xf32>
    %cst_29 = arith.constant dense<0.000000e+00> : vector<32xf32>
    %69 = vector.multi_reduction <add>, %68, %cst_29 [1] : vector<32x128xf32> to vector<32xf32>
    %70 = vector.shape_cast %69 : vector<32xf32> to vector<32x1xf32>
    %cst_30 = arith.constant 1.280000e+02 : f32
    %71 = vector.broadcast %cst_30 : f32 to vector<32x1xf32>
    %72 = arith.divf %70, %71 : vector<32x1xf32>
    %73 = vector.broadcast %72 : vector<32x1xf32> to vector<32x128xf32>
    %74 = arith.subf %68, %73 : vector<32x128xf32>
    %75 = arith.mulf %74, %74 : vector<32x128xf32>
    %cst_31 = arith.constant dense<0.000000e+00> : vector<32xf32>
    %76 = vector.multi_reduction <add>, %75, %cst_31 [1] : vector<32x128xf32> to vector<32xf32>
    %77 = vector.shape_cast %76 : vector<32xf32> to vector<32x1xf32>
    %cst_32 = arith.constant 1.280000e+02 : f32
    %78 = vector.broadcast %cst_32 : f32 to vector<32x1xf32>
    %79 = arith.divf %77, %78 : vector<32x1xf32>
    %80 = vector.broadcast %72 : vector<32x1xf32> to vector<32x128xf32>
    %81 = arith.subf %68, %80 : vector<32x128xf32>
    %cst_33 = arith.constant 9.99999996E-13 : f32
    %82 = vector.broadcast %cst_33 : f32 to vector<32x1xf32>
    %83 = arith.addf %79, %82 : vector<32x1xf32>
    %84 = math.rsqrt %83 : vector<32x1xf32>
    %85 = vector.broadcast %84 : vector<32x1xf32> to vector<32x128xf32>
    %86 = arith.mulf %81, %85 : vector<32x128xf32>
    %87 = vector.broadcast %30 : vector<1x128xf32> to vector<32x128xf32>
    %88 = arith.mulf %86, %87 : vector<32x128xf32>
    %89 = vector.broadcast %31 : vector<1x128xf32> to vector<32x128xf32>
    %90 = arith.addf %88, %89 : vector<32x128xf32>
    %c0_34 = arith.constant 0 : index
    %c0_35 = arith.constant 0 : index
    %c0_36 = arith.constant 0 : index
    %91 = vector.load %arg6[%c0_34, %c0_35, %c0_36] : memref<2x128x512xf32, #tpu.memory_space<vmem>>, vector<1x128x512xf32>
    %92 = vector.shape_cast %91 : vector<1x128x512xf32> to vector<128x512xf32>
    %cst_37 = arith.constant dense<0.000000e+00> : vector<32x512xf32>
    %93 = tpu.matmul %90, %92, %cst_37 {dimension_numbers = #tpu.dot_dimension_numbers<[1], [0], [0], [1], [0, 0, 1, 1], [], []>} : vector<32x128xf32>, vector<128x512xf32>, vector<32x512xf32> -> vector<32x512xf32>
    %c0_38 = arith.constant 0 : index
    %c0_39 = arith.constant 0 : index
    %c0_40 = arith.constant 0 : index
    %94 = vector.load %arg7[%c0_38, %c0_39, %c0_40] : memref<2x1x512xf32, #tpu.memory_space<vmem>>, vector<1x1x512xf32>
    %95 = vector.shape_cast %94 : vector<1x1x512xf32> to vector<1x512xf32>
    %96 = vector.broadcast %95 : vector<1x512xf32> to vector<32x512xf32>
    %97 = arith.addf %93, %96 : vector<32x512xf32>
    %98 = arith.mulf %97, %97 : vector<32x512xf32>
    %99 = arith.mulf %97, %98 : vector<32x512xf32>
    %cst_41 = arith.constant 4.471500e-02 : f32
    %100 = vector.broadcast %cst_41 : f32 to vector<32x512xf32>
    %101 = arith.mulf %100, %99 : vector<32x512xf32>
    %102 = arith.addf %97, %101 : vector<32x512xf32>
    %cst_42 = arith.constant 0.797884583 : f32
    %103 = vector.broadcast %cst_42 : f32 to vector<32x512xf32>
    %104 = arith.mulf %103, %102 : vector<32x512xf32>
    %105 = math.tanh %104 : vector<32x512xf32>
    %cst_43 = arith.constant 1.000000e+00 : f32
    %106 = vector.broadcast %cst_43 : f32 to vector<32x512xf32>
    %107 = arith.addf %106, %105 : vector<32x512xf32>
    %cst_44 = arith.constant 5.000000e-01 : f32
    %108 = vector.broadcast %cst_44 : f32 to vector<32x512xf32>
    %109 = arith.mulf %108, %107 : vector<32x512xf32>
    %110 = arith.mulf %97, %109 : vector<32x512xf32>
    %c0_45 = arith.constant 0 : index
    %c0_46 = arith.constant 0 : index
    %c0_47 = arith.constant 0 : index
    %111 = vector.load %arg8[%c0_45, %c0_46, %c0_47] : memref<2x512x128xf32, #tpu.memory_space<vmem>>, vector<1x512x128xf32>
    %112 = vector.shape_cast %111 : vector<1x512x128xf32> to vector<512x128xf32>
    %cst_48 = arith.constant dense<0.000000e+00> : vector<32x128xf32>
    %113 = tpu.matmul %110, %112, %cst_48 {dimension_numbers = #tpu.dot_dimension_numbers<[1], [0], [0], [1], [0, 0, 1, 1], [], []>} : vector<32x512xf32>, vector<512x128xf32>, vector<32x128xf32> -> vector<32x128xf32>
    %114 = vector.broadcast %32 : vector<1x128xf32> to vector<32x128xf32>
    %115 = arith.addf %113, %114 : vector<32x128xf32>
    %116 = arith.addf %90, %115 : vector<32x128xf32>
    %cst_49 = arith.constant dense<0.000000e+00> : vector<32xf32>
    %117 = vector.multi_reduction <add>, %116, %cst_49 [1] : vector<32x128xf32> to vector<32xf32>
    %118 = vector.shape_cast %117 : vector<32xf32> to vector<32x1xf32>
    %cst_50 = arith.constant 1.280000e+02 : f32
    %119 = vector.broadcast %cst_50 : f32 to vector<32x1xf32>
    %120 = arith.divf %118, %119 : vector<32x1xf32>
    %121 = vector.broadcast %120 : vector<32x1xf32> to vector<32x128xf32>
    %122 = arith.subf %116, %121 : vector<32x128xf32>
    %123 = arith.mulf %122, %122 : vector<32x128xf32>
    %cst_51 = arith.constant dense<0.000000e+00> : vector<32xf32>
    %124 = vector.multi_reduction <add>, %123, %cst_51 [1] : vector<32x128xf32> to vector<32xf32>
    %125 = vector.shape_cast %124 : vector<32xf32> to vector<32x1xf32>
    %cst_52 = arith.constant 1.280000e+02 : f32
    %126 = vector.broadcast %cst_52 : f32 to vector<32x1xf32>
    %127 = arith.divf %125, %126 : vector<32x1xf32>
    %128 = vector.broadcast %120 : vector<32x1xf32> to vector<32x128xf32>
    %129 = arith.subf %116, %128 : vector<32x128xf32>
    %cst_53 = arith.constant 9.99999996E-13 : f32
    %130 = vector.broadcast %cst_53 : f32 to vector<32x1xf32>
    %131 = arith.addf %127, %130 : vector<32x1xf32>
    %132 = math.rsqrt %131 : vector<32x1xf32>
    %133 = vector.broadcast %132 : vector<32x1xf32> to vector<32x128xf32>
    %134 = arith.mulf %129, %133 : vector<32x128xf32>
    %135 = vector.broadcast %33 : vector<1x128xf32> to vector<32x128xf32>
    %136 = arith.mulf %134, %135 : vector<32x128xf32>
    %137 = vector.broadcast %34 : vector<1x128xf32> to vector<32x128xf32>
    %138 = arith.addf %136, %137 : vector<32x128xf32>
    %c1_54 = arith.constant 1 : index
    %c0_55 = arith.constant 0 : index
    %c0_56 = arith.constant 0 : index
    %139 = vector.load %arg9[%c1_54, %c0_55, %c0_56] : memref<2x6x128xf32, #tpu.memory_space<vmem>>, vector<1x6x128xf32>
    %140 = vector.shape_cast %139 : vector<1x6x128xf32> to vector<6x128xf32>
    %141 = vector.extract_strided_slice %140 {offsets = [0, 0], sizes = [1, 128], strides = [1, 1]} : vector<6x128xf32> to vector<1x128xf32>
    %142 = vector.extract_strided_slice %140 {offsets = [1, 0], sizes = [1, 128], strides = [1, 1]} : vector<6x128xf32> to vector<1x128xf32>
    %143 = vector.extract_strided_slice %140 {offsets = [2, 0], sizes = [1, 128], strides = [1, 1]} : vector<6x128xf32> to vector<1x128xf32>
    %144 = vector.extract_strided_slice %140 {offsets = [3, 0], sizes = [1, 128], strides = [1, 1]} : vector<6x128xf32> to vector<1x128xf32>
    %145 = vector.extract_strided_slice %140 {offsets = [4, 0], sizes = [1, 128], strides = [1, 1]} : vector<6x128xf32> to vector<1x128xf32>
    %146 = vector.extract_strided_slice %140 {offsets = [5, 0], sizes = [1, 128], strides = [1, 1]} : vector<6x128xf32> to vector<1x128xf32>
    %c1_57 = arith.constant 1 : index
    %c0_58 = arith.constant 0 : index
    %c0_59 = arith.constant 0 : index
    %147 = vector.load %arg3[%c1_57, %c0_58, %c0_59] : memref<2x128x384xf32, #tpu.memory_space<vmem>>, vector<1x128x384xf32>
    %148 = vector.shape_cast %147 : vector<1x128x384xf32> to vector<128x384xf32>
    %cst_60 = arith.constant dense<0.000000e+00> : vector<32x384xf32>
    %149 = tpu.matmul %138, %148, %cst_60 {dimension_numbers = #tpu.dot_dimension_numbers<[1], [0], [0], [1], [0, 0, 1, 1], [], []>} : vector<32x128xf32>, vector<128x384xf32>, vector<32x384xf32> -> vector<32x384xf32>
    %c1_61 = arith.constant 1 : index
    %c0_62 = arith.constant 0 : index
    %c0_63 = arith.constant 0 : index
    %150 = vector.load %arg4[%c1_61, %c0_62, %c0_63] : memref<2x1x384xf32, #tpu.memory_space<vmem>>, vector<1x1x384xf32>
    %151 = vector.shape_cast %150 : vector<1x1x384xf32> to vector<1x384xf32>
    %152 = vector.broadcast %151 : vector<1x384xf32> to vector<32x384xf32>
    %153 = arith.addf %149, %152 : vector<32x384xf32>
    %154 = vector.extract_strided_slice %153 {offsets = [0, 0], sizes = [32, 128], strides = [1, 1]} : vector<32x384xf32> to vector<32x128xf32>
    %155 = vector.shape_cast %154 : vector<32x128xf32> to vector<2x16x128xf32>
    %156 = vector.extract_strided_slice %153 {offsets = [0, 128], sizes = [32, 128], strides = [1, 1]} : vector<32x384xf32> to vector<32x128xf32>
    %157 = vector.shape_cast %156 : vector<32x128xf32> to vector<2x16x128xf32>
    %158 = vector.extract_strided_slice %153 {offsets = [0, 256], sizes = [32, 128], strides = [1, 1]} : vector<32x384xf32> to vector<32x128xf32>
    %159 = vector.shape_cast %158 : vector<32x128xf32> to vector<2x16x128xf32>
    "tpu.trace_start"() <{level = 10 : i32, message = "bqd,bkd->bqk"}> : () -> ()
    %cst_64 = arith.constant dense<0.000000e+00> : vector<2x16x16xf32>
    %160 = tpu.matmul %155, %157, %cst_64 {dimension_numbers = #tpu.dot_dimension_numbers<[2], [2], [1], [1], [0, 0, 0, 1, 1, 1], [0], [0]>} : vector<2x16x128xf32>, vector<2x16x128xf32>, vector<2x16x16xf32> -> vector<2x16x16xf32>
    "tpu.trace_stop"() : () -> ()
    %cst_65 = arith.constant 0.0883883461 : f32
    %161 = vector.broadcast %cst_65 : f32 to vector<2x16x16xf32>
    %162 = arith.mulf %160, %161 : vector<2x16x16xf32>
    %cst_66 = arith.constant dense<0xFF800000> : vector<2x16xf32>
    %163 = vector.multi_reduction <maximumf>, %162, %cst_66 [2] : vector<2x16x16xf32> to vector<2x16xf32>
    %164 = vector.shape_cast %163 : vector<2x16xf32> to vector<2x16x1xf32>
    %165 = vector.broadcast %164 : vector<2x16x1xf32> to vector<2x16x16xf32>
    %166 = arith.subf %162, %165 : vector<2x16x16xf32>
    %167 = math.exp %166 : vector<2x16x16xf32>
    %cst_67 = arith.constant dense<0.000000e+00> : vector<2x16xf32>
    %168 = vector.multi_reduction <add>, %167, %cst_67 [2] : vector<2x16x16xf32> to vector<2x16xf32>
    %169 = vector.shape_cast %168 : vector<2x16xf32> to vector<2x16x1xf32>
    %170 = tpu.reciprocal %169 {approx = true} : vector<2x16x1xf32> -> vector<2x16x1xf32>
    %171 = vector.broadcast %170 : vector<2x16x1xf32> to vector<2x16x16xf32>
    %172 = arith.mulf %167, %171 : vector<2x16x16xf32>
    "tpu.trace_start"() <{level = 10 : i32, message = "bqk,bkd->bqd"}> : () -> ()
    %cst_68 = arith.constant dense<0.000000e+00> : vector<2x16x128xf32>
    %173 = tpu.matmul %172, %159, %cst_68 {dimension_numbers = #tpu.dot_dimension_numbers<[2], [1], [1], [2], [0, 0, 0, 1, 1, 2], [0], [0]>} : vector<2x16x16xf32>, vector<2x16x128xf32>, vector<2x16x128xf32> -> vector<2x16x128xf32>
    "tpu.trace_stop"() : () -> ()
    %174 = vector.shape_cast %173 : vector<2x16x128xf32> to vector<32x128xf32>
    %c1_69 = arith.constant 1 : index
    %c0_70 = arith.constant 0 : index
    %c0_71 = arith.constant 0 : index
    %175 = vector.load %arg5[%c1_69, %c0_70, %c0_71] : memref<2x128x128xf32, #tpu.memory_space<vmem>>, vector<1x128x128xf32>
    %176 = vector.shape_cast %175 : vector<1x128x128xf32> to vector<128x128xf32>
    %cst_72 = arith.constant dense<0.000000e+00> : vector<32x128xf32>
    %177 = tpu.matmul %174, %176, %cst_72 {dimension_numbers = #tpu.dot_dimension_numbers<[1], [0], [0], [1], [0, 0, 1, 1], [], []>} : vector<32x128xf32>, vector<128x128xf32>, vector<32x128xf32> -> vector<32x128xf32>
    %178 = vector.broadcast %141 : vector<1x128xf32> to vector<32x128xf32>
    %179 = arith.addf %177, %178 : vector<32x128xf32>
    %180 = arith.addf %138, %179 : vector<32x128xf32>
    %cst_73 = arith.constant dense<0.000000e+00> : vector<32xf32>
    %181 = vector.multi_reduction <add>, %180, %cst_73 [1] : vector<32x128xf32> to vector<32xf32>
    %182 = vector.shape_cast %181 : vector<32xf32> to vector<32x1xf32>
    %cst_74 = arith.constant 1.280000e+02 : f32
    %183 = vector.broadcast %cst_74 : f32 to vector<32x1xf32>
    %184 = arith.divf %182, %183 : vector<32x1xf32>
    %185 = vector.broadcast %184 : vector<32x1xf32> to vector<32x128xf32>
    %186 = arith.subf %180, %185 : vector<32x128xf32>
    %187 = arith.mulf %186, %186 : vector<32x128xf32>
    %cst_75 = arith.constant dense<0.000000e+00> : vector<32xf32>
    %188 = vector.multi_reduction <add>, %187, %cst_75 [1] : vector<32x128xf32> to vector<32xf32>
    %189 = vector.shape_cast %188 : vector<32xf32> to vector<32x1xf32>
    %cst_76 = arith.constant 1.280000e+02 : f32
    %190 = vector.broadcast %cst_76 : f32 to vector<32x1xf32>
    %191 = arith.divf %189, %190 : vector<32x1xf32>
    %192 = vector.broadcast %184 : vector<32x1xf32> to vector<32x128xf32>
    %193 = arith.subf %180, %192 : vector<32x128xf32>
    %cst_77 = arith.constant 9.99999996E-13 : f32
    %194 = vector.broadcast %cst_77 : f32 to vector<32x1xf32>
    %195 = arith.addf %191, %194 : vector<32x1xf32>
    %196 = math.rsqrt %195 : vector<32x1xf32>
    %197 = vector.broadcast %196 : vector<32x1xf32> to vector<32x128xf32>
    %198 = arith.mulf %193, %197 : vector<32x128xf32>
    %199 = vector.broadcast %142 : vector<1x128xf32> to vector<32x128xf32>
    %200 = arith.mulf %198, %199 : vector<32x128xf32>
    %201 = vector.broadcast %143 : vector<1x128xf32> to vector<32x128xf32>
    %202 = arith.addf %200, %201 : vector<32x128xf32>
    %c1_78 = arith.constant 1 : index
    %c0_79 = arith.constant 0 : index
    %c0_80 = arith.constant 0 : index
    %203 = vector.load %arg6[%c1_78, %c0_79, %c0_80] : memref<2x128x512xf32, #tpu.memory_space<vmem>>, vector<1x128x512xf32>
    %204 = vector.shape_cast %203 : vector<1x128x512xf32> to vector<128x512xf32>
    %cst_81 = arith.constant dense<0.000000e+00> : vector<32x512xf32>
    %205 = tpu.matmul %202, %204, %cst_81 {dimension_numbers = #tpu.dot_dimension_numbers<[1], [0], [0], [1], [0, 0, 1, 1], [], []>} : vector<32x128xf32>, vector<128x512xf32>, vector<32x512xf32> -> vector<32x512xf32>
    %c1_82 = arith.constant 1 : index
    %c0_83 = arith.constant 0 : index
    %c0_84 = arith.constant 0 : index
    %206 = vector.load %arg7[%c1_82, %c0_83, %c0_84] : memref<2x1x512xf32, #tpu.memory_space<vmem>>, vector<1x1x512xf32>
    %207 = vector.shape_cast %206 : vector<1x1x512xf32> to vector<1x512xf32>
    %208 = vector.broadcast %207 : vector<1x512xf32> to vector<32x512xf32>
    %209 = arith.addf %205, %208 : vector<32x512xf32>
    %210 = arith.mulf %209, %209 : vector<32x512xf32>
    %211 = arith.mulf %209, %210 : vector<32x512xf32>
    %cst_85 = arith.constant 4.471500e-02 : f32
    %212 = vector.broadcast %cst_85 : f32 to vector<32x512xf32>
    %213 = arith.mulf %212, %211 : vector<32x512xf32>
    %214 = arith.addf %209, %213 : vector<32x512xf32>
    %cst_86 = arith.constant 0.797884583 : f32
    %215 = vector.broadcast %cst_86 : f32 to vector<32x512xf32>
    %216 = arith.mulf %215, %214 : vector<32x512xf32>
    %217 = math.tanh %216 : vector<32x512xf32>
    %cst_87 = arith.constant 1.000000e+00 : f32
    %218 = vector.broadcast %cst_87 : f32 to vector<32x512xf32>
    %219 = arith.addf %218, %217 : vector<32x512xf32>
    %cst_88 = arith.constant 5.000000e-01 : f32
    %220 = vector.broadcast %cst_88 : f32 to vector<32x512xf32>
    %221 = arith.mulf %220, %219 : vector<32x512xf32>
    %222 = arith.mulf %209, %221 : vector<32x512xf32>
    %c1_89 = arith.constant 1 : index
    %c0_90 = arith.constant 0 : index
    %c0_91 = arith.constant 0 : index
    %223 = vector.load %arg8[%c1_89, %c0_90, %c0_91] : memref<2x512x128xf32, #tpu.memory_space<vmem>>, vector<1x512x128xf32>
    %224 = vector.shape_cast %223 : vector<1x512x128xf32> to vector<512x128xf32>
    %cst_92 = arith.constant dense<0.000000e+00> : vector<32x128xf32>
    %225 = tpu.matmul %222, %224, %cst_92 {dimension_numbers = #tpu.dot_dimension_numbers<[1], [0], [0], [1], [0, 0, 1, 1], [], []>} : vector<32x512xf32>, vector<512x128xf32>, vector<32x128xf32> -> vector<32x128xf32>
    %226 = vector.broadcast %144 : vector<1x128xf32> to vector<32x128xf32>
    %227 = arith.addf %225, %226 : vector<32x128xf32>
    %228 = arith.addf %202, %227 : vector<32x128xf32>
    %cst_93 = arith.constant dense<0.000000e+00> : vector<32xf32>
    %229 = vector.multi_reduction <add>, %228, %cst_93 [1] : vector<32x128xf32> to vector<32xf32>
    %230 = vector.shape_cast %229 : vector<32xf32> to vector<32x1xf32>
    %cst_94 = arith.constant 1.280000e+02 : f32
    %231 = vector.broadcast %cst_94 : f32 to vector<32x1xf32>
    %232 = arith.divf %230, %231 : vector<32x1xf32>
    %233 = vector.broadcast %232 : vector<32x1xf32> to vector<32x128xf32>
    %234 = arith.subf %228, %233 : vector<32x128xf32>
    %235 = arith.mulf %234, %234 : vector<32x128xf32>
    %cst_95 = arith.constant dense<0.000000e+00> : vector<32xf32>
    %236 = vector.multi_reduction <add>, %235, %cst_95 [1] : vector<32x128xf32> to vector<32xf32>
    %237 = vector.shape_cast %236 : vector<32xf32> to vector<32x1xf32>
    %cst_96 = arith.constant 1.280000e+02 : f32
    %238 = vector.broadcast %cst_96 : f32 to vector<32x1xf32>
    %239 = arith.divf %237, %238 : vector<32x1xf32>
    %240 = vector.broadcast %232 : vector<32x1xf32> to vector<32x128xf32>
    %241 = arith.subf %228, %240 : vector<32x128xf32>
    %cst_97 = arith.constant 9.99999996E-13 : f32
    %242 = vector.broadcast %cst_97 : f32 to vector<32x1xf32>
    %243 = arith.addf %239, %242 : vector<32x1xf32>
    %244 = math.rsqrt %243 : vector<32x1xf32>
    %245 = vector.broadcast %244 : vector<32x1xf32> to vector<32x128xf32>
    %246 = arith.mulf %241, %245 : vector<32x128xf32>
    %247 = vector.broadcast %145 : vector<1x128xf32> to vector<32x128xf32>
    %248 = arith.mulf %246, %247 : vector<32x128xf32>
    %249 = vector.broadcast %146 : vector<1x128xf32> to vector<32x128xf32>
    %250 = arith.addf %248, %249 : vector<32x128xf32>
    %251 = vector.shape_cast %250 : vector<32x128xf32> to vector<2x16x128xf32>
    %cst_98 = arith.constant dense<0.000000e+00> : vector<2x128xf32>
    %252 = vector.multi_reduction <add>, %251, %cst_98 [1] : vector<2x16x128xf32> to vector<2x128xf32>
    %cst_99 = arith.constant 6.250000e-02 : f32
    %253 = vector.broadcast %cst_99 : f32 to vector<2x128xf32>
    %254 = arith.mulf %252, %253 : vector<2x128xf32>
    %c0_100 = arith.constant 0 : index
    %c0_101 = arith.constant 0 : index
    %c0_102 = arith.constant 0 : index
    %255 = vector.load %arg10[%c0_100, %c0_101, %c0_102] : memref<1x2x128xf32, #tpu.memory_space<vmem>>, vector<1x2x128xf32>
    %256 = vector.shape_cast %255 : vector<1x2x128xf32> to vector<2x128xf32>
    %257 = vector.shape_cast %254 : vector<2x128xf32> to vector<1x2x128xf32>
    tpu.vector_store %arg10[%c0_100, %c0_101, %c0_102], %257 {strides = array<i32>} : memref<1x2x128xf32, #tpu.memory_space<vmem>>, vector<1x2x128xf32>,
    return
  }
  func.func @transform_0(%arg0: i32) -> (i32, i32, i32, i32) {
    %c0_i32 = arith.constant 0 : i32
    %c0_i32_0 = arith.constant 0 : i32
    %c0_i32_1 = arith.constant 0 : i32
    %c0_i32_2 = arith.constant 0 : i32
    return %arg0, %c0_i32, %c0_i32_0, %c0_i32_1 : i32, i32, i32, i32
  }
  func.func @transform_1(%arg0: i32) -> (i32, i32) {
    %c0_i32 = arith.constant 0 : i32
    %c0_i32_0 = arith.constant 0 : i32
    %c0_i32_1 = arith.constant 0 : i32
    return %c0_i32, %c0_i32_0 : i32, i32
  }
  func.func @transform_2(%arg0: i32) -> (i32, i32, i32) {
    %c0_i32 = arith.constant 0 : i32
    %c0_i32_0 = arith.constant 0 : i32
    %c0_i32_1 = arith.constant 0 : i32
    %c0_i32_2 = arith.constant 0 : i32
    return %c0_i32, %c0_i32_0, %c0_i32_1 : i32, i32, i32
  }
  func.func @transform_3(%arg0: i32) -> (i32, i32, i32) {
    %c0_i32 = arith.constant 0 : i32
    %c0_i32_0 = arith.constant 0 : i32
    %c0_i32_1 = arith.constant 0 : i32
    %c0_i32_2 = arith.constant 0 : i32
    return %c0_i32, %c0_i32_0, %c0_i32_1 : i32, i32, i32
  }
  func.func @transform_4(%arg0: i32) -> (i32, i32, i32) {
    %c0_i32 = arith.constant 0 : i32
    %c0_i32_0 = arith.constant 0 : i32
    %c0_i32_1 = arith.constant 0 : i32
    %c0_i32_2 = arith.constant 0 : i32
    return %c0_i32, %c0_i32_0, %c0_i32_1 : i32, i32, i32
  }
  func.func @transform_5(%arg0: i32) -> (i32, i32, i32) {
    %c0_i32 = arith.constant 0 : i32
    %c0_i32_0 = arith.constant 0 : i32
    %c0_i32_1 = arith.constant 0 : i32
    %c0_i32_2 = arith.constant 0 : i32
    return %c0_i32, %c0_i32_0, %c0_i32_1 : i32, i32, i32
  }
  func.func @transform_6(%arg0: i32) -> (i32, i32, i32) {
    %c0_i32 = arith.constant 0 : i32
    %c0_i32_0 = arith.constant 0 : i32
    %c0_i32_1 = arith.constant 0 : i32
    %c0_i32_2 = arith.constant 0 : i32
    return %c0_i32, %c0_i32_0, %c0_i32_1 : i32, i32, i32
  }
  func.func @transform_7(%arg0: i32) -> (i32, i32, i32) {
    %c0_i32 = arith.constant 0 : i32
    %c0_i32_0 = arith.constant 0 : i32
    %c0_i32_1 = arith.constant 0 : i32
    %c0_i32_2 = arith.constant 0 : i32
    return %c0_i32, %c0_i32_0, %c0_i32_1 : i32, i32, i32
  }
  func.func @transform_8(%arg0: i32) -> (i32, i32, i32) {
    %c0_i32 = arith.constant 0 : i32
    %c0_i32_0 = arith.constant 0 : i32
    %c0_i32_1 = arith.constant 0 : i32
    %c0_i32_2 = arith.constant 0 : i32
    return %c0_i32, %c0_i32_0, %c0_i32_1 : i32, i32, i32
  }
  func.func @transform_9(%arg0: i32) -> (i32, i32, i32) {
    %c0_i32 = arith.constant 0 : i32
    %c0_i32_0 = arith.constant 0 : i32
    %c0_i32_1 = arith.constant 0 : i32
    return %arg0, %c0_i32, %c0_i32_0 : i32, i32, i32
  }
}

</mosaic_0001>

<llo_original>
// kernel: network_forward.1
$region0: #{network_forward.1}
  #allocation0 [shape = 'u32[]', space=smem, size = 0x4, offset = 0x4, fixed_abs, tag = 'smem constant byte address 0x4 - core index']
  #allocation1 [shape = 'u32[144,128]{1,0:T(1,128)}', space=vmem, size = 0x12000, scoped, tag = 'internal scratch']
  %s0 = inlined_call_operand.vmem [shape: f32[2,2,16,128], index: 0, kind: input, shape index: {}]
  %s1 = inlined_call_operand.hbm [shape: f32[2,128], index: 1, kind: input, shape index: {}]
  %s2 = inlined_call_operand.vmem [shape: f32[2,128,384], index: 2, kind: input, shape index: {}]
  %s3 = inlined_call_operand.vmem [shape: f32[2,1,384], index: 3, kind: input, shape index: {}]
  %s4 = inlined_call_operand.hbm [shape: f32[2,128,128], index: 4, kind: input, shape index: {}]
  %s5 = inlined_call_operand.hbm [shape: f32[2,128,512], index: 5, kind: input, shape index: {}]
  %s6 = inlined_call_operand.vmem [shape: f32[2,1,512], index: 6, kind: input, shape index: {}]
  %s7 = inlined_call_operand.hbm [shape: f32[2,512,128], index: 7, kind: input, shape index: {}]
  %s8 = inlined_call_operand.vmem [shape: f32[2,6,128], index: 8, kind: input, shape index: {}]
  %s9 = inlined_call_operand.vmem [shape: f32[2,2,128], index: 9, kind: output, shape index: {}]
  %s10 = sld [smem:[#allocation0]]
  $region85: #{network_forward.1} parent=0
    _
  %s12 = ssub.s32 1, %s10
  %s13 = scalar_select 0, %s12, %s10
  $region1: #{network_forward.1} parent=0
    #allocation2 [shape = 'u8[1024]{0}', space=vmem, size = 0x400, scoped, tag = 'input window, operand 1, single buffered']
    #allocation3 [shape = 's32[2]{0}', space=sflag, size = 0x8, scoped, tag = 'scoped memory for network_forward.1']
    #allocation4 [shape = 'u8[131072]{0}', space=vmem, size = 0x20000, scoped, tag = 'input window, operand 4, single buffered']
    #allocation5 [shape = 's32[1]{0}', space=sflag, size = 0x4, scoped, tag = 'scoped memory for network_forward.1']
    #allocation6 [shape = 'u8[524288]{0}', space=vmem, size = 0x80000, scoped, tag = 'input window, operand 5, single buffered']
    #allocation7 [shape = 'u8[524288]{0}', space=vmem, size = 0x80000, scoped, tag = 'input window, operand 7, single buffered']
    #allocation8 [shape = 's32[1]{0}', space=sflag, size = 0x4, scoped, tag = 'scoped memory for network_forward.1']
    %14 = vsyncpa [#allocation3], 0
    %15 = vsyncpa [#allocation5], 0
    %16 = vsyncpa [#allocation8], 0
    loop: start=0, step=1, limit=4
    $region2: #{network_forward.1} parent=1 // loop_pre_header
      _
    $region3: #{network_forward.1} parent=1 // loop_header
      %s18 = sphi 0, %s22
      %p19 = scmp.ge.s32.totalorder %s18, 4
      %s28 = sphi 0, %s30
      %s31 = sphi 0, %s28
      %s32 = sphi 0, %s31
      %s48 = sphi 0, %s32
      %s52 = sphi 0, %s52
      %s54 = sphi 0, %s52
      %s55 = sphi 0, %s54
      %s69 = sphi 0, %s55
      %s73 = sphi 0, %s73
      %s75 = sphi 0, %s73
      %s76 = sphi 0, %s75
      %s90 = sphi 0, %s76
      %s94 = sphi 0, %s94
      %s96 = sphi 0, %s94
      %s97 = sphi 0, %s96
      %s111 = sphi 0, %s97
      %s115 = sphi 0, %s115
      %s117 = sphi 0, %s115
      %s118 = sphi 0, %s117
      %s132 = sphi 0, %s118
      %s136 = sphi 0, %s136
      %s138 = sphi 0, %s136
      %s139 = sphi 0, %s138
      %s153 = sphi 0, %s139
      %s157 = sphi 0, %s157
      %s159 = sphi 0, %s157
      %s160 = sphi 0, %s159
      %s174 = sphi 0, %s160
      %s178 = sphi 0, %s178
      %s180 = sphi 0, %s178
      %s181 = sphi 0, %s180
      %s195 = sphi 0, %s181
      %s199 = sphi 0, %s199
      %s201 = sphi 0, %s199
      %s202 = sphi 0, %s201
      %s216 = sphi 0, %s202
      %s222 = sphi 0, %s224
      %s225 = sphi 0, %s222
      %s226 = sphi 0, %s225
      %s242 = sphi 0, %s226
    $region4: #{network_forward.1} parent=1 // loop_header_branch
      %21 = sbr.rel (%p19) target = $region8
    $region5: #{network_forward.1} parent=1 // loop_body
      %s23 = ssub.s32 %s18, 1
      %s24 = ssub.s32 %s18, 2
      %s25 = sadd.s32 %s18, 1
      %s26 = ssub.s32 %s18, %s25
      %p27 = scmp.eq.s32.totalorder %s26, 0
      %s29 = sadd.s32 %s28, 1
      %s30 = scalar_select %p27, %s28, %s29
      %p33 = pneg %p27
      %p34 = scmp.eq.s32.totalorder %s18, 1
      %p35 = por %p33, %p34
      %p36 = scmp.ne.s32.totalorder %s28, %s31
      %p37 = scmp.eq.s32.totalorder %s18, 0
      %p38 = por %p36, %p37
      %p39 = scmp.ne.s32.totalorder %s28, %s31
      %p40 = scmp.eq.s32.totalorder %s23, 1
      %p41 = por %p39, %p40
      %p42 = scmp.ne.s32.totalorder %s31, %s32
      %p43 = scmp.eq.s32.totalorder %s23, 0
      %p44 = por %p42, %p43
      %p45 = scmp.ne.s32.totalorder %s31, %s32
      %p46 = scmp.eq.s32.totalorder %s24, 1
      %p47 = por %p45, %p46
      %p49 = scmp.ne.s32.totalorder %s32, %s48
      %p50 = scmp.eq.s32.totalorder %s24, 0
      %p51 = por %p49, %p50
      %s53 = sadd.s32 %s52, 1
      %p56 = scmp.eq.s32.totalorder %s18, 1
      %p57 = scmp.ne.s32.totalorder %s52, %s54
      %p58 = scmp.eq.s32.totalorder %s18, 0
      %p59 = por %p57, %p58
      %p60 = scmp.ne.s32.totalorder %s52, %s54
      %p61 = scmp.eq.s32.totalorder %s23, 1
      %p62 = por %p60, %p61
      %p63 = scmp.ne.s32.totalorder %s54, %s55
      %p64 = scmp.eq.s32.totalorder %s23, 0
      %p65 = por %p63, %p64
      %p66 = scmp.ne.s32.totalorder %s54, %s55
      %p67 = scmp.eq.s32.totalorder %s24, 1
      %p68 = por %p66, %p67
      %p70 = scmp.ne.s32.totalorder %s55, %s69
      %p71 = scmp.eq.s32.totalorder %s24, 0
      %p72 = por %p70, %p71
      %s74 = sadd.s32 %s73, 1
      %p77 = scmp.eq.s32.totalorder %s18, 1
      %p78 = scmp.ne.s32.totalorder %s73, %s75
      %p79 = scmp.eq.s32.totalorder %s18, 0
      %p80 = por %p78, %p79
      %p81 = scmp.ne.s32.totalorder %s73, %s75
      %p82 = scmp.eq.s32.totalorder %s23, 1
      %p83 = por %p81, %p82
      %p84 = scmp.ne.s32.totalorder %s75, %s76
      %p85 = scmp.eq.s32.totalorder %s23, 0
      %p86 = por %p84, %p85
      %p87 = scmp.ne.s32.totalorder %s75, %s76
      %p88 = scmp.eq.s32.totalorder %s24, 1
      %p89 = por %p87, %p88
      %p91 = scmp.ne.s32.totalorder %s76, %s90
      %p92 = scmp.eq.s32.totalorder %s24, 0
      %p93 = por %p91, %p92
      %s95 = sadd.s32 %s94, 1
      %p98 = scmp.eq.s32.totalorder %s18, 1
      %p99 = scmp.ne.s32.totalorder %s94, %s96
      %p100 = scmp.eq.s32.totalorder %s18, 0
      %p101 = por %p99, %p100
      %p102 = scmp.ne.s32.totalorder %s94, %s96
      %p103 = scmp.eq.s32.totalorder %s23, 1
      %p104 = por %p102, %p103
      %p105 = scmp.ne.s32.totalorder %s96, %s97
      %p106 = scmp.eq.s32.totalorder %s23, 0
      %p107 = por %p105, %p106
      %p108 = scmp.ne.s32.totalorder %s96, %s97
      %p109 = scmp.eq.s32.totalorder %s24, 1
      %p110 = por %p108, %p109
      %p112 = scmp.ne.s32.totalorder %s97, %s111
      %p113 = scmp.eq.s32.totalorder %s24, 0
      %p114 = por %p112, %p113
      %s116 = sadd.s32 %s115, 1
      %p119 = scmp.eq.s32.totalorder %s18, 1
      %p120 = scmp.ne.s32.totalorder %s115, %s117
      %p121 = scmp.eq.s32.totalorder %s18, 0
      %p122 = por %p120, %p121
      %p123 = scmp.ne.s32.totalorder %s115, %s117
      %p124 = scmp.eq.s32.totalorder %s23, 1
      %p125 = por %p123, %p124
      %p126 = scmp.ne.s32.totalorder %s117, %s118
      %p127 = scmp.eq.s32.totalorder %s23, 0
      %p128 = por %p126, %p127
      %p129 = scmp.ne.s32.totalorder %s117, %s118
      %p130 = scmp.eq.s32.totalorder %s24, 1
      %p131 = por %p129, %p130
      %p133 = scmp.ne.s32.totalorder %s118, %s132
      %p134 = scmp.eq.s32.totalorder %s24, 0
      %p135 = por %p133, %p134
      %s137 = sadd.s32 %s136, 1
      %p140 = scmp.eq.s32.totalorder %s18, 1
      %p141 = scmp.ne.s32.totalorder %s136, %s138
      %p142 = scmp.eq.s32.totalorder %s18, 0
      %p143 = por %p141, %p142
      %p144 = scmp.ne.s32.totalorder %s136, %s138
      %p145 = scmp.eq.s32.totalorder %s23, 1
      %p146 = por %p144, %p145
      %p147 = scmp.ne.s32.totalorder %s138, %s139
      %p148 = scmp.eq.s32.totalorder %s23, 0
      %p149 = por %p147, %p148
      %p150 = scmp.ne.s32.totalorder %s138, %s139
      %p151 = scmp.eq.s32.totalorder %s24, 1
      %p152 = por %p150, %p151
      %p154 = scmp.ne.s32.totalorder %s139, %s153
      %p155 = scmp.eq.s32.totalorder %s24, 0
      %p156 = por %p154, %p155
      %s158 = sadd.s32 %s157, 1
      %p161 = scmp.eq.s32.totalorder %s18, 1
      %p162 = scmp.ne.s32.totalorder %s157, %s159
      %p163 = scmp.eq.s32.totalorder %s18, 0
      %p164 = por %p162, %p163
      %p165 = scmp.ne.s32.totalorder %s157, %s159
      %p166 = scmp.eq.s32.totalorder %s23, 1
      %p167 = por %p165, %p166
      %p168 = scmp.ne.s32.totalorder %s159, %s160
      %p169 = scmp.eq.s32.totalorder %s23, 0
      %p170 = por %p168, %p169
      %p171 = scmp.ne.s32.totalorder %s159, %s160
      %p172 = scmp.eq.s32.totalorder %s24, 1
      %p173 = por %p171, %p172
      %p175 = scmp.ne.s32.totalorder %s160, %s174
      %p176 = scmp.eq.s32.totalorder %s24, 0
      %p177 = por %p175, %p176
      %s179 = sadd.s32 %s178, 1
      %p182 = scmp.eq.s32.totalorder %s18, 1
      %p183 = scmp.ne.s32.totalorder %s178, %s180
      %p184 = scmp.eq.s32.totalorder %s18, 0
      %p185 = por %p183, %p184
      %p186 = scmp.ne.s32.totalorder %s178, %s180
      %p187 = scmp.eq.s32.totalorder %s23, 1
      %p188 = por %p186, %p187
      %p189 = scmp.ne.s32.totalorder %s180, %s181
      %p190 = scmp.eq.s32.totalorder %s23, 0
      %p191 = por %p189, %p190
      %p192 = scmp.ne.s32.totalorder %s180, %s181
      %p193 = scmp.eq.s32.totalorder %s24, 1
      %p194 = por %p192, %p193
      %p196 = scmp.ne.s32.totalorder %s181, %s195
      %p197 = scmp.eq.s32.totalorder %s24, 0
      %p198 = por %p196, %p197
      %s200 = sadd.s32 %s199, 1
      %p203 = scmp.eq.s32.totalorder %s18, 1
      %p204 = scmp.ne.s32.totalorder %s199, %s201
      %p205 = scmp.eq.s32.totalorder %s18, 0
      %p206 = por %p204, %p205
      %p207 = scmp.ne.s32.totalorder %s199, %s201
      %p208 = scmp.eq.s32.totalorder %s23, 1
      %p209 = por %p207, %p208
      %p210 = scmp.ne.s32.totalorder %s201, %s202
      %p211 = scmp.eq.s32.totalorder %s23, 0
      %p212 = por %p210, %p211
      %p213 = scmp.ne.s32.totalorder %s201, %s202
      %p214 = scmp.eq.s32.totalorder %s24, 1
      %p215 = por %p213, %p214
      %p217 = scmp.ne.s32.totalorder %s202, %s216
      %p218 = scmp.eq.s32.totalorder %s24, 0
      %p219 = por %p217, %p218
      %s220 = ssub.s32 %s18, %s25
      %p221 = scmp.eq.s32.totalorder %s220, 0
      %s223 = sadd.s32 %s222, 1
      %s224 = scalar_select %p221, %s222, %s223
      %p227 = pneg %p221
      %p228 = scmp.eq.s32.totalorder %s18, 1
      %p229 = por %p227, %p228
      %p230 = scmp.ne.s32.totalorder %s222, %s225
      %p231 = scmp.eq.s32.totalorder %s18, 0
      %p232 = por %p230, %p231
      %p233 = scmp.ne.s32.totalorder %s222, %s225
      %p234 = scmp.eq.s32.totalorder %s23, 1
      %p235 = por %p233, %p234
      %p236 = scmp.ne.s32.totalorder %s225, %s226
      %p237 = scmp.eq.s32.totalorder %s23, 0
      %p238 = por %p236, %p237
      %p239 = scmp.ne.s32.totalorder %s225, %s226
      %p240 = scmp.eq.s32.totalorder %s24, 1
      %p241 = por %p239, %p240
      %p243 = scmp.ne.s32.totalorder %s226, %s242
      %p244 = scmp.eq.s32.totalorder %s24, 0
      %p245 = por %p243, %p244
      %p246 = scmp.le.s32.totalorder 1, %s18
      %p247 = scmp.lt.s32.totalorder %s18, 3
      %p248 = pnand %p246, %p247
      %p249 = pneg %p248
      // Predicated region
      $region9: #{network_forward.1} parent=5 // pred_check
        _
      $region10: #{network_forward.1} parent=5 // pred_check_branch
        %251 = sbr.rel (%p248) target = $region12
      $region11: #{network_forward.1} parent=5 // pred_region
        %s252 = ssub.s32 %s18, 1
        // Predicated region
        $region13: #{network_forward.1} parent=11 // pred_check
          %p253 = pneg %p65
        $region14: #{network_forward.1} parent=11 // pred_check_branch
          %255 = sbr.rel (%p253) target = $region16
        $region15: #{network_forward.1} parent=11 // pred_region
          %s257 = ssub.s32 32, 32
          %258 = vsyncadd [#allocation3], %s257
          %s260 = sshll.u32 [#allocation2], 4
          %s261 = int_to_ptr.vmem [resolvable:$true] %s260
          %263 = dma.hbm_to_vmem [thread:$0]  %s1, 32, %s261, [#allocation3]
        $region16: #{network_forward.1} parent=11 // pred_fallthru
          _
        // Predicated region
        $region17: #{network_forward.1} parent=11 // pred_check
          %p264 = pneg %p86
        $region18: #{network_forward.1} parent=11 // pred_check_branch
          %266 = sbr.rel (%p264) target = $region20
        $region19: #{network_forward.1} parent=11 // pred_region
          _
        $region20: #{network_forward.1} parent=11 // pred_fallthru
          _
        // Predicated region
        $region21: #{network_forward.1} parent=11 // pred_check
          %p267 = pneg %p107
        $region22: #{network_forward.1} parent=11 // pred_check_branch
          %269 = sbr.rel (%p267) target = $region24
        $region23: #{network_forward.1} parent=11 // pred_region
          _
        $region24: #{network_forward.1} parent=11 // pred_fallthru
          _
        // Predicated region
        $region25: #{network_forward.1} parent=11 // pred_check
          %p270 = pneg %p128
        $region26: #{network_forward.1} parent=11 // pred_check_branch
          %272 = sbr.rel (%p270) target = $region28
        $region27: #{network_forward.1} parent=11 // pred_region
          %s274 = ssub.s32 4096, 4096
          %275 = vsyncadd [#allocation5], %s274
          %s276 = sshll.u32 [#allocation4], 4
          %s277 = int_to_ptr.vmem [resolvable:$true] %s276
          %282 = dma.hbm_to_vmem [thread:$0]  %s4, 4096, %s277, [#allocation5], 128, 128, 8
        $region28: #{network_forward.1} parent=11 // pred_fallthru
          _
        // Predicated region
        $region29: #{network_forward.1} parent=11 // pred_check
          %p283 = pneg %p149
        $region30: #{network_forward.1} parent=11 // pred_check_branch
          %285 = sbr.rel (%p283) target = $region32
        $region31: #{network_forward.1} parent=11 // pred_region
          %s287 = ssub.s32 16384, 16384
          %288 = vsyncadd [#allocation5], %s287
          %s289 = sshll.u32 [#allocation6], 4
          %s290 = int_to_ptr.vmem [resolvable:$true] %s289
          %295 = dma.hbm_to_vmem [thread:$0]  %s5, 16384, %s290, [#allocation5], 512, 512, 32
        $region32: #{network_forward.1} parent=11 // pred_fallthru
          _
        // Predicated region
        $region33: #{network_forward.1} parent=11 // pred_check
          %p296 = pneg %p170
        $region34: #{network_forward.1} parent=11 // pred_check_branch
          %298 = sbr.rel (%p296) target = $region36
        $region35: #{network_forward.1} parent=11 // pred_region
          _
        $region36: #{network_forward.1} parent=11 // pred_fallthru
          _
        // Predicated region
        $region37: #{network_forward.1} parent=11 // pred_check
          %p299 = pneg %p191
        $region38: #{network_forward.1} parent=11 // pred_check_branch
          %301 = sbr.rel (%p299) target = $region40
        $region39: #{network_forward.1} parent=11 // pred_region
          %s303 = ssub.s32 16384, 16384
          %304 = vsyncadd [#allocation8], %s303
          %s305 = sshll.u32 [#allocation7], 4
          %s306 = int_to_ptr.vmem [resolvable:$true] %s305
          %311 = dma.hbm_to_vmem [thread:$0]  %s7, 16384, %s306, [#allocation8], 128, 128, 8
        $region40: #{network_forward.1} parent=11 // pred_fallthru
          _
        // Predicated region
        $region41: #{network_forward.1} parent=11 // pred_check
          %p312 = pneg %p212
        $region42: #{network_forward.1} parent=11 // pred_check_branch
          %314 = sbr.rel (%p312) target = $region44
        $region43: #{network_forward.1} parent=11 // pred_region
          _
        $region44: #{network_forward.1} parent=11 // pred_fallthru
          _
      $region12: #{network_forward.1} parent=5 // pred_fallthru
        _
      %p315 = scmp.lt.s32.totalorder %s18, 2
      // Predicated region
      $region45: #{network_forward.1} parent=5 // pred_check
        %p316 = pneg %p315
      $region46: #{network_forward.1} parent=5 // pred_check_branch
        %318 = sbr.rel (%p316) target = $region48
      $region47: #{network_forward.1} parent=5 // pred_region
        // Predicated region
        $region49: #{network_forward.1} parent=47 // pred_check
          %p319 = pneg %p38
        $region50: #{network_forward.1} parent=47 // pred_check_branch
          %321 = sbr.rel (%p319) target = $region52
        $region51: #{network_forward.1} parent=47 // pred_region
          %p322 = scmp.lt.s32.totalorder %s18, 1
          %s323 = scalar_select %p322, %s18, 1
          %s324 = smul.addr %s323, 4
          %s325 = smul.addr %s324, 8
          %s326 = scalar_lea.vmem %s0, %s325
        $region52: #{network_forward.1} parent=47 // pred_fallthru
          _
      $region48: #{network_forward.1} parent=5 // pred_fallthru
        _
      %p327 = scmp.le.s32.totalorder 1, %s18
      %p328 = scmp.lt.s32.totalorder %s18, 3
      %p329 = pnand %p327, %p328
      %p330 = pneg %p329
      // Predicated region
      $region53: #{network_forward.1} parent=5 // pred_check
        _
      $region54: #{network_forward.1} parent=5 // pred_check_branch
        %332 = sbr.rel (%p329) target = $region56
      $region55: #{network_forward.1} parent=5 // pred_region
        %s333 = ssub.s32 %s18, 1
        // Predicated region
        $region57: #{network_forward.1} parent=55 // pred_check
          %p334 = pneg %p65
        $region58: #{network_forward.1} parent=55 // pred_check_branch
          %336 = sbr.rel (%p334) target = $region60
        $region59: #{network_forward.1} parent=55 // pred_region
          %337 = dma.done [#allocation3], 32
        $region60: #{network_forward.1} parent=55 // pred_fallthru
          _
        // Predicated region
        $region61: #{network_forward.1} parent=55 // pred_check
          %p338 = pneg %p128
        $region62: #{network_forward.1} parent=55 // pred_check_branch
          %340 = sbr.rel (%p338) target = $region64
        $region63: #{network_forward.1} parent=55 // pred_region
          %341 = dma.done [#allocation5], 4096
        $region64: #{network_forward.1} parent=55 // pred_fallthru
          _
        // Predicated region
        $region65: #{network_forward.1} parent=55 // pred_check
          %p342 = pneg %p149
        $region66: #{network_forward.1} parent=55 // pred_check_branch
          %344 = sbr.rel (%p342) target = $region68
        $region67: #{network_forward.1} parent=55 // pred_region
          %345 = dma.done [#allocation5], 16384
        $region68: #{network_forward.1} parent=55 // pred_fallthru
          _
        // Predicated region
        $region69: #{network_forward.1} parent=55 // pred_check
          %p346 = pneg %p191
        $region70: #{network_forward.1} parent=55 // pred_check_branch
          %348 = sbr.rel (%p346) target = $region72
        $region71: #{network_forward.1} parent=55 // pred_region
          %349 = dma.done [#allocation8], 16384
        $region72: #{network_forward.1} parent=55 // pred_fallthru
          _
        %p350 = scmp.lt.s32.totalorder %s23, 1
        %s351 = scalar_select %p350, %s23, 1
        %s352 = smul.addr %s351, 4
        %s353 = smul.addr %s352, 8
        %s354 = scalar_lea.vmem %s0, %s353
        %p355 = pneg %p44
        %p356 = pneg %p41
        %p357 = pneg %p65
        %p358 = pneg %p62
        %p359 = pneg %p86
        %p360 = pneg %p83
        %p361 = pneg %p107
        %p362 = pneg %p104
        %p363 = pneg %p128
        %p364 = pneg %p125
        %p365 = pneg %p149
        %p366 = pneg %p146
        %p367 = pneg %p170
        %p368 = pneg %p167
        %p369 = pneg %p191
        %p370 = pneg %p188
        %p371 = pneg %p212
        %p372 = pneg %p209
        %p373 = pneg %p238
        %p374 = pneg %p235
        %p375 = scmp.lt.s32.totalorder %s23, 1
        %s376 = scalar_select %p375, %s23, 1
        %s377 = smul.addr %s376, 2
        %s378 = scalar_lea.vmem %s9, %s377
        %p379 = scmp.lt.s32.totalorder %s23, 1
        %s380 = scalar_select %p379, %s23, 1
        %s381 = smul.addr %s380, 4
        %s382 = smul.addr %s381, 8
        %s383 = scalar_lea.vmem %s0, %s382
        %p384 = scmp.lt.s32.totalorder %s23, 1
        %s385 = scalar_select %p384, %s23, 1
        %s386 = smul.addr %s385, 2
        %s387 = scalar_lea.vmem %s9, %s386
        %v388 = vld [vmem:[%s383] sm:$0xff]
        %v389 = vld [vmem:[%s383 + $0x8] sm:$0xff]
        %v390 = vld [vmem:[%s383 + $0x10] sm:$0xff]
        %v391 = vld [vmem:[%s383 + $0x18] sm:$0xff]
        %v392 = vld [vmem:[#allocation2] sm:$0x1]
        %v393 = vld [vmem:[#allocation2 + $0x1] sm:$0x1]
        %394 = vadd.xlane.f32.xlu0 %v388
        %v395 = vpop.xlane.xlu0 %394
        %396 = vadd.xlane.f32.xlu0 %v389
        %v397 = vpop.xlane.xlu0 %396
        %398 = vadd.xlane.f32.xlu0 %v390
        %v399 = vpop.xlane.xlu0 %398
        %400 = vadd.xlane.f32.xlu0 %v391
        %v401 = vpop.xlane.xlu0 %400
        %v402 = vrcp.pop 128.0
        %v403 = vmul.f32 %v395, %v402
        %v404 = vmul.f32 %v397, %v402
        %v405 = vmul.f32 %v399, %v402
        %v406 = vmul.f32 %v401, %v402
        %v407 = vsub.f32 %v388, %v403
        %v408 = vsub.f32 %v389, %v404
        %v409 = vsub.f32 %v390, %v405
        %v410 = vsub.f32 %v391, %v406
        %v411 = vmul.f32 %v407, %v407
        %v412 = vmul.f32 %v408, %v408
        %v413 = vmul.f32 %v409, %v409
        %v414 = vmul.f32 %v410, %v410
        %415 = vadd.xlane.f32.xlu0 %v411
        %v416 = vpop.xlane.xlu0 %415
        %417 = vadd.xlane.f32.xlu0 %v412
        %v418 = vpop.xlane.xlu0 %417
        %419 = vadd.xlane.f32.xlu0 %v413
        %v420 = vpop.xlane.xlu0 %419
        %421 = vadd.xlane.f32.xlu0 %v414
        %v422 = vpop.xlane.xlu0 %421
        %v423 = vmul.f32 %v416, %v402
        %v424 = vmul.f32 %v418, %v402
        %v425 = vmul.f32 %v420, %v402
        %v426 = vmul.f32 %v422, %v402
        %v427 = vadd.f32 %v423, 1e-12
        %v428 = vadd.f32 %v424, 1e-12
        %v429 = vadd.f32 %v425, 1e-12
        %v430 = vadd.f32 %v426, 1e-12
        %v431 = vrsqrt.pop %v427
        %v432 = vrsqrt.pop %v428
        %v433 = vrsqrt.pop %v429
        %v434 = vrsqrt.pop %v430
        %v435 = vmul.f32 %v407, %v431
        %v436 = vmul.f32 %v408, %v432
        %v437 = vmul.f32 %v409, %v433
        %v438 = vmul.f32 %v410, %v434
        %v439 = vlaneseq
        %v440 = vshrl.u32 %v439, 7
        %v441 = vsub.s32 0, %v440
        %v442 = vrot.slane %v392, %v441
        %v443 = vmul.f32 %v435, %v442
        %v444 = vmul.f32 %v436, %v442
        %v445 = vmul.f32 %v437, %v442
        %v446 = vmul.f32 %v438, %v442
        %v447 = vlaneseq
        %v448 = vshrl.u32 %v447, 7
        %v449 = vsub.s32 0, %v448
        %v450 = vrot.slane %v393, %v449
        %v451 = vadd.f32 %v443, %v450
        %v452 = vadd.f32 %v444, %v450
        %v453 = vadd.f32 %v445, %v450
        %v454 = vadd.f32 %v446, %v450
        %v455 = vld [vmem:[%s8] sm:$0x3f]
        %v456 = vld [vmem:[%s2] sm:$0xff]
        %v457 = vld [vmem:[%s2 + $0x8] sm:$0xff]
        %v458 = vld [vmem:[%s2 + $0x10] sm:$0xff]
        %v459 = vld [vmem:[%s2 + $0x18] sm:$0xff]
        %v460 = vld [vmem:[%s2 + $0x20] sm:$0xff]
        %v461 = vld [vmem:[%s2 + $0x28] sm:$0xff]
        %v462 = vld [vmem:[%s2 + $0x30] sm:$0xff]
        %v463 = vld [vmem:[%s2 + $0x38] sm:$0xff]
        %v464 = vld [vmem:[%s2 + $0x40] sm:$0xff]
        %v465 = vld [vmem:[%s2 + $0x48] sm:$0xff]
        %v466 = vld [vmem:[%s2 + $0x50] sm:$0xff]
        %v467 = vld [vmem:[%s2 + $0x58] sm:$0xff]
        %v468 = vld [vmem:[%s2 + $0x60] sm:$0xff]
        %v469 = vld [vmem:[%s2 + $0x68] sm:$0xff]
        %v470 = vld [vmem:[%s2 + $0x70] sm:$0xff]
        %v471 = vld [vmem:[%s2 + $0x78] sm:$0xff]
        %v472 = vld [vmem:[%s2 + $0x80] sm:$0xff]
        %v473 = vld [vmem:[%s2 + $0x88] sm:$0xff]
        %v474 = vld [vmem:[%s2 + $0x90] sm:$0xff]
        %v475 = vld [vmem:[%s2 + $0x98] sm:$0xff]
        %v476 = vld [vmem:[%s2 + $0xa0] sm:$0xff]
        %v477 = vld [vmem:[%s2 + $0xa8] sm:$0xff]
        %v478 = vld [vmem:[%s2 + $0xb0] sm:$0xff]
        %v479 = vld [vmem:[%s2 + $0xb8] sm:$0xff]
        %v480 = vld [vmem:[%s2 + $0xc0] sm:$0xff]
        %v481 = vld [vmem:[%s2 + $0xc8] sm:$0xff]
        %v482 = vld [vmem:[%s2 + $0xd0] sm:$0xff]
        %v483 = vld [vmem:[%s2 + $0xd8] sm:$0xff]
        %v484 = vld [vmem:[%s2 + $0xe0] sm:$0xff]
        %v485 = vld [vmem:[%s2 + $0xe8] sm:$0xff]
        %v486 = vld [vmem:[%s2 + $0xf0] sm:$0xff]
        %v487 = vld [vmem:[%s2 + $0xf8] sm:$0xff]
        %v488 = vld [vmem:[%s2 + $0x100] sm:$0xff]
        %v489 = vld [vmem:[%s2 + $0x108] sm:$0xff]
        %v490 = vld [vmem:[%s2 + $0x110] sm:$0xff]
        %v491 = vld [vmem:[%s2 + $0x118] sm:$0xff]
        %v492 = vld [vmem:[%s2 + $0x120] sm:$0xff]
        %v493 = vld [vmem:[%s2 + $0x128] sm:$0xff]
        %v494 = vld [vmem:[%s2 + $0x130] sm:$0xff]
        %v495 = vld [vmem:[%s2 + $0x138] sm:$0xff]
        %v496 = vld [vmem:[%s2 + $0x140] sm:$0xff]
        %v497 = vld [vmem:[%s2 + $0x148] sm:$0xff]
        %v498 = vld [vmem:[%s2 + $0x150] sm:$0xff]
        %v499 = vld [vmem:[%s2 + $0x158] sm:$0xff]
        %v500 = vld [vmem:[%s2 + $0x160] sm:$0xff]
        %v501 = vld [vmem:[%s2 + $0x168] sm:$0xff]
        %v502 = vld [vmem:[%s2 + $0x170] sm:$0xff]
        %v503 = vld [vmem:[%s2 + $0x178] sm:$0xff]
        %v504 = vld [vmem:[%s3] sm:$0x7]
        %v506 = vlaneseq
        %v507 = vshrl.u32 %v506, 7
        %v508 = vsub.s32 0, %v507
        %v509 = vrot.slane %v504, %v508
        %v510 = vlaneseq
        %v511 = vshrl.u32 %v510, 7
        %v512 = vsub.s32 1, %v511
        %v513 = vrot.slane %v504, %v512
        %v514 = vlaneseq
        %v515 = vshrl.u32 %v514, 7
        %v516 = vsub.s32 2, %v515
        %v517 = vrot.slane %v504, %v516
        %521 = vmatprep.subr.mxu0 %v457
        %522 = vmatpush1.msra.mxu0 %v456
        %523 = vmatprep.subr.mxu0 %v460
        %524 = vmatpush1.msra.mxu0 %v459
        %525 = vmatprep.subr.mxu0 %v463
        %526 = vmatpush1.msra.mxu0 %v462
        %527 = vmatprep.subr.mxu0 %v466
        %528 = vmatpush1.msra.mxu0 %v465
        %529 = vmatprep.subr.mxu0 %v469
        %530 = vmatpush1.msra.mxu0 %v468
        %531 = vmatprep.subr.mxu0 %v472
        %532 = vmatpush1.msra.mxu0 %v471
        %533 = vmatprep.subr.mxu0 %v475
        %534 = vmatpush1.msra.mxu0 %v474
        %535 = vmatprep.subr.mxu0 %v478
        %536 = vmatpush1.msra.mxu0 %v477
        %537 = vmatprep.subr.mxu0 %v481
        %538 = vmatpush1.msra.mxu0 %v480
        %539 = vmatprep.subr.mxu0 %v484
        %540 = vmatpush1.msra.mxu0 %v483
        %541 = vmatprep.subr.mxu0 %v487
        %542 = vmatpush1.msra.mxu0 %v486
        %543 = vmatprep.subr.mxu0 %v490
        %544 = vmatpush1.msra.mxu0 %v489
        %545 = vmatprep.subr.mxu0 %v493
        %546 = vmatpush1.msra.mxu0 %v492
        %547 = vmatprep.subr.mxu0 %v496
        %548 = vmatpush1.msra.mxu0 %v495
        %549 = vmatprep.subr.mxu0 %v499
        %550 = vmatpush1.msra.mxu0 %v498
        %551 = vmatprep.subr.mxu0 %v502
        %552 = vmatpush1.msra.mxu0 %v501
        %553 = vmatprep.subr.mxu0 0.0
        %554 = vmatpush1.msra.mxu0 0.0
        %555 = vmatprep.subr.mxu0 0.0
        %556 = vmatpush1.msra.mxu0 0.0
        %557 = vmatprep.subr.mxu0 0.0
        %558 = vmatpush1.msra.mxu0 0.0
        %559 = vmatprep.subr.mxu0 0.0
        %560 = vmatpush1.msra.mxu0 0.0
        %561 = vmatprep.subr.mxu0 0.0
        %562 = vmatpush1.msra.mxu0 0.0
        %563 = vmatprep.subr.mxu0 0.0
        %564 = vmatpush1.msra.mxu0 0.0
        %565 = vmatprep.subr.mxu0 0.0
        %566 = vmatpush1.msra.mxu0 0.0
        %567 = vmatprep.subr.mxu0 0.0
        %568 = vmatpush1.msra.mxu0 0.0
        %569 = vmatprep.subr.mxu0 0.0
        %570 = vmatpush1.msra.mxu0 0.0
        %571 = vmatprep.subr.mxu0 0.0
        %572 = vmatpush1.msra.mxu0 0.0
        %573 = vmatprep.subr.mxu0 0.0
        %574 = vmatpush1.msra.mxu0 0.0
        %575 = vmatprep.subr.mxu0 0.0
        %576 = vmatpush1.msra.mxu0 0.0
        %577 = vmatprep.subr.mxu0 0.0
        %578 = vmatpush1.msra.mxu0 0.0
        %579 = vmatprep.subr.mxu0 0.0
        %580 = vmatpush1.msra.mxu0 0.0
        %581 = vmatprep.subr.mxu0 0.0
        %582 = vmatpush1.msra.mxu0 0.0
        %583 = vmatprep.subr.mxu0 0.0
        %584 = vmatpush1.msra.mxu0 0.0
        %585 = vmatprep.mubr.f32.mxu0 0.0
        %586 = vmatmul.mubr.f32.gmra.mrb[0].mxu0 %v451
        %v587 = vpop.f32.mrb[0].mxu0
        %v588 = vadd.f32 %v509, %v587
        %v589 = vpop.f32.mrb[0].mxu0
        %v590 = vadd.f32 %v513, %v589
        %591 = vmatprep.mubr.f32.mxu0 0.0
        %592 = vmatmul.mubr.f32.gmra.mrb[0].mxu0 %v452
        %v593 = vpop.f32.mrb[0].mxu0
        %v594 = vadd.f32 %v509, %v593
        %v595 = vpop.f32.mrb[0].mxu0
        %v596 = vadd.f32 %v513, %v595
        %597 = vmatprep.mubr.f32.mxu0 0.0
        %598 = vmatmul.mubr.f32.gmra.mrb[0].mxu0 %v453
        %v599 = vpop.f32.mrb[0].mxu0
        %v600 = vadd.f32 %v509, %v599
        %v601 = vpop.f32.mrb[0].mxu0
        %v602 = vadd.f32 %v513, %v601
        %603 = vmatprep.mubr.f32.mxu0 0.0
        %604 = vmatmul.mubr.f32.gmra.mrb[0].mxu0 %v454
        %v605 = vpop.f32.mrb[0].mxu0
        %v606 = vadd.f32 %v509, %v605
        %v607 = vpop.f32.mrb[0].mxu0
        %v608 = vadd.f32 %v513, %v607
        %609 = vdwg.mxu0
        %610 = vmatprep.subr.mxu0 0.0
        %611 = vmatpush1.msra.mxu0 %v458
        %612 = vmatprep.subr.mxu0 0.0
        %613 = vmatpush1.msra.mxu0 %v461
        %614 = vmatprep.subr.mxu0 0.0
        %615 = vmatpush1.msra.mxu0 %v464
        %616 = vmatprep.subr.mxu0 0.0
        %617 = vmatpush1.msra.mxu0 %v467
        %618 = vmatprep.subr.mxu0 0.0
        %619 = vmatpush1.msra.mxu0 %v470
        %620 = vmatprep.subr.mxu0 0.0
        %621 = vmatpush1.msra.mxu0 %v473
        %622 = vmatprep.subr.mxu0 0.0
        %623 = vmatpush1.msra.mxu0 %v476
        %624 = vmatprep.subr.mxu0 0.0
        %625 = vmatpush1.msra.mxu0 %v479
        %626 = vmatprep.subr.mxu0 0.0
        %627 = vmatpush1.msra.mxu0 %v482
        %628 = vmatprep.subr.mxu0 0.0
        %629 = vmatpush1.msra.mxu0 %v485
        %630 = vmatprep.subr.mxu0 0.0
        %631 = vmatpush1.msra.mxu0 %v488
        %632 = vmatprep.subr.mxu0 0.0
        %633 = vmatpush1.msra.mxu0 %v491
        %634 = vmatprep.subr.mxu0 0.0
        %635 = vmatpush1.msra.mxu0 %v494
        %636 = vmatprep.subr.mxu0 0.0
        %637 = vmatpush1.msra.mxu0 %v497
        %638 = vmatprep.subr.mxu0 0.0
        %639 = vmatpush1.msra.mxu0 %v500
        %640 = vmatprep.subr.mxu0 0.0
        %641 = vmatpush1.msra.mxu0 %v503
        %642 = vmatprep.subr.mxu0 0.0
        %643 = vmatpush1.msra.mxu0 0.0
        %644 = vmatprep.subr.mxu0 0.0
        %645 = vmatpush1.msra.mxu0 0.0
        %646 = vmatprep.subr.mxu0 0.0
        %647 = vmatpush1.msra.mxu0 0.0
        %648 = vmatprep.subr.mxu0 0.0
        %649 = vmatpush1.msra.mxu0 0.0
        %650 = vmatprep.subr.mxu0 0.0
        %651 = vmatpush1.msra.mxu0 0.0
        %652 = vmatprep.subr.mxu0 0.0
        %653 = vmatpush1.msra.mxu0 0.0
        %654 = vmatprep.subr.mxu0 0.0
        %655 = vmatpush1.msra.mxu0 0.0
        %656 = vmatprep.subr.mxu0 0.0
        %657 = vmatpush1.msra.mxu0 0.0
        %658 = vmatprep.subr.mxu0 0.0
        %659 = vmatpush1.msra.mxu0 0.0
        %660 = vmatprep.subr.mxu0 0.0
        %661 = vmatpush1.msra.mxu0 0.0
        %662 = vmatprep.subr.mxu0 0.0
        %663 = vmatpush1.msra.mxu0 0.0
        %664 = vmatprep.subr.mxu0 0.0
        %665 = vmatpush1.msra.mxu0 0.0
        %666 = vmatprep.subr.mxu0 0.0
        %667 = vmatpush1.msra.mxu0 0.0
        %668 = vmatprep.subr.mxu0 0.0
        %669 = vmatpush1.msra.mxu0 0.0
        %670 = vmatprep.subr.mxu0 0.0
        %671 = vmatpush1.msra.mxu0 0.0
        %672 = vmatprep.subr.mxu0 0.0
        %673 = vmatpush1.msra.mxu0 0.0
        %674 = vmatprep.mubr.f32.mxu0 0.0
        %675 = vmatmul.mubr.f32.gmra.mrb[0].mxu0 %v451
        %v676 = vpop.f32.mrb[0].mxu0
        %v677 = vadd.f32 %v517, %v676
        %v678 = vpop.f32.mrb[0].mxu0
        %679 = vmatprep.mubr.f32.mxu0 0.0
        %680 = vmatmul.mubr.f32.gmra.mrb[0].mxu0 %v452
        %v681 = vpop.f32.mrb[0].mxu0
        %v682 = vadd.f32 %v517, %v681
        %v683 = vpop.f32.mrb[0].mxu0
        %684 = vmatprep.mubr.f32.mxu0 0.0
        %685 = vmatmul.mubr.f32.gmra.mrb[0].mxu0 %v453
        %v686 = vpop.f32.mrb[0].mxu0
        %v687 = vadd.f32 %v517, %v686
        %v688 = vpop.f32.mrb[0].mxu0
        %689 = vmatprep.mubr.f32.mxu0 0.0
        %690 = vmatmul.mubr.f32.gmra.mrb[0].mxu0 %v454
        %v691 = vpop.f32.mrb[0].mxu0
        %v692 = vadd.f32 %v517, %v691
        %v693 = vpop.f32.mrb[0].mxu0
        %694 = vdwg.mxu0
        %695 = vmatprep.subr.mxu0 0.0
        %696 = vmatpush1.xpose.msra.mxu0 %v590
        %697 = vmatprep.subr.mxu0 0.0
        %698 = vmatpush1.xpose.msra.mxu0 %v596
        %699 = vmatprep.subr.mxu0 0.0
        %700 = vmatpush1.xpose.msra.mxu0 0.0
        %701 = vmatprep.subr.mxu0 0.0
        %702 = vmatpush1.xpose.msra.mxu0 0.0
        %703 = vmatprep.subr.mxu0 0.0
        %704 = vmatpush1.xpose.msra.mxu0 0.0
        %705 = vmatprep.subr.mxu0 0.0
        %706 = vmatpush1.xpose.msra.mxu0 0.0
        %707 = vmatprep.subr.mxu0 0.0
        %708 = vmatpush1.xpose.msra.mxu0 0.0
        %709 = vmatprep.subr.mxu0 0.0
        %710 = vmatpush1.xpose.msra.mxu0 0.0
        %711 = vmatprep.subr.mxu0 0.0
        %712 = vmatpush1.xpose.msra.mxu0 0.0
        %713 = vmatprep.subr.mxu0 0.0
        %714 = vmatpush1.xpose.msra.mxu0 0.0
        %715 = vmatprep.subr.mxu0 0.0
        %716 = vmatpush1.xpose.msra.mxu0 0.0
        %717 = vmatprep.subr.mxu0 0.0
        %718 = vmatpush1.xpose.msra.mxu0 0.0
        %719 = vmatprep.subr.mxu0 0.0
        %720 = vmatpush1.xpose.msra.mxu0 0.0
        %721 = vmatprep.subr.mxu0 0.0
        %722 = vmatpush1.xpose.msra.mxu0 0.0
        %723 = vmatprep.subr.mxu0 0.0
        %724 = vmatpush1.xpose.msra.mxu0 0.0
        %725 = vmatprep.subr.mxu0 0.0
        %726 = vmatpush1.xpose.msra.mxu0 0.0
        %727 = vmatprep.subr.mxu0 0.0
        %728 = vmatpush1.xpose.msra.mxu0 0.0
        %729 = vmatprep.subr.mxu0 0.0
        %730 = vmatpush1.xpose.msra.mxu0 0.0
        %731 = vmatprep.subr.mxu0 0.0
        %732 = vmatpush1.xpose.msra.mxu0 0.0
        %733 = vmatprep.subr.mxu0 0.0
        %734 = vmatpush1.xpose.msra.mxu0 0.0
        %735 = vmatprep.subr.mxu0 0.0
        %736 = vmatpush1.xpose.msra.mxu0 0.0
        %737 = vmatprep.subr.mxu0 0.0
        %738 = vmatpush1.xpose.msra.mxu0 0.0
        %739 = vmatprep.subr.mxu0 0.0
        %740 = vmatpush1.xpose.msra.mxu0 0.0
        %741 = vmatprep.subr.mxu0 0.0
        %742 = vmatpush1.xpose.msra.mxu0 0.0
        %743 = vmatprep.subr.mxu0 0.0
        %744 = vmatpush1.xpose.msra.mxu0 0.0
        %745 = vmatprep.subr.mxu0 0.0
        %746 = vmatpush1.xpose.msra.mxu0 0.0
        %747 = vmatprep.subr.mxu0 0.0
        %748 = vmatpush1.xpose.msra.mxu0 0.0
        %749 = vmatprep.subr.mxu0 0.0
        %750 = vmatpush1.xpose.msra.mxu0 0.0
        %751 = vmatprep.subr.mxu0 0.0
        %752 = vmatpush1.xpose.msra.mxu0 0.0
        %753 = vmatprep.subr.mxu0 0.0
        %754 = vmatpush1.xpose.msra.mxu0 0.0
        %755 = vmatprep.subr.mxu0 0.0
        %756 = vmatpush1.xpose.msra.mxu0 0.0
        %757 = vmatprep.subr.mxu0 0.0
        %758 = vmatpush1.xpose.msra.mxu0 0.0
        %759 = vmatprep.mubr.f32.mxu0 0.0
        %760 = vmatmul.mubr.f32.gmra.mrb[0].mxu0 %v588
        %v761 = vpop.f32.mrb[0].mxu0
        %v762 = vadd.f32 0.0, %v761
        %v763 = vpop.f32.mrb[0].mxu0
        %764 = vmatprep.mubr.f32.mxu0 0.0
        %765 = vmatmul.mubr.f32.gmra.mrb[0].mxu0 %v594
        %v766 = vpop.f32.mrb[0].mxu0
        %v767 = vadd.f32 0.0, %v766
        %v768 = vpop.f32.mrb[0].mxu0
        %769 = vdwg.mxu0
        %770 = vmatprep.subr.mxu0 0.0
        %771 = vmatpush1.xpose.msra.mxu0 %v602
        %772 = vmatprep.subr.mxu0 0.0
        %773 = vmatpush1.xpose.msra.mxu0 %v608
        %774 = vmatprep.subr.mxu0 0.0
        %775 = vmatpush1.xpose.msra.mxu0 0.0
        %776 = vmatprep.subr.mxu0 0.0
        %777 = vmatpush1.xpose.msra.mxu0 0.0
        %778 = vmatprep.subr.mxu0 0.0
        %779 = vmatpush1.xpose.msra.mxu0 0.0
        %780 = vmatprep.subr.mxu0 0.0
        %781 = vmatpush1.xpose.msra.mxu0 0.0
        %782 = vmatprep.subr.mxu0 0.0
        %783 = vmatpush1.xpose.msra.mxu0 0.0
        %784 = vmatprep.subr.mxu0 0.0
        %785 = vmatpush1.xpose.msra.mxu0 0.0
        %786 = vmatprep.subr.mxu0 0.0
        %787 = vmatpush1.xpose.msra.mxu0 0.0
        %788 = vmatprep.subr.mxu0 0.0
        %789 = vmatpush1.xpose.msra.mxu0 0.0
        %790 = vmatprep.subr.mxu0 0.0
        %791 = vmatpush1.xpose.msra.mxu0 0.0
        %792 = vmatprep.subr.mxu0 0.0
        %793 = vmatpush1.xpose.msra.mxu0 0.0
        %794 = vmatprep.subr.mxu0 0.0
        %795 = vmatpush1.xpose.msra.mxu0 0.0
        %796 = vmatprep.subr.mxu0 0.0
        %797 = vmatpush1.xpose.msra.mxu0 0.0
        %798 = vmatprep.subr.mxu0 0.0
        %799 = vmatpush1.xpose.msra.mxu0 0.0
        %800 = vmatprep.subr.mxu0 0.0
        %801 = vmatpush1.xpose.msra.mxu0 0.0
        %802 = vmatprep.subr.mxu0 0.0
        %803 = vmatpush1.xpose.msra.mxu0 0.0
        %804 = vmatprep.subr.mxu0 0.0
        %805 = vmatpush1.xpose.msra.mxu0 0.0
        %806 = vmatprep.subr.mxu0 0.0
        %807 = vmatpush1.xpose.msra.mxu0 0.0
        %808 = vmatprep.subr.mxu0 0.0
        %809 = vmatpush1.xpose.msra.mxu0 0.0
        %810 = vmatprep.subr.mxu0 0.0
        %811 = vmatpush1.xpose.msra.mxu0 0.0
        %812 = vmatprep.subr.mxu0 0.0
        %813 = vmatpush1.xpose.msra.mxu0 0.0
        %814 = vmatprep.subr.mxu0 0.0
        %815 = vmatpush1.xpose.msra.mxu0 0.0
        %816 = vmatprep.subr.mxu0 0.0
        %817 = vmatpush1.xpose.msra.mxu0 0.0
        %818 = vmatprep.subr.mxu0 0.0
        %819 = vmatpush1.xpose.msra.mxu0 0.0
        %820 = vmatprep.subr.mxu0 0.0
        %821 = vmatpush1.xpose.msra.mxu0 0.0
        %822 = vmatprep.subr.mxu0 0.0
        %823 = vmatpush1.xpose.msra.mxu0 0.0
        %824 = vmatprep.subr.mxu0 0.0
        %825 = vmatpush1.xpose.msra.mxu0 0.0
        %826 = vmatprep.subr.mxu0 0.0
        %827 = vmatpush1.xpose.msra.mxu0 0.0
        %828 = vmatprep.subr.mxu0 0.0
        %829 = vmatpush1.xpose.msra.mxu0 0.0
        %830 = vmatprep.subr.mxu0 0.0
        %831 = vmatpush1.xpose.msra.mxu0 0.0
        %832 = vmatprep.subr.mxu0 0.0
        %833 = vmatpush1.xpose.msra.mxu0 0.0
        %834 = vmatprep.mubr.f32.mxu0 0.0
        %835 = vmatmul.mubr.f32.gmra.mrb[0].mxu0 %v600
        %v836 = vpop.f32.mrb[0].mxu0
        %v837 = vadd.f32 0.0, %v836
        %v838 = vpop.f32.mrb[0].mxu0
        %839 = vmatprep.mubr.f32.mxu0 0.0
        %840 = vmatmul.mubr.f32.gmra.mrb[0].mxu0 %v606
        %v841 = vpop.f32.mrb[0].mxu0
        %v842 = vadd.f32 0.0, %v841
        %v843 = vpop.f32.mrb[0].mxu0
        %844 = vdwg.mxu0
        %v845 = vmul.f32 %v762, 0.088388346
        %v846 = vmul.f32 %v767, 0.088388346
        %v847 = vmul.f32 %v837, 0.088388346
        %v848 = vmul.f32 %v842, 0.088388346
        %vm849 = vcmask 130048
        %v850 = vsel %vm849, %v845, -inf
        %851 = vmax.xlane.f32.xlu0 %v850
        %v852 = vpop.xlane.xlu0 %851
        %v853 = vsel %vm849, %v846, -inf
        %854 = vmax.xlane.f32.xlu0 %v853
        %v855 = vpop.xlane.xlu0 %854
        %v856 = vsel %vm849, %v847, -inf
        %857 = vmax.xlane.f32.xlu0 %v856
        %v858 = vpop.xlane.xlu0 %857
        %v859 = vsel %vm849, %v848, -inf
        %860 = vmax.xlane.f32.xlu0 %v859
        %v861 = vpop.xlane.xlu0 %860
        %v862 = vsub.f32 %v845, %v852
        %v863 = vsub.f32 %v846, %v855
        %v864 = vsub.f32 %v847, %v858
        %v865 = vsub.f32 %v848, %v861
        %v866 = vmul.f32 %v862, 1.442695
        %v867 = vpow.pop %v866
        %v868 = vmul.f32 %v863, 1.442695
        %v869 = vpow.pop %v868
        %v870 = vmul.f32 %v864, 1.442695
        %v871 = vpow.pop %v870
        %v872 = vmul.f32 %v865, 1.442695
        %v873 = vpow.pop %v872
        %v874 = vsel %vm849, %v867, 0.0
        %875 = vadd.xlane.f32.xlu0 %v874
        %v876 = vpop.xlane.xlu0 %875
        %v877 = vsel %vm849, %v869, 0.0
        %878 = vadd.xlane.f32.xlu0 %v877
        %v879 = vpop.xlane.xlu0 %878
        %v880 = vsel %vm849, %v871, 0.0
        %881 = vadd.xlane.f32.xlu0 %v880
        %v882 = vpop.xlane.xlu0 %881
        %v883 = vsel %vm849, %v873, 0.0
        %884 = vadd.xlane.f32.xlu0 %v883
        %v885 = vpop.xlane.xlu0 %884
        %v886 = vrcp.pop %v876
        %v887 = vrcp.pop %v879
        %v888 = vrcp.pop %v882
        %v889 = vrcp.pop %v885
        %v890 = vmul.f32 %v867, %v886
        %v891 = vmul.f32 %v869, %v887
        %v892 = vmul.f32 %v871, %v888
        %v893 = vmul.f32 %v873, %v889
        %v895 = vsel %vm849, %v890, 0
        %v898 = vsel %vm849, %v891, 0
        %900 = vmatprep.subr.mxu0 0.0
        %901 = vmatpush1.msra.mxu0 %v677
        %902 = vmatprep.subr.mxu0 0.0
        %903 = vmatpush1.msra.mxu0 %v682
        %904 = vmatprep.subr.mxu0 0.0
        %905 = vmatpush1.msra.mxu0 0.0
        %906 = vmatprep.subr.mxu0 0.0
        %907 = vmatpush1.msra.mxu0 0.0
        %908 = vmatprep.subr.mxu0 0.0
        %909 = vmatpush1.msra.mxu0 0.0
        %910 = vmatprep.subr.mxu0 0.0
        %911 = vmatpush1.msra.mxu0 0.0
        %912 = vmatprep.subr.mxu0 0.0
        %913 = vmatpush1.msra.mxu0 0.0
        %914 = vmatprep.subr.mxu0 0.0
        %915 = vmatpush1.msra.mxu0 0.0
        %916 = vmatprep.subr.mxu0 0.0
        %917 = vmatpush1.msra.mxu0 0.0
        %918 = vmatprep.subr.mxu0 0.0
        %919 = vmatpush1.msra.mxu0 0.0
        %920 = vmatprep.subr.mxu0 0.0
        %921 = vmatpush1.msra.mxu0 0.0
        %922 = vmatprep.subr.mxu0 0.0
        %923 = vmatpush1.msra.mxu0 0.0
        %924 = vmatprep.subr.mxu0 0.0
        %925 = vmatpush1.msra.mxu0 0.0
        %926 = vmatprep.subr.mxu0 0.0
        %927 = vmatpush1.msra.mxu0 0.0
        %928 = vmatprep.subr.mxu0 0.0
        %929 = vmatpush1.msra.mxu0 0.0
        %930 = vmatprep.subr.mxu0 0.0
        %931 = vmatpush1.msra.mxu0 0.0
        %932 = vmatprep.subr.mxu0 0.0
        %933 = vmatpush1.msra.mxu0 0.0
        %934 = vmatprep.subr.mxu0 0.0
        %935 = vmatpush1.msra.mxu0 0.0
        %936 = vmatprep.subr.mxu0 0.0
        %937 = vmatpush1.msra.mxu0 0.0
        %938 = vmatprep.subr.mxu0 0.0
        %939 = vmatpush1.msra.mxu0 0.0
        %940 = vmatprep.subr.mxu0 0.0
        %941 = vmatpush1.msra.mxu0 0.0
        %942 = vmatprep.subr.mxu0 0.0
        %943 = vmatpush1.msra.mxu0 0.0
        %944 = vmatprep.subr.mxu0 0.0
        %945 = vmatpush1.msra.mxu0 0.0
        %946 = vmatprep.subr.mxu0 0.0
        %947 = vmatpush1.msra.mxu0 0.0
        %948 = vmatprep.subr.mxu0 0.0
        %949 = vmatpush1.msra.mxu0 0.0
        %950 = vmatprep.subr.mxu0 0.0
        %951 = vmatpush1.msra.mxu0 0.0
        %952 = vmatprep.subr.mxu0 0.0
        %953 = vmatpush1.msra.mxu0 0.0
        %954 = vmatprep.subr.mxu0 0.0
        %955 = vmatpush1.msra.mxu0 0.0
        %956 = vmatprep.subr.mxu0 0.0
        %957 = vmatpush1.msra.mxu0 0.0
        %958 = vmatprep.subr.mxu0 0.0
        %959 = vmatpush1.msra.mxu0 0.0
        %960 = vmatprep.subr.mxu0 0.0
        %961 = vmatpush1.msra.mxu0 0.0
        %962 = vmatprep.subr.mxu0 0.0
        %963 = vmatpush1.msra.mxu0 0.0
        %964 = vmatprep.mubr.f32.mxu0 0.0
        %965 = vmatmul.mubr.f32.gmra.mrb[0].mxu0 %v895
        %v966 = vpop.f32.mrb[0].mxu0
        %v967 = vadd.f32 0.0, %v966
        %v968 = vpop.f32.mrb[0].mxu0
        %969 = vmatprep.mubr.f32.mxu0 0.0
        %970 = vmatmul.mubr.f32.gmra.mrb[0].mxu0 %v898
        %v971 = vpop.f32.mrb[0].mxu0
        %v972 = vadd.f32 0.0, %v971
        %v973 = vpop.f32.mrb[0].mxu0
        %974 = vdwg.mxu0
        %v976 = vsel %vm849, %v892, 0
        %v979 = vsel %vm849, %v893, 0
        %981 = vmatprep.subr.mxu0 0.0
        %982 = vmatpush1.msra.mxu0 %v687
        %983 = vmatprep.subr.mxu0 0.0
        %984 = vmatpush1.msra.mxu0 %v692
        %985 = vmatprep.subr.mxu0 0.0
        %986 = vmatpush1.msra.mxu0 0.0
        %987 = vmatprep.subr.mxu0 0.0
        %988 = vmatpush1.msra.mxu0 0.0
        %989 = vmatprep.subr.mxu0 0.0
        %990 = vmatpush1.msra.mxu0 0.0
        %991 = vmatprep.subr.mxu0 0.0
        %992 = vmatpush1.msra.mxu0 0.0
        %993 = vmatprep.subr.mxu0 0.0
        %994 = vmatpush1.msra.mxu0 0.0
        %995 = vmatprep.subr.mxu0 0.0
        %996 = vmatpush1.msra.mxu0 0.0
        %997 = vmatprep.subr.mxu0 0.0
        %998 = vmatpush1.msra.mxu0 0.0
        %999 = vmatprep.subr.mxu0 0.0
        %1000 = vmatpush1.msra.mxu0 0.0
        %1001 = vmatprep.subr.mxu0 0.0
        %1002 = vmatpush1.msra.mxu0 0.0
        %1003 = vmatprep.subr.mxu0 0.0
        %1004 = vmatpush1.msra.mxu0 0.0
        %1005 = vmatprep.subr.mxu0 0.0
        %1006 = vmatpush1.msra.mxu0 0.0
        %1007 = vmatprep.subr.mxu0 0.0
        %1008 = vmatpush1.msra.mxu0 0.0
        %1009 = vmatprep.subr.mxu0 0.0
        %1010 = vmatpush1.msra.mxu0 0.0
        %1011 = vmatprep.subr.mxu0 0.0
        %1012 = vmatpush1.msra.mxu0 0.0
        %1013 = vmatprep.subr.mxu0 0.0
        %1014 = vmatpush1.msra.mxu0 0.0
        %1015 = vmatprep.subr.mxu0 0.0
        %1016 = vmatpush1.msra.mxu0 0.0
        %1017 = vmatprep.subr.mxu0 0.0
        %1018 = vmatpush1.msra.mxu0 0.0
        %1019 = vmatprep.subr.mxu0 0.0
        %1020 = vmatpush1.msra.mxu0 0.0
        %1021 = vmatprep.subr.mxu0 0.0
        %1022 = vmatpush1.msra.mxu0 0.0
        %1023 = vmatprep.subr.mxu0 0.0
        %1024 = vmatpush1.msra.mxu0 0.0
        %1025 = vmatprep.subr.mxu0 0.0
        %1026 = vmatpush1.msra.mxu0 0.0
        %1027 = vmatprep.subr.mxu0 0.0
        %1028 = vmatpush1.msra.mxu0 0.0
        %1029 = vmatprep.subr.mxu0 0.0
        %1030 = vmatpush1.msra.mxu0 0.0
        %1031 = vmatprep.subr.mxu0 0.0
        %1032 = vmatpush1.msra.mxu0 0.0
        %1033 = vmatprep.subr.mxu0 0.0
        %1034 = vmatpush1.msra.mxu0 0.0
        %1035 = vmatprep.subr.mxu0 0.0
        %1036 = vmatpush1.msra.mxu0 0.0
        %1037 = vmatprep.subr.mxu0 0.0
        %1038 = vmatpush1.msra.mxu0 0.0
        %1039 = vmatprep.subr.mxu0 0.0
        %1040 = vmatpush1.msra.mxu0 0.0
        %1041 = vmatprep.subr.mxu0 0.0
        %1042 = vmatpush1.msra.mxu0 0.0
        %1043 = vmatprep.subr.mxu0 0.0
        %1044 = vmatpush1.msra.mxu0 0.0
        %1045 = vmatprep.mubr.f32.mxu0 0.0
        %1046 = vmatmul.mubr.f32.gmra.mrb[0].mxu0 %v976
        %v1047 = vpop.f32.mrb[0].mxu0
        %v1048 = vadd.f32 0.0, %v1047
        %v1049 = vpop.f32.mrb[0].mxu0
        %1050 = vmatprep.mubr.f32.mxu0 0.0
        %1051 = vmatmul.mubr.f32.gmra.mrb[0].mxu0 %v979
        %v1052 = vpop.f32.mrb[0].mxu0
        %v1053 = vadd.f32 0.0, %v1052
        %v1054 = vpop.f32.mrb[0].mxu0
        %1055 = vdwg.mxu0
        %v1056 = vld [vmem:[#allocation4] sm:$0xff]
        %v1057 = vld [vmem:[#allocation4 + $0x8] sm:$0xff]
        %v1058 = vld [vmem:[#allocation4 + $0x10] sm:$0xff]
        %v1059 = vld [vmem:[#allocation4 + $0x18] sm:$0xff]
        %v1060 = vld [vmem:[#allocation4 + $0x20] sm:$0xff]
        %v1061 = vld [vmem:[#allocation4 + $0x28] sm:$0xff]
        %v1062 = vld [vmem:[#allocation4 + $0x30] sm:$0xff]
        %v1063 = vld [vmem:[#allocation4 + $0x38] sm:$0xff]
        %v1064 = vld [vmem:[#allocation4 + $0x40] sm:$0xff]
        %v1065 = vld [vmem:[#allocation4 + $0x48] sm:$0xff]
        %v1066 = vld [vmem:[#allocation4 + $0x50] sm:$0xff]
        %v1067 = vld [vmem:[#allocation4 + $0x58] sm:$0xff]
        %v1068 = vld [vmem:[#allocation4 + $0x60] sm:$0xff]
        %v1069 = vld [vmem:[#allocation4 + $0x68] sm:$0xff]
        %v1070 = vld [vmem:[#allocation4 + $0x70] sm:$0xff]
        %v1071 = vld [vmem:[#allocation4 + $0x78] sm:$0xff]
        %v1072 = vlaneseq
        %v1073 = vshrl.u32 %v1072, 7
        %v1074 = vsub.s32 0, %v1073
        %v1075 = vrot.slane %v455, %v1074
        %1076 = vmatprep.subr.mxu0 0.0
        %1077 = vmatpush1.msra.mxu0 %v1056
        %1078 = vmatprep.subr.mxu0 0.0
        %1079 = vmatpush1.msra.mxu0 %v1057
        %1080 = vmatprep.subr.mxu0 0.0
        %1081 = vmatpush1.msra.mxu0 %v1058
        %1082 = vmatprep.subr.mxu0 0.0
        %1083 = vmatpush1.msra.mxu0 %v1059
        %1084 = vmatprep.subr.mxu0 0.0
        %1085 = vmatpush1.msra.mxu0 %v1060
        %1086 = vmatprep.subr.mxu0 0.0
        %1087 = vmatpush1.msra.mxu0 %v1061
        %1088 = vmatprep.subr.mxu0 0.0
        %1089 = vmatpush1.msra.mxu0 %v1062
        %1090 = vmatprep.subr.mxu0 0.0
        %1091 = vmatpush1.msra.mxu0 %v1063
        %1092 = vmatprep.subr.mxu0 0.0
        %1093 = vmatpush1.msra.mxu0 %v1064
        %1094 = vmatprep.subr.mxu0 0.0
        %1095 = vmatpush1.msra.mxu0 %v1065
        %1096 = vmatprep.subr.mxu0 0.0
        %1097 = vmatpush1.msra.mxu0 %v1066
        %1098 = vmatprep.subr.mxu0 0.0
        %1099 = vmatpush1.msra.mxu0 %v1067
        %1100 = vmatprep.subr.mxu0 0.0
        %1101 = vmatpush1.msra.mxu0 %v1068
        %1102 = vmatprep.subr.mxu0 0.0
        %1103 = vmatpush1.msra.mxu0 %v1069
        %1104 = vmatprep.subr.mxu0 0.0
        %1105 = vmatpush1.msra.mxu0 %v1070
        %1106 = vmatprep.subr.mxu0 0.0
        %1107 = vmatpush1.msra.mxu0 %v1071
        %1108 = vmatprep.subr.mxu0 0.0
        %1109 = vmatpush1.msra.mxu0 0.0
        %1110 = vmatprep.subr.mxu0 0.0
        %1111 = vmatpush1.msra.mxu0 0.0
        %1112 = vmatprep.subr.mxu0 0.0
        %1113 = vmatpush1.msra.mxu0 0.0
        %1114 = vmatprep.subr.mxu0 0.0
        %1115 = vmatpush1.msra.mxu0 0.0
        %1116 = vmatprep.subr.mxu0 0.0
        %1117 = vmatpush1.msra.mxu0 0.0
        %1118 = vmatprep.subr.mxu0 0.0
        %1119 = vmatpush1.msra.mxu0 0.0
        %1120 = vmatprep.subr.mxu0 0.0
        %1121 = vmatpush1.msra.mxu0 0.0
        %1122 = vmatprep.subr.mxu0 0.0
        %1123 = vmatpush1.msra.mxu0 0.0
        %1124 = vmatprep.subr.mxu0 0.0
        %1125 = vmatpush1.msra.mxu0 0.0
        %1126 = vmatprep.subr.mxu0 0.0
        %1127 = vmatpush1.msra.mxu0 0.0
        %1128 = vmatprep.subr.mxu0 0.0
        %1129 = vmatpush1.msra.mxu0 0.0
        %1130 = vmatprep.subr.mxu0 0.0
        %1131 = vmatpush1.msra.mxu0 0.0
        %1132 = vmatprep.subr.mxu0 0.0
        %1133 = vmatpush1.msra.mxu0 0.0
        %1134 = vmatprep.subr.mxu0 0.0
        %1135 = vmatpush1.msra.mxu0 0.0
        %1136 = vmatprep.subr.mxu0 0.0
        %1137 = vmatpush1.msra.mxu0 0.0
        %1138 = vmatprep.subr.mxu0 0.0
        %1139 = vmatpush1.msra.mxu0 0.0
        %1140 = vmatprep.mubr.f32.mxu0 0.0
        %1141 = vmatmul.mubr.f32.gmra.mrb[0].mxu0 %v967
        %v1142 = vpop.f32.mrb[0].mxu0
        %v1143 = vadd.f32 %v1075, %v1142
        %v1144 = vpop.f32.mrb[0].mxu0
        %1145 = vmatprep.mubr.f32.mxu0 0.0
        %1146 = vmatmul.mubr.f32.gmra.mrb[0].mxu0 %v972
        %v1147 = vpop.f32.mrb[0].mxu0
        %v1148 = vadd.f32 %v1075, %v1147
        %v1149 = vpop.f32.mrb[0].mxu0
        %1150 = vmatprep.mubr.f32.mxu0 0.0
        %1151 = vmatmul.mubr.f32.gmra.mrb[0].mxu0 %v1048
        %v1152 = vpop.f32.mrb[0].mxu0
        %v1153 = vadd.f32 %v1075, %v1152
        %v1154 = vpop.f32.mrb[0].mxu0
        %1155 = vmatprep.mubr.f32.mxu0 0.0
        %1156 = vmatmul.mubr.f32.gmra.mrb[0].mxu0 %v1053
        %v1157 = vpop.f32.mrb[0].mxu0
        %v1158 = vadd.f32 %v1075, %v1157
        %v1159 = vpop.f32.mrb[0].mxu0
        %1160 = vdwg.mxu0
        %v1161 = vadd.f32 %v451, %v1143
        %v1162 = vadd.f32 %v452, %v1148
        %v1163 = vadd.f32 %v453, %v1153
        %v1164 = vadd.f32 %v454, %v1158
        %1165 = vadd.xlane.f32.xlu0 %v1161
        %v1166 = vpop.xlane.xlu0 %1165
        %1167 = vadd.xlane.f32.xlu0 %v1162
        %v1168 = vpop.xlane.xlu0 %1167
        %1169 = vadd.xlane.f32.xlu0 %v1163
        %v1170 = vpop.xlane.xlu0 %1169
        %1171 = vadd.xlane.f32.xlu0 %v1164
        %v1172 = vpop.xlane.xlu0 %1171
        %v1173 = vmul.f32 %v1166, %v402
        %v1174 = vmul.f32 %v1168, %v402
        %v1175 = vmul.f32 %v1170, %v402
        %v1176 = vmul.f32 %v1172, %v402
        %v1177 = vsub.f32 %v1161, %v1173
        %v1178 = vsub.f32 %v1162, %v1174
        %v1179 = vsub.f32 %v1163, %v1175
        %v1180 = vsub.f32 %v1164, %v1176
        %v1181 = vmul.f32 %v1177, %v1177
        %v1182 = vmul.f32 %v1178, %v1178
        %v1183 = vmul.f32 %v1179, %v1179
        %v1184 = vmul.f32 %v1180, %v1180
        %1185 = vadd.xlane.f32.xlu0 %v1181
        %v1186 = vpop.xlane.xlu0 %1185
        %1187 = vadd.xlane.f32.xlu0 %v1182
        %v1188 = vpop.xlane.xlu0 %1187
        %1189 = vadd.xlane.f32.xlu0 %v1183
        %v1190 = vpop.xlane.xlu0 %1189
        %1191 = vadd.xlane.f32.xlu0 %v1184
        %v1192 = vpop.xlane.xlu0 %1191
        %v1193 = vmul.f32 %v1186, %v402
        %v1194 = vmul.f32 %v1188, %v402
        %v1195 = vmul.f32 %v1190, %v402
        %v1196 = vmul.f32 %v1192, %v402
        %v1197 = vadd.f32 %v1193, 1e-12
        %v1198 = vadd.f32 %v1194, 1e-12
        %v1199 = vadd.f32 %v1195, 1e-12
        %v1200 = vadd.f32 %v1196, 1e-12
        %v1201 = vrsqrt.pop %v1197
        %v1202 = vrsqrt.pop %v1198
        %v1203 = vrsqrt.pop %v1199
        %v1204 = vrsqrt.pop %v1200
        %v1205 = vmul.f32 %v1177, %v1201
        %v1206 = vmul.f32 %v1178, %v1202
        %v1207 = vmul.f32 %v1179, %v1203
        %v1208 = vmul.f32 %v1180, %v1204
        %v1209 = vlaneseq
        %v1210 = vshrl.u32 %v1209, 7
        %v1211 = vsub.s32 1, %v1210
        %v1212 = vrot.slane %v455, %v1211
        %v1213 = vmul.f32 %v1205, %v1212
        %v1214 = vmul.f32 %v1206, %v1212
        %v1215 = vmul.f32 %v1207, %v1212
        %v1216 = vmul.f32 %v1208, %v1212
        %v1217 = vlaneseq
        %v1218 = vshrl.u32 %v1217, 7
        %v1219 = vsub.s32 2, %v1218
        %v1220 = vrot.slane %v455, %v1219
        %v1221 = vadd.f32 %v1213, %v1220
        %v1222 = vadd.f32 %v1214, %v1220
        %v1223 = vadd.f32 %v1215, %v1220
        %v1224 = vadd.f32 %v1216, %v1220
        %v1225 = vld [vmem:[#allocation6] sm:$0xff]
        %v1226 = vld [vmem:[#allocation6 + $0x8] sm:$0xff]
        %v1227 = vld [vmem:[#allocation6 + $0x10] sm:$0xff]
        %v1228 = vld [vmem:[#allocation6 + $0x18] sm:$0xff]
        %v1229 = vld [vmem:[#allocation6 + $0x20] sm:$0xff]
        %v1230 = vld [vmem:[#allocation6 + $0x28] sm:$0xff]
        %v1231 = vld [vmem:[#allocation6 + $0x30] sm:$0xff]
        %v1232 = vld [vmem:[#allocation6 + $0x38] sm:$0xff]
        %v1233 = vld [vmem:[#allocation6 + $0x40] sm:$0xff]
        %v1234 = vld [vmem:[#allocation6 + $0x48] sm:$0xff]
        %v1235 = vld [vmem:[#allocation6 + $0x50] sm:$0xff]
        %v1236 = vld [vmem:[#allocation6 + $0x58] sm:$0xff]
        %v1237 = vld [vmem:[#allocation6 + $0x60] sm:$0xff]
        %v1238 = vld [vmem:[#allocation6 + $0x68] sm:$0xff]
        %v1239 = vld [vmem:[#allocation6 + $0x70] sm:$0xff]
        %v1240 = vld [vmem:[#allocation6 + $0x78] sm:$0xff]
        %v1241 = vld [vmem:[#allocation6 + $0x80] sm:$0xff]
        %v1242 = vld [vmem:[#allocation6 + $0x88] sm:$0xff]
        %v1243 = vld [vmem:[#allocation6 + $0x90] sm:$0xff]
        %v1244 = vld [vmem:[#allocation6 + $0x98] sm:$0xff]
        %v1245 = vld [vmem:[#allocation6 + $0xa0] sm:$0xff]
        %v1246 = vld [vmem:[#allocation6 + $0xa8] sm:$0xff]
        %v1247 = vld [vmem:[#allocation6 + $0xb0] sm:$0xff]
        %v1248 = vld [vmem:[#allocation6 + $0xb8] sm:$0xff]
        %v1249 = vld [vmem:[#allocation6 + $0xc0] sm:$0xff]
        %v1250 = vld [vmem:[#allocation6 + $0xc8] sm:$0xff]
        %v1251 = vld [vmem:[#allocation6 + $0xd0] sm:$0xff]
        %v1252 = vld [vmem:[#allocation6 + $0xd8] sm:$0xff]
        %v1253 = vld [vmem:[#allocation6 + $0xe0] sm:$0xff]
        %v1254 = vld [vmem:[#allocation6 + $0xe8] sm:$0xff]
        %v1255 = vld [vmem:[#allocation6 + $0xf0] sm:$0xff]
        %v1256 = vld [vmem:[#allocation6 + $0xf8] sm:$0xff]
        %v1257 = vld [vmem:[#allocation6 + $0x100] sm:$0xff]
        %v1258 = vld [vmem:[#allocation6 + $0x108] sm:$0xff]
        %v1259 = vld [vmem:[#allocation6 + $0x110] sm:$0xff]
        %v1260 = vld [vmem:[#allocation6 + $0x118] sm:$0xff]
        %v1261 = vld [vmem:[#allocation6 + $0x120] sm:$0xff]
        %v1262 = vld [vmem:[#allocation6 + $0x128] sm:$0xff]
        %v1263 = vld [vmem:[#allocation6 + $0x130] sm:$0xff]
        %v1264 = vld [vmem:[#allocation6 + $0x138] sm:$0xff]
        %v1265 = vld [vmem:[#allocation6 + $0x140] sm:$0xff]
        %v1266 = vld [vmem:[#allocation6 + $0x148] sm:$0xff]
        %v1267 = vld [vmem:[#allocation6 + $0x150] sm:$0xff]
        %v1268 = vld [vmem:[#allocation6 + $0x158] sm:$0xff]
        %v1269 = vld [vmem:[#allocation6 + $0x160] sm:$0xff]
        %v1270 = vld [vmem:[#allocation6 + $0x168] sm:$0xff]
        %v1271 = vld [vmem:[#allocation6 + $0x170] sm:$0xff]
        %v1272 = vld [vmem:[#allocation6 + $0x178] sm:$0xff]
        %v1273 = vld [vmem:[#allocation6 + $0x180] sm:$0xff]
        %v1274 = vld [vmem:[#allocation6 + $0x188] sm:$0xff]
        %v1275 = vld [vmem:[#allocation6 + $0x190] sm:$0xff]
        %v1276 = vld [vmem:[#allocation6 + $0x198] sm:$0xff]
        %v1277 = vld [vmem:[#allocation6 + $0x1a0] sm:$0xff]
        %v1278 = vld [vmem:[#allocation6 + $0x1a8] sm:$0xff]
        %v1279 = vld [vmem:[#allocation6 + $0x1b0] sm:$0xff]
        %v1280 = vld [vmem:[#allocation6 + $0x1b8] sm:$0xff]
        %v1281 = vld [vmem:[#allocation6 + $0x1c0] sm:$0xff]
        %v1282 = vld [vmem:[#allocation6 + $0x1c8] sm:$0xff]
        %v1283 = vld [vmem:[#allocation6 + $0x1d0] sm:$0xff]
        %v1284 = vld [vmem:[#allocation6 + $0x1d8] sm:$0xff]
        %v1285 = vld [vmem:[#allocation6 + $0x1e0] sm:$0xff]
        %v1286 = vld [vmem:[#allocation6 + $0x1e8] sm:$0xff]
        %v1287 = vld [vmem:[#allocation6 + $0x1f0] sm:$0xff]
        %v1288 = vld [vmem:[#allocation6 + $0x1f8] sm:$0xff]
        %v1289 = vld [vmem:[%s6] sm:$0xf]
        %v1291 = vlaneseq
        %v1292 = vshrl.u32 %v1291, 7
        %v1293 = vsub.s32 0, %v1292
        %v1294 = vrot.slane %v1289, %v1293
        %v1295 = vlaneseq
        %v1296 = vshrl.u32 %v1295, 7
        %v1297 = vsub.s32 1, %v1296
        %v1298 = vrot.slane %v1289, %v1297
        %v1299 = vlaneseq
        %v1300 = vshrl.u32 %v1299, 7
        %v1301 = vsub.s32 2, %v1300
        %v1302 = vrot.slane %v1289, %v1301
        %v1303 = vlaneseq
        %v1304 = vshrl.u32 %v1303, 7
        %v1305 = vsub.s32 3, %v1304
        %v1306 = vrot.slane %v1289, %v1305
        %1311 = vmatprep.subr.mxu0 %v1226
        %1312 = vmatpush1.msra.mxu0 %v1225
        %1313 = vmatprep.subr.mxu0 %v1230
        %1314 = vmatpush1.msra.mxu0 %v1229
        %1315 = vmatprep.subr.mxu0 %v1234
        %1316 = vmatpush1.msra.mxu0 %v1233
        %1317 = vmatprep.subr.mxu0 %v1238
        %1318 = vmatpush1.msra.mxu0 %v1237
        %1319 = vmatprep.subr.mxu0 %v1242
        %1320 = vmatpush1.msra.mxu0 %v1241
        %1321 = vmatprep.subr.mxu0 %v1246
        %1322 = vmatpush1.msra.mxu0 %v1245
        %1323 = vmatprep.subr.mxu0 %v1250
        %1324 = vmatpush1.msra.mxu0 %v1249
        %1325 = vmatprep.subr.mxu0 %v1254
        %1326 = vmatpush1.msra.mxu0 %v1253
        %1327 = vmatprep.subr.mxu0 %v1258
        %1328 = vmatpush1.msra.mxu0 %v1257
        %1329 = vmatprep.subr.mxu0 %v1262
        %1330 = vmatpush1.msra.mxu0 %v1261
        %1331 = vmatprep.subr.mxu0 %v1266
        %1332 = vmatpush1.msra.mxu0 %v1265
        %1333 = vmatprep.subr.mxu0 %v1270
        %1334 = vmatpush1.msra.mxu0 %v1269
        %1335 = vmatprep.subr.mxu0 %v1274
        %1336 = vmatpush1.msra.mxu0 %v1273
        %1337 = vmatprep.subr.mxu0 %v1278
        %1338 = vmatpush1.msra.mxu0 %v1277
        %1339 = vmatprep.subr.mxu0 %v1282
        %1340 = vmatpush1.msra.mxu0 %v1281
        %1341 = vmatprep.subr.mxu0 %v1286
        %1342 = vmatpush1.msra.mxu0 %v1285
        %1343 = vmatprep.subr.mxu0 0.0
        %1344 = vmatpush1.msra.mxu0 0.0
        %1345 = vmatprep.subr.mxu0 0.0
        %1346 = vmatpush1.msra.mxu0 0.0
        %1347 = vmatprep.subr.mxu0 0.0
        %1348 = vmatpush1.msra.mxu0 0.0
        %1349 = vmatprep.subr.mxu0 0.0
        %1350 = vmatpush1.msra.mxu0 0.0
        %1351 = vmatprep.subr.mxu0 0.0
        %1352 = vmatpush1.msra.mxu0 0.0
        %1353 = vmatprep.subr.mxu0 0.0
        %1354 = vmatpush1.msra.mxu0 0.0
        %1355 = vmatprep.subr.mxu0 0.0
        %1356 = vmatpush1.msra.mxu0 0.0
        %1357 = vmatprep.subr.mxu0 0.0
        %1358 = vmatpush1.msra.mxu0 0.0
        %1359 = vmatprep.subr.mxu0 0.0
        %1360 = vmatpush1.msra.mxu0 0.0
        %1361 = vmatprep.subr.mxu0 0.0
        %1362 = vmatpush1.msra.mxu0 0.0
        %1363 = vmatprep.subr.mxu0 0.0
        %1364 = vmatpush1.msra.mxu0 0.0
        %1365 = vmatprep.subr.mxu0 0.0
        %1366 = vmatpush1.msra.mxu0 0.0
        %1367 = vmatprep.subr.mxu0 0.0
        %1368 = vmatpush1.msra.mxu0 0.0
        %1369 = vmatprep.subr.mxu0 0.0
        %1370 = vmatpush1.msra.mxu0 0.0
        %1371 = vmatprep.subr.mxu0 0.0
        %1372 = vmatpush1.msra.mxu0 0.0
        %1373 = vmatprep.subr.mxu0 0.0
        %1374 = vmatpush1.msra.mxu0 0.0
        %1375 = vmatprep.mubr.f32.mxu0 0.0
        %1376 = vmatmul.mubr.f32.gmra.mrb[0].mxu0 %v1221
        %v1377 = vpop.f32.mrb[0].mxu0
        %v1378 = vadd.f32 %v1294, %v1377
        %v1379 = vpop.f32.mrb[0].mxu0
        %v1380 = vadd.f32 %v1298, %v1379
        %1381 = vmatprep.mubr.f32.mxu0 0.0
        %1382 = vmatmul.mubr.f32.gmra.mrb[0].mxu0 %v1222
        %v1383 = vpop.f32.mrb[0].mxu0
        %v1384 = vadd.f32 %v1294, %v1383
        %v1385 = vpop.f32.mrb[0].mxu0
        %v1386 = vadd.f32 %v1298, %v1385
        %1387 = vmatprep.mubr.f32.mxu0 0.0
        %1388 = vmatmul.mubr.f32.gmra.mrb[0].mxu0 %v1223
        %v1389 = vpop.f32.mrb[0].mxu0
        %v1390 = vadd.f32 %v1294, %v1389
        %v1391 = vpop.f32.mrb[0].mxu0
        %v1392 = vadd.f32 %v1298, %v1391
        %1393 = vmatprep.mubr.f32.mxu0 0.0
        %1394 = vmatmul.mubr.f32.gmra.mrb[0].mxu0 %v1224
        %v1395 = vpop.f32.mrb[0].mxu0
        %v1396 = vadd.f32 %v1294, %v1395
        %v1397 = vpop.f32.mrb[0].mxu0
        %v1398 = vadd.f32 %v1298, %v1397
        %1399 = vdwg.mxu0
        %1400 = vmatprep.subr.mxu0 %v1228
        %1401 = vmatpush1.msra.mxu0 %v1227
        %1402 = vmatprep.subr.mxu0 %v1232
        %1403 = vmatpush1.msra.mxu0 %v1231
        %1404 = vmatprep.subr.mxu0 %v1236
        %1405 = vmatpush1.msra.mxu0 %v1235
        %1406 = vmatprep.subr.mxu0 %v1240
        %1407 = vmatpush1.msra.mxu0 %v1239
        %1408 = vmatprep.subr.mxu0 %v1244
        %1409 = vmatpush1.msra.mxu0 %v1243
        %1410 = vmatprep.subr.mxu0 %v1248
        %1411 = vmatpush1.msra.mxu0 %v1247
        %1412 = vmatprep.subr.mxu0 %v1252
        %1413 = vmatpush1.msra.mxu0 %v1251
        %1414 = vmatprep.subr.mxu0 %v1256
        %1415 = vmatpush1.msra.mxu0 %v1255
        %1416 = vmatprep.subr.mxu0 %v1260
        %1417 = vmatpush1.msra.mxu0 %v1259
        %1418 = vmatprep.subr.mxu0 %v1264
        %1419 = vmatpush1.msra.mxu0 %v1263
        %1420 = vmatprep.subr.mxu0 %v1268
        %1421 = vmatpush1.msra.mxu0 %v1267
        %1422 = vmatprep.subr.mxu0 %v1272
        %1423 = vmatpush1.msra.mxu0 %v1271
        %1424 = vmatprep.subr.mxu0 %v1276
        %1425 = vmatpush1.msra.mxu0 %v1275
        %1426 = vmatprep.subr.mxu0 %v1280
        %1427 = vmatpush1.msra.mxu0 %v1279
        %1428 = vmatprep.subr.mxu0 %v1284
        %1429 = vmatpush1.msra.mxu0 %v1283
        %1430 = vmatprep.subr.mxu0 %v1288
        %1431 = vmatpush1.msra.mxu0 %v1287
        %1432 = vmatprep.subr.mxu0 0.0
        %1433 = vmatpush1.msra.mxu0 0.0
        %1434 = vmatprep.subr.mxu0 0.0
        %1435 = vmatpush1.msra.mxu0 0.0
        %1436 = vmatprep.subr.mxu0 0.0
        %1437 = vmatpush1.msra.mxu0 0.0
        %1438 = vmatprep.subr.mxu0 0.0
        %1439 = vmatpush1.msra.mxu0 0.0
        %1440 = vmatprep.subr.mxu0 0.0
        %1441 = vmatpush1.msra.mxu0 0.0
        %1442 = vmatprep.subr.mxu0 0.0
        %1443 = vmatpush1.msra.mxu0 0.0
        %1444 = vmatprep.subr.mxu0 0.0
        %1445 = vmatpush1.msra.mxu0 0.0
        %1446 = vmatprep.subr.mxu0 0.0
        %1447 = vmatpush1.msra.mxu0 0.0
        %1448 = vmatprep.subr.mxu0 0.0
        %1449 = vmatpush1.msra.mxu0 0.0
        %1450 = vmatprep.subr.mxu0 0.0
        %1451 = vmatpush1.msra.mxu0 0.0
        %1452 = vmatprep.subr.mxu0 0.0
        %1453 = vmatpush1.msra.mxu0 0.0
        %1454 = vmatprep.subr.mxu0 0.0
        %1455 = vmatpush1.msra.mxu0 0.0
        %1456 = vmatprep.subr.mxu0 0.0
        %1457 = vmatpush1.msra.mxu0 0.0
        %1458 = vmatprep.subr.mxu0 0.0
        %1459 = vmatpush1.msra.mxu0 0.0
        %1460 = vmatprep.subr.mxu0 0.0
        %1461 = vmatpush1.msra.mxu0 0.0
        %1462 = vmatprep.subr.mxu0 0.0
        %1463 = vmatpush1.msra.mxu0 0.0
        %1464 = vmatprep.mubr.f32.mxu0 0.0
        %1465 = vmatmul.mubr.f32.gmra.mrb[0].mxu0 %v1221
        %v1466 = vpop.f32.mrb[0].mxu0
        %v1467 = vadd.f32 %v1302, %v1466
        %v1468 = vpop.f32.mrb[0].mxu0
        %v1469 = vadd.f32 %v1306, %v1468
        %1470 = vmatprep.mubr.f32.mxu0 0.0
        %1471 = vmatmul.mubr.f32.gmra.mrb[0].mxu0 %v1222
        %v1472 = vpop.f32.mrb[0].mxu0
        %v1473 = vadd.f32 %v1302, %v1472
        %v1474 = vpop.f32.mrb[0].mxu0
        %v1475 = vadd.f32 %v1306, %v1474
        %1476 = vmatprep.mubr.f32.mxu0 0.0
        %1477 = vmatmul.mubr.f32.gmra.mrb[0].mxu0 %v1223
        %v1478 = vpop.f32.mrb[0].mxu0
        %v1479 = vadd.f32 %v1302, %v1478
        %v1480 = vpop.f32.mrb[0].mxu0
        %v1481 = vadd.f32 %v1306, %v1480
        %1482 = vmatprep.mubr.f32.mxu0 0.0
        %1483 = vmatmul.mubr.f32.gmra.mrb[0].mxu0 %v1224
        %v1484 = vpop.f32.mrb[0].mxu0
        %v1485 = vadd.f32 %v1302, %v1484
        %v1486 = vpop.f32.mrb[0].mxu0
        %v1487 = vadd.f32 %v1306, %v1486
        %1488 = vdwg.mxu0
        %v1489 = vmul.f32 %v1378, %v1378
        %v1490 = vmul.f32 %v1380, %v1380
        %v1491 = vmul.f32 %v1467, %v1467
        %v1492 = vmul.f32 %v1469, %v1469
        %v1493 = vmul.f32 %v1384, %v1384
        %v1494 = vmul.f32 %v1386, %v1386
        %v1495 = vmul.f32 %v1473, %v1473
        %v1496 = vmul.f32 %v1475, %v1475
        %v1497 = vmul.f32 %v1390, %v1390
        %v1498 = vmul.f32 %v1392, %v1392
        %v1499 = vmul.f32 %v1479, %v1479
        %v1500 = vmul.f32 %v1481, %v1481
        %v1501 = vmul.f32 %v1396, %v1396
        %v1502 = vmul.f32 %v1398, %v1398
        %v1503 = vmul.f32 %v1485, %v1485
        %v1504 = vmul.f32 %v1487, %v1487
        %v1505 = vmul.f32 %v1378, %v1489
        %v1506 = vmul.f32 %v1380, %v1490
        %v1507 = vmul.f32 %v1467, %v1491
        %v1508 = vmul.f32 %v1469, %v1492
        %v1509 = vmul.f32 %v1384, %v1493
        %v1510 = vmul.f32 %v1386, %v1494
        %v1511 = vmul.f32 %v1473, %v1495
        %v1512 = vmul.f32 %v1475, %v1496
        %v1513 = vmul.f32 %v1390, %v1497
        %v1514 = vmul.f32 %v1392, %v1498
        %v1515 = vmul.f32 %v1479, %v1499
        %v1516 = vmul.f32 %v1481, %v1500
        %v1517 = vmul.f32 %v1396, %v1501
        %v1518 = vmul.f32 %v1398, %v1502
        %v1519 = vmul.f32 %v1485, %v1503
        %v1520 = vmul.f32 %v1487, %v1504
        %v1521 = vmul.f32 %v1505, 0.044715
        %v1522 = vmul.f32 %v1506, 0.044715
        %v1523 = vmul.f32 %v1507, 0.044715
        %v1524 = vmul.f32 %v1508, 0.044715
        %v1525 = vmul.f32 %v1509, 0.044715
        %v1526 = vmul.f32 %v1510, 0.044715
        %v1527 = vmul.f32 %v1511, 0.044715
        %v1528 = vmul.f32 %v1512, 0.044715
        %v1529 = vmul.f32 %v1513, 0.044715
        %v1530 = vmul.f32 %v1514, 0.044715
        %v1531 = vmul.f32 %v1515, 0.044715
        %v1532 = vmul.f32 %v1516, 0.044715
        %v1533 = vmul.f32 %v1517, 0.044715
        %v1534 = vmul.f32 %v1518, 0.044715
        %v1535 = vmul.f32 %v1519, 0.044715
        %v1536 = vmul.f32 %v1520, 0.044715
        %v1537 = vadd.f32 %v1378, %v1521
        %v1538 = vadd.f32 %v1380, %v1522
        %v1539 = vadd.f32 %v1467, %v1523
        %v1540 = vadd.f32 %v1469, %v1524
        %v1541 = vadd.f32 %v1384, %v1525
        %v1542 = vadd.f32 %v1386, %v1526
        %v1543 = vadd.f32 %v1473, %v1527
        %v1544 = vadd.f32 %v1475, %v1528
        %v1545 = vadd.f32 %v1390, %v1529
        %v1546 = vadd.f32 %v1392, %v1530
        %v1547 = vadd.f32 %v1479, %v1531
        %v1548 = vadd.f32 %v1481, %v1532
        %v1549 = vadd.f32 %v1396, %v1533
        %v1550 = vadd.f32 %v1398, %v1534
        %v1551 = vadd.f32 %v1485, %v1535
        %v1552 = vadd.f32 %v1487, %v1536
        %v1553 = vmul.f32 %v1537, 0.7978846
        %v1554 = vmul.f32 %v1538, 0.7978846
        %v1555 = vmul.f32 %v1539, 0.7978846
        %v1556 = vmul.f32 %v1540, 0.7978846
        %v1557 = vmul.f32 %v1541, 0.7978846
        %v1558 = vmul.f32 %v1542, 0.7978846
        %v1559 = vmul.f32 %v1543, 0.7978846
        %v1560 = vmul.f32 %v1544, 0.7978846
        %v1561 = vmul.f32 %v1545, 0.7978846
        %v1562 = vmul.f32 %v1546, 0.7978846
        %v1563 = vmul.f32 %v1547, 0.7978846
        %v1564 = vmul.f32 %v1548, 0.7978846
        %v1565 = vmul.f32 %v1549, 0.7978846
        %v1566 = vmul.f32 %v1550, 0.7978846
        %v1567 = vmul.f32 %v1551, 0.7978846
        %v1568 = vmul.f32 %v1552, 0.7978846
        %v1569 = vtanh.pop %v1553
        %v1570 = vtanh.pop %v1554
        %v1571 = vtanh.pop %v1555
        %v1572 = vtanh.pop %v1556
        %v1573 = vtanh.pop %v1557
        %v1574 = vtanh.pop %v1558
        %v1575 = vtanh.pop %v1559
        %v1576 = vtanh.pop %v1560
        %v1577 = vtanh.pop %v1561
        %v1578 = vtanh.pop %v1562
        %v1579 = vtanh.pop %v1563
        %v1580 = vtanh.pop %v1564
        %v1581 = vtanh.pop %v1565
        %v1582 = vtanh.pop %v1566
        %v1583 = vtanh.pop %v1567
        %v1584 = vtanh.pop %v1568
        %v1585 = vadd.f32 %v1569, 1.0
        %v1586 = vadd.f32 %v1570, 1.0
        %v1587 = vadd.f32 %v1571, 1.0
        %v1588 = vadd.f32 %v1572, 1.0
        %v1589 = vadd.f32 %v1573, 1.0
        %v1590 = vadd.f32 %v1574, 1.0
        %v1591 = vadd.f32 %v1575, 1.0
        %v1592 = vadd.f32 %v1576, 1.0
        %v1593 = vadd.f32 %v1577, 1.0
        %v1594 = vadd.f32 %v1578, 1.0
        %v1595 = vadd.f32 %v1579, 1.0
        %v1596 = vadd.f32 %v1580, 1.0
        %v1597 = vadd.f32 %v1581, 1.0
        %v1598 = vadd.f32 %v1582, 1.0
        %v1599 = vadd.f32 %v1583, 1.0
        %v1600 = vadd.f32 %v1584, 1.0
        %v1601 = vmul.f32 %v1585, 0.5
        %v1602 = vmul.f32 %v1586, 0.5
        %v1603 = vmul.f32 %v1587, 0.5
        %v1604 = vmul.f32 %v1588, 0.5
        %v1605 = vmul.f32 %v1589, 0.5
        %v1606 = vmul.f32 %v1590, 0.5
        %v1607 = vmul.f32 %v1591, 0.5
        %v1608 = vmul.f32 %v1592, 0.5
        %v1609 = vmul.f32 %v1593, 0.5
        %v1610 = vmul.f32 %v1594, 0.5
        %v1611 = vmul.f32 %v1595, 0.5
        %v1612 = vmul.f32 %v1596, 0.5
        %v1613 = vmul.f32 %v1597, 0.5
        %v1614 = vmul.f32 %v1598, 0.5
        %v1615 = vmul.f32 %v1599, 0.5
        %v1616 = vmul.f32 %v1600, 0.5
        %v1617 = vmul.f32 %v1378, %v1601
        %v1618 = vmul.f32 %v1380, %v1602
        %v1619 = vmul.f32 %v1467, %v1603
        %v1620 = vmul.f32 %v1469, %v1604
        %v1621 = vmul.f32 %v1384, %v1605
        %v1622 = vmul.f32 %v1386, %v1606
        %v1623 = vmul.f32 %v1473, %v1607
        %v1624 = vmul.f32 %v1475, %v1608
        %v1625 = vmul.f32 %v1390, %v1609
        %v1626 = vmul.f32 %v1392, %v1610
        %v1627 = vmul.f32 %v1479, %v1611
        %v1628 = vmul.f32 %v1481, %v1612
        %v1629 = vmul.f32 %v1396, %v1613
        %v1630 = vmul.f32 %v1398, %v1614
        %v1631 = vmul.f32 %v1485, %v1615
        %v1632 = vmul.f32 %v1487, %v1616
        %v1633 = vld [vmem:[#allocation7] sm:$0xff]
        %v1634 = vld [vmem:[#allocation7 + $0x8] sm:$0xff]
        %v1635 = vld [vmem:[#allocation7 + $0x10] sm:$0xff]
        %v1636 = vld [vmem:[#allocation7 + $0x18] sm:$0xff]
        %v1637 = vld [vmem:[#allocation7 + $0x20] sm:$0xff]
        %v1638 = vld [vmem:[#allocation7 + $0x28] sm:$0xff]
        %v1639 = vld [vmem:[#allocation7 + $0x30] sm:$0xff]
        %v1640 = vld [vmem:[#allocation7 + $0x38] sm:$0xff]
        %v1641 = vld [vmem:[#allocation7 + $0x40] sm:$0xff]
        %v1642 = vld [vmem:[#allocation7 + $0x48] sm:$0xff]
        %v1643 = vld [vmem:[#allocation7 + $0x50] sm:$0xff]
        %v1644 = vld [vmem:[#allocation7 + $0x58] sm:$0xff]
        %v1645 = vld [vmem:[#allocation7 + $0x60] sm:$0xff]
        %v1646 = vld [vmem:[#allocation7 + $0x68] sm:$0xff]
        %v1647 = vld [vmem:[#allocation7 + $0x70] sm:$0xff]
        %v1648 = vld [vmem:[#allocation7 + $0x78] sm:$0xff]
        %v1649 = vld [vmem:[#allocation7 + $0x80] sm:$0xff]
        %v1650 = vld [vmem:[#allocation7 + $0x88] sm:$0xff]
        %v1651 = vld [vmem:[#allocation7 + $0x90] sm:$0xff]
        %v1652 = vld [vmem:[#allocation7 + $0x98] sm:$0xff]
        %v1653 = vld [vmem:[#allocation7 + $0xa0] sm:$0xff]
        %v1654 = vld [vmem:[#allocation7 + $0xa8] sm:$0xff]
        %v1655 = vld [vmem:[#allocation7 + $0xb0] sm:$0xff]
        %v1656 = vld [vmem:[#allocation7 + $0xb8] sm:$0xff]
        %v1657 = vld [vmem:[#allocation7 + $0xc0] sm:$0xff]
        %v1658 = vld [vmem:[#allocation7 + $0xc8] sm:$0xff]
        %v1659 = vld [vmem:[#allocation7 + $0xd0] sm:$0xff]
        %v1660 = vld [vmem:[#allocation7 + $0xd8] sm:$0xff]
        %v1661 = vld [vmem:[#allocation7 + $0xe0] sm:$0xff]
        %v1662 = vld [vmem:[#allocation7 + $0xe8] sm:$0xff]
        %v1663 = vld [vmem:[#allocation7 + $0xf0] sm:$0xff]
        %v1664 = vld [vmem:[#allocation7 + $0xf8] sm:$0xff]
        %v1665 = vld [vmem:[#allocation7 + $0x100] sm:$0xff]
        %v1666 = vld [vmem:[#allocation7 + $0x108] sm:$0xff]
        %v1667 = vld [vmem:[#allocation7 + $0x110] sm:$0xff]
        %v1668 = vld [vmem:[#allocation7 + $0x118] sm:$0xff]
        %v1669 = vld [vmem:[#allocation7 + $0x120] sm:$0xff]
        %v1670 = vld [vmem:[#allocation7 + $0x128] sm:$0xff]
        %v1671 = vld [vmem:[#allocation7 + $0x130] sm:$0xff]
        %v1672 = vld [vmem:[#allocation7 + $0x138] sm:$0xff]
        %v1673 = vld [vmem:[#allocation7 + $0x140] sm:$0xff]
        %v1674 = vld [vmem:[#allocation7 + $0x148] sm:$0xff]
        %v1675 = vld [vmem:[#allocation7 + $0x150] sm:$0xff]
        %v1676 = vld [vmem:[#allocation7 + $0x158] sm:$0xff]
        %v1677 = vld [vmem:[#allocation7 + $0x160] sm:$0xff]
        %v1678 = vld [vmem:[#allocation7 + $0x168] sm:$0xff]
        %v1679 = vld [vmem:[#allocation7 + $0x170] sm:$0xff]
        %v1680 = vld [vmem:[#allocation7 + $0x178] sm:$0xff]
        %v1681 = vld [vmem:[#allocation7 + $0x180] sm:$0xff]
        %v1682 = vld [vmem:[#allocation7 + $0x188] sm:$0xff]
        %v1683 = vld [vmem:[#allocation7 + $0x190] sm:$0xff]
        %v1684 = vld [vmem:[#allocation7 + $0x198] sm:$0xff]
        %v1685 = vld [vmem:[#allocation7 + $0x1a0] sm:$0xff]
        %v1686 = vld [vmem:[#allocation7 + $0x1a8] sm:$0xff]
        %v1687 = vld [vmem:[#allocation7 + $0x1b0] sm:$0xff]
        %v1688 = vld [vmem:[#allocation7 + $0x1b8] sm:$0xff]
        %v1689 = vld [vmem:[#allocation7 + $0x1c0] sm:$0xff]
        %v1690 = vld [vmem:[#allocation7 + $0x1c8] sm:$0xff]
        %v1691 = vld [vmem:[#allocation7 + $0x1d0] sm:$0xff]
        %v1692 = vld [vmem:[#allocation7 + $0x1d8] sm:$0xff]
        %v1693 = vld [vmem:[#allocation7 + $0x1e0] sm:$0xff]
        %v1694 = vld [vmem:[#allocation7 + $0x1e8] sm:$0xff]
        %v1695 = vld [vmem:[#allocation7 + $0x1f0] sm:$0xff]
        %v1696 = vld [vmem:[#allocation7 + $0x1f8] sm:$0xff]
        %v1697 = vlaneseq
        %v1698 = vshrl.u32 %v1697, 7
        %v1699 = vsub.s32 3, %v1698
        %v1700 = vrot.slane %v455, %v1699
        %1701 = vmatprep.subr.mxu0 0.0
        %1702 = vmatpush1.msra.mxu0 %v1633
        %1703 = vmatprep.subr.mxu0 0.0
        %1704 = vmatpush1.msra.mxu0 %v1634
        %1705 = vmatprep.subr.mxu0 0.0
        %1706 = vmatpush1.msra.mxu0 %v1635
        %1707 = vmatprep.subr.mxu0 0.0
        %1708 = vmatpush1.msra.mxu0 %v1636
        %1709 = vmatprep.subr.mxu0 0.0
        %1710 = vmatpush1.msra.mxu0 %v1637
        %1711 = vmatprep.subr.mxu0 0.0
        %1712 = vmatpush1.msra.mxu0 %v1638
        %1713 = vmatprep.subr.mxu0 0.0
        %1714 = vmatpush1.msra.mxu0 %v1639
        %1715 = vmatprep.subr.mxu0 0.0
        %1716 = vmatpush1.msra.mxu0 %v1640
        %1717 = vmatprep.subr.mxu0 0.0
        %1718 = vmatpush1.msra.mxu0 %v1641
        %1719 = vmatprep.subr.mxu0 0.0
        %1720 = vmatpush1.msra.mxu0 %v1642
        %1721 = vmatprep.subr.mxu0 0.0
        %1722 = vmatpush1.msra.mxu0 %v1643
        %1723 = vmatprep.subr.mxu0 0.0
        %1724 = vmatpush1.msra.mxu0 %v1644
        %1725 = vmatprep.subr.mxu0 0.0
        %1726 = vmatpush1.msra.mxu0 %v1645
        %1727 = vmatprep.subr.mxu0 0.0
        %1728 = vmatpush1.msra.mxu0 %v1646
        %1729 = vmatprep.subr.mxu0 0.0
        %1730 = vmatpush1.msra.mxu0 %v1647
        %1731 = vmatprep.subr.mxu0 0.0
        %1732 = vmatpush1.msra.mxu0 %v1648
        %1733 = vmatprep.subr.mxu0 0.0
        %1734 = vmatpush1.msra.mxu0 %v1649
        %1735 = vmatprep.subr.mxu0 0.0
        %1736 = vmatpush1.msra.mxu0 %v1650
        %1737 = vmatprep.subr.mxu0 0.0
        %1738 = vmatpush1.msra.mxu0 %v1651
        %1739 = vmatprep.subr.mxu0 0.0
        %1740 = vmatpush1.msra.mxu0 %v1652
        %1741 = vmatprep.subr.mxu0 0.0
        %1742 = vmatpush1.msra.mxu0 %v1653
        %1743 = vmatprep.subr.mxu0 0.0
        %1744 = vmatpush1.msra.mxu0 %v1654
        %1745 = vmatprep.subr.mxu0 0.0
        %1746 = vmatpush1.msra.mxu0 %v1655
        %1747 = vmatprep.subr.mxu0 0.0
        %1748 = vmatpush1.msra.mxu0 %v1656
        %1749 = vmatprep.subr.mxu0 0.0
        %1750 = vmatpush1.msra.mxu0 %v1657
        %1751 = vmatprep.subr.mxu0 0.0
        %1752 = vmatpush1.msra.mxu0 %v1658
        %1753 = vmatprep.subr.mxu0 0.0
        %1754 = vmatpush1.msra.mxu0 %v1659
        %1755 = vmatprep.subr.mxu0 0.0
        %1756 = vmatpush1.msra.mxu0 %v1660
        %1757 = vmatprep.subr.mxu0 0.0
        %1758 = vmatpush1.msra.mxu0 %v1661
        %1759 = vmatprep.subr.mxu0 0.0
        %1760 = vmatpush1.msra.mxu0 %v1662
        %1761 = vmatprep.subr.mxu0 0.0
        %1762 = vmatpush1.msra.mxu0 %v1663
        %1763 = vmatprep.subr.mxu0 0.0
        %1764 = vmatpush1.msra.mxu0 %v1664
        %1765 = vmatprep.mubr.f32.mxu0 %v1618
        %1766 = vmatmul.mubr.f32.gmra.mrb[0].mxu0 %v1617
        %v1767 = vpop.f32.mrb[0].mxu0
        %v1768 = vadd.f32 %v1700, %v1767
        %v1769 = vpop.f32.mrb[0].mxu0
        %1770 = vmatprep.mubr.f32.mxu0 %v1622
        %1771 = vmatmul.mubr.f32.gmra.mrb[0].mxu0 %v1621
        %v1772 = vpop.f32.mrb[0].mxu0
        %v1773 = vadd.f32 %v1700, %v1772
        %v1774 = vpop.f32.mrb[0].mxu0
        %1775 = vmatprep.mubr.f32.mxu0 %v1626
        %1776 = vmatmul.mubr.f32.gmra.mrb[0].mxu0 %v1625
        %v1777 = vpop.f32.mrb[0].mxu0
        %v1778 = vadd.f32 %v1700, %v1777
        %v1779 = vpop.f32.mrb[0].mxu0
        %1780 = vmatprep.mubr.f32.mxu0 %v1630
        %1781 = vmatmul.mubr.f32.gmra.mrb[0].mxu0 %v1629
        %v1782 = vpop.f32.mrb[0].mxu0
        %v1783 = vadd.f32 %v1700, %v1782
        %v1784 = vpop.f32.mrb[0].mxu0
        %1785 = vdwg.mxu0
        %1786 = vmatprep.subr.mxu0 0.0
        %1787 = vmatpush1.msra.mxu0 %v1665
        %1788 = vmatprep.subr.mxu0 0.0
        %1789 = vmatpush1.msra.mxu0 %v1666
        %1790 = vmatprep.subr.mxu0 0.0
        %1791 = vmatpush1.msra.mxu0 %v1667
        %1792 = vmatprep.subr.mxu0 0.0
        %1793 = vmatpush1.msra.mxu0 %v1668
        %1794 = vmatprep.subr.mxu0 0.0
        %1795 = vmatpush1.msra.mxu0 %v1669
        %1796 = vmatprep.subr.mxu0 0.0
        %1797 = vmatpush1.msra.mxu0 %v1670
        %1798 = vmatprep.subr.mxu0 0.0
        %1799 = vmatpush1.msra.mxu0 %v1671
        %1800 = vmatprep.subr.mxu0 0.0
        %1801 = vmatpush1.msra.mxu0 %v1672
        %1802 = vmatprep.subr.mxu0 0.0
        %1803 = vmatpush1.msra.mxu0 %v1673
        %1804 = vmatprep.subr.mxu0 0.0
        %1805 = vmatpush1.msra.mxu0 %v1674
        %1806 = vmatprep.subr.mxu0 0.0
        %1807 = vmatpush1.msra.mxu0 %v1675
        %1808 = vmatprep.subr.mxu0 0.0
        %1809 = vmatpush1.msra.mxu0 %v1676
        %1810 = vmatprep.subr.mxu0 0.0
        %1811 = vmatpush1.msra.mxu0 %v1677
        %1812 = vmatprep.subr.mxu0 0.0
        %1813 = vmatpush1.msra.mxu0 %v1678
        %1814 = vmatprep.subr.mxu0 0.0
        %1815 = vmatpush1.msra.mxu0 %v1679
        %1816 = vmatprep.subr.mxu0 0.0
        %1817 = vmatpush1.msra.mxu0 %v1680
        %1818 = vmatprep.subr.mxu0 0.0
        %1819 = vmatpush1.msra.mxu0 %v1681
        %1820 = vmatprep.subr.mxu0 0.0
        %1821 = vmatpush1.msra.mxu0 %v1682
        %1822 = vmatprep.subr.mxu0 0.0
        %1823 = vmatpush1.msra.mxu0 %v1683
        %1824 = vmatprep.subr.mxu0 0.0
        %1825 = vmatpush1.msra.mxu0 %v1684
        %1826 = vmatprep.subr.mxu0 0.0
        %1827 = vmatpush1.msra.mxu0 %v1685
        %1828 = vmatprep.subr.mxu0 0.0
        %1829 = vmatpush1.msra.mxu0 %v1686
        %1830 = vmatprep.subr.mxu0 0.0
        %1831 = vmatpush1.msra.mxu0 %v1687
        %1832 = vmatprep.subr.mxu0 0.0
        %1833 = vmatpush1.msra.mxu0 %v1688
        %1834 = vmatprep.subr.mxu0 0.0
        %1835 = vmatpush1.msra.mxu0 %v1689
        %1836 = vmatprep.subr.mxu0 0.0
        %1837 = vmatpush1.msra.mxu0 %v1690
        %1838 = vmatprep.subr.mxu0 0.0
        %1839 = vmatpush1.msra.mxu0 %v1691
        %1840 = vmatprep.subr.mxu0 0.0
        %1841 = vmatpush1.msra.mxu0 %v1692
        %1842 = vmatprep.subr.mxu0 0.0
        %1843 = vmatpush1.msra.mxu0 %v1693
        %1844 = vmatprep.subr.mxu0 0.0
        %1845 = vmatpush1.msra.mxu0 %v1694
        %1846 = vmatprep.subr.mxu0 0.0
        %1847 = vmatpush1.msra.mxu0 %v1695
        %1848 = vmatprep.subr.mxu0 0.0
        %1849 = vmatpush1.msra.mxu0 %v1696
        %1850 = vmatprep.mubr.f32.mxu0 %v1620
        %1851 = vmatmul.mubr.f32.gmra.mrb[0].mxu0 %v1619
        %v1852 = vpop.f32.mrb[0].mxu0
        %v1853 = vadd.f32 %v1768, %v1852
        %v1854 = vpop.f32.mrb[0].mxu0
        %1855 = vmatprep.mubr.f32.mxu0 %v1624
        %1856 = vmatmul.mubr.f32.gmra.mrb[0].mxu0 %v1623
        %v1857 = vpop.f32.mrb[0].mxu0
        %v1858 = vadd.f32 %v1773, %v1857
        %v1859 = vpop.f32.mrb[0].mxu0
        %1860 = vmatprep.mubr.f32.mxu0 %v1628
        %1861 = vmatmul.mubr.f32.gmra.mrb[0].mxu0 %v1627
        %v1862 = vpop.f32.mrb[0].mxu0
        %v1863 = vadd.f32 %v1778, %v1862
        %v1864 = vpop.f32.mrb[0].mxu0
        %1865 = vmatprep.mubr.f32.mxu0 %v1632
        %1866 = vmatmul.mubr.f32.gmra.mrb[0].mxu0 %v1631
        %v1867 = vpop.f32.mrb[0].mxu0
        %v1868 = vadd.f32 %v1783, %v1867
        %v1869 = vpop.f32.mrb[0].mxu0
        %1870 = vdwg.mxu0
        %v1871 = vadd.f32 %v1221, %v1853
        %v1872 = vadd.f32 %v1222, %v1858
        %v1873 = vadd.f32 %v1223, %v1863
        %v1874 = vadd.f32 %v1224, %v1868
        %1875 = vadd.xlane.f32.xlu0 %v1871
        %v1876 = vpop.xlane.xlu0 %1875
        %1877 = vadd.xlane.f32.xlu0 %v1872
        %v1878 = vpop.xlane.xlu0 %1877
        %1879 = vadd.xlane.f32.xlu0 %v1873
        %v1880 = vpop.xlane.xlu0 %1879
        %1881 = vadd.xlane.f32.xlu0 %v1874
        %v1882 = vpop.xlane.xlu0 %1881
        %v1883 = vmul.f32 %v1876, %v402
        %v1884 = vmul.f32 %v1878, %v402
        %v1885 = vmul.f32 %v1880, %v402
        %v1886 = vmul.f32 %v1882, %v402
        %v1887 = vsub.f32 %v1871, %v1883
        %v1888 = vsub.f32 %v1872, %v1884
        %v1889 = vsub.f32 %v1873, %v1885
        %v1890 = vsub.f32 %v1874, %v1886
        %v1891 = vmul.f32 %v1887, %v1887
        %v1892 = vmul.f32 %v1888, %v1888
        %v1893 = vmul.f32 %v1889, %v1889
        %v1894 = vmul.f32 %v1890, %v1890
        %1895 = vadd.xlane.f32.xlu0 %v1891
        %v1896 = vpop.xlane.xlu0 %1895
        %1897 = vadd.xlane.f32.xlu0 %v1892
        %v1898 = vpop.xlane.xlu0 %1897
        %1899 = vadd.xlane.f32.xlu0 %v1893
        %v1900 = vpop.xlane.xlu0 %1899
        %1901 = vadd.xlane.f32.xlu0 %v1894
        %v1902 = vpop.xlane.xlu0 %1901
        %v1903 = vmul.f32 %v1896, %v402
        %v1904 = vmul.f32 %v1898, %v402
        %v1905 = vmul.f32 %v1900, %v402
        %v1906 = vmul.f32 %v1902, %v402
        %v1907 = vadd.f32 %v1903, 1e-12
        %v1908 = vadd.f32 %v1904, 1e-12
        %v1909 = vadd.f32 %v1905, 1e-12
        %v1910 = vadd.f32 %v1906, 1e-12
        %v1911 = vrsqrt.pop %v1907
        %v1912 = vrsqrt.pop %v1908
        %v1913 = vrsqrt.pop %v1909
        %v1914 = vrsqrt.pop %v1910
        %v1915 = vmul.f32 %v1887, %v1911
        %v1916 = vmul.f32 %v1888, %v1912
        %v1917 = vmul.f32 %v1889, %v1913
        %v1918 = vmul.f32 %v1890, %v1914
        %v1919 = vlaneseq
        %v1920 = vshrl.u32 %v1919, 7
        %v1921 = vsub.s32 4, %v1920
        %v1922 = vrot.slane %v455, %v1921
        %v1923 = vmul.f32 %v1915, %v1922
        %v1924 = vmul.f32 %v1916, %v1922
        %v1925 = vmul.f32 %v1917, %v1922
        %v1926 = vmul.f32 %v1918, %v1922
        %v1927 = vlaneseq
        %v1928 = vshrl.u32 %v1927, 7
        %v1929 = vsub.s32 5, %v1928
        %v1930 = vrot.slane %v455, %v1929
        %v1931 = vadd.f32 %v1923, %v1930
        %v1932 = vadd.f32 %v1924, %v1930
        %v1933 = vadd.f32 %v1925, %v1930
        %v1934 = vadd.f32 %v1926, %v1930
        %s1935 = scalar_lea.vmem %s8, 8
        %v1936 = vld [vmem:[%s1935] sm:$0x3f]
        %s1937 = scalar_lea.vmem %s2, 384
        %v1938 = vld [vmem:[%s1937] sm:$0xff]
        %v1939 = vld [vmem:[%s1937 + $0x8] sm:$0xff]
        %v1940 = vld [vmem:[%s1937 + $0x10] sm:$0xff]
        %v1941 = vld [vmem:[%s1937 + $0x18] sm:$0xff]
        %v1942 = vld [vmem:[%s1937 + $0x20] sm:$0xff]
        %v1943 = vld [vmem:[%s1937 + $0x28] sm:$0xff]
        %v1944 = vld [vmem:[%s1937 + $0x30] sm:$0xff]
        %v1945 = vld [vmem:[%s1937 + $0x38] sm:$0xff]
        %v1946 = vld [vmem:[%s1937 + $0x40] sm:$0xff]
        %v1947 = vld [vmem:[%s1937 + $0x48] sm:$0xff]
        %v1948 = vld [vmem:[%s1937 + $0x50] sm:$0xff]
        %v1949 = vld [vmem:[%s1937 + $0x58] sm:$0xff]
        %v1950 = vld [vmem:[%s1937 + $0x60] sm:$0xff]
        %v1951 = vld [vmem:[%s1937 + $0x68] sm:$0xff]
        %v1952 = vld [vmem:[%s1937 + $0x70] sm:$0xff]
        %v1953 = vld [vmem:[%s1937 + $0x78] sm:$0xff]
        %v1954 = vld [vmem:[%s1937 + $0x80] sm:$0xff]
        %v1955 = vld [vmem:[%s1937 + $0x88] sm:$0xff]
        %v1956 = vld [vmem:[%s1937 + $0x90] sm:$0xff]
        %v1957 = vld [vmem:[%s1937 + $0x98] sm:$0xff]
        %v1958 = vld [vmem:[%s1937 + $0xa0] sm:$0xff]
        %v1959 = vld [vmem:[%s1937 + $0xa8] sm:$0xff]
        %v1960 = vld [vmem:[%s1937 + $0xb0] sm:$0xff]
        %v1961 = vld [vmem:[%s1937 + $0xb8] sm:$0xff]
        %v1962 = vld [vmem:[%s1937 + $0xc0] sm:$0xff]
        %v1963 = vld [vmem:[%s1937 + $0xc8] sm:$0xff]
        %v1964 = vld [vmem:[%s1937 + $0xd0] sm:$0xff]
        %v1965 = vld [vmem:[%s1937 + $0xd8] sm:$0xff]
        %v1966 = vld [vmem:[%s1937 + $0xe0] sm:$0xff]
        %v1967 = vld [vmem:[%s1937 + $0xe8] sm:$0xff]
        %v1968 = vld [vmem:[%s1937 + $0xf0] sm:$0xff]
        %v1969 = vld [vmem:[%s1937 + $0xf8] sm:$0xff]
        %v1970 = vld [vmem:[%s1937 + $0x100] sm:$0xff]
        %v1971 = vld [vmem:[%s1937 + $0x108] sm:$0xff]
        %v1972 = vld [vmem:[%s1937 + $0x110] sm:$0xff]
        %v1973 = vld [vmem:[%s1937 + $0x118] sm:$0xff]
        %v1974 = vld [vmem:[%s1937 + $0x120] sm:$0xff]
        %v1975 = vld [vmem:[%s1937 + $0x128] sm:$0xff]
        %v1976 = vld [vmem:[%s1937 + $0x130] sm:$0xff]
        %v1977 = vld [vmem:[%s1937 + $0x138] sm:$0xff]
        %v1978 = vld [vmem:[%s1937 + $0x140] sm:$0xff]
        %v1979 = vld [vmem:[%s1937 + $0x148] sm:$0xff]
        %v1980 = vld [vmem:[%s1937 + $0x150] sm:$0xff]
        %v1981 = vld [vmem:[%s1937 + $0x158] sm:$0xff]
        %v1982 = vld [vmem:[%s1937 + $0x160] sm:$0xff]
        %v1983 = vld [vmem:[%s1937 + $0x168] sm:$0xff]
        %v1984 = vld [vmem:[%s1937 + $0x170] sm:$0xff]
        %v1985 = vld [vmem:[%s1937 + $0x178] sm:$0xff]
        %s1986 = scalar_lea.vmem %s3, 3
        %v1987 = vld [vmem:[%s1986] sm:$0x7]
        %v1989 = vlaneseq
        %v1990 = vshrl.u32 %v1989, 7
        %v1991 = vsub.s32 0, %v1990
        %v1992 = vrot.slane %v1987, %v1991
        %v1993 = vlaneseq
        %v1994 = vshrl.u32 %v1993, 7
        %v1995 = vsub.s32 1, %v1994
        %v1996 = vrot.slane %v1987, %v1995
        %v1997 = vlaneseq
        %v1998 = vshrl.u32 %v1997, 7
        %v1999 = vsub.s32 2, %v1998
        %v2000 = vrot.slane %v1987, %v1999
        %2004 = vmatprep.subr.mxu0 %v1939
        %2005 = vmatpush1.msra.mxu0 %v1938
        %2006 = vmatprep.subr.mxu0 %v1942
        %2007 = vmatpush1.msra.mxu0 %v1941
        %2008 = vmatprep.subr.mxu0 %v1945
        %2009 = vmatpush1.msra.mxu0 %v1944
        %2010 = vmatprep.subr.mxu0 %v1948
        %2011 = vmatpush1.msra.mxu0 %v1947
        %2012 = vmatprep.subr.mxu0 %v1951
        %2013 = vmatpush1.msra.mxu0 %v1950
        %2014 = vmatprep.subr.mxu0 %v1954
        %2015 = vmatpush1.msra.mxu0 %v1953
        %2016 = vmatprep.subr.mxu0 %v1957
        %2017 = vmatpush1.msra.mxu0 %v1956
        %2018 = vmatprep.subr.mxu0 %v1960
        %2019 = vmatpush1.msra.mxu0 %v1959
        %2020 = vmatprep.subr.mxu0 %v1963
        %2021 = vmatpush1.msra.mxu0 %v1962
        %2022 = vmatprep.subr.mxu0 %v1966
        %2023 = vmatpush1.msra.mxu0 %v1965
        %2024 = vmatprep.subr.mxu0 %v1969
        %2025 = vmatpush1.msra.mxu0 %v1968
        %2026 = vmatprep.subr.mxu0 %v1972
        %2027 = vmatpush1.msra.mxu0 %v1971
        %2028 = vmatprep.subr.mxu0 %v1975
        %2029 = vmatpush1.msra.mxu0 %v1974
        %2030 = vmatprep.subr.mxu0 %v1978
        %2031 = vmatpush1.msra.mxu0 %v1977
        %2032 = vmatprep.subr.mxu0 %v1981
        %2033 = vmatpush1.msra.mxu0 %v1980
        %2034 = vmatprep.subr.mxu0 %v1984
        %2035 = vmatpush1.msra.mxu0 %v1983
        %2036 = vmatprep.subr.mxu0 0.0
        %2037 = vmatpush1.msra.mxu0 0.0
        %2038 = vmatprep.subr.mxu0 0.0
        %2039 = vmatpush1.msra.mxu0 0.0
        %2040 = vmatprep.subr.mxu0 0.0
        %2041 = vmatpush1.msra.mxu0 0.0
        %2042 = vmatprep.subr.mxu0 0.0
        %2043 = vmatpush1.msra.mxu0 0.0
        %2044 = vmatprep.subr.mxu0 0.0
        %2045 = vmatpush1.msra.mxu0 0.0
        %2046 = vmatprep.subr.mxu0 0.0
        %2047 = vmatpush1.msra.mxu0 0.0
        %2048 = vmatprep.subr.mxu0 0.0
        %2049 = vmatpush1.msra.mxu0 0.0
        %2050 = vmatprep.subr.mxu0 0.0
        %2051 = vmatpush1.msra.mxu0 0.0
        %2052 = vmatprep.subr.mxu0 0.0
        %2053 = vmatpush1.msra.mxu0 0.0
        %2054 = vmatprep.subr.mxu0 0.0
        %2055 = vmatpush1.msra.mxu0 0.0
        %2056 = vmatprep.subr.mxu0 0.0
        %2057 = vmatpush1.msra.mxu0 0.0
        %2058 = vmatprep.subr.mxu0 0.0
        %2059 = vmatpush1.msra.mxu0 0.0
        %2060 = vmatprep.subr.mxu0 0.0
        %2061 = vmatpush1.msra.mxu0 0.0
        %2062 = vmatprep.subr.mxu0 0.0
        %2063 = vmatpush1.msra.mxu0 0.0
        %2064 = vmatprep.subr.mxu0 0.0
        %2065 = vmatpush1.msra.mxu0 0.0
        %2066 = vmatprep.subr.mxu0 0.0
        %2067 = vmatpush1.msra.mxu0 0.0
        %2068 = vmatprep.mubr.f32.mxu0 0.0
        %2069 = vmatmul.mubr.f32.gmra.mrb[0].mxu0 %v1931
        %v2070 = vpop.f32.mrb[0].mxu0
        %v2071 = vadd.f32 %v1992, %v2070
        %v2072 = vpop.f32.mrb[0].mxu0
        %v2073 = vadd.f32 %v1996, %v2072
        %2074 = vmatprep.mubr.f32.mxu0 0.0
        %2075 = vmatmul.mubr.f32.gmra.mrb[0].mxu0 %v1932
        %v2076 = vpop.f32.mrb[0].mxu0
        %v2077 = vadd.f32 %v1992, %v2076
        %v2078 = vpop.f32.mrb[0].mxu0
        %v2079 = vadd.f32 %v1996, %v2078
        %2080 = vmatprep.mubr.f32.mxu0 0.0
        %2081 = vmatmul.mubr.f32.gmra.mrb[0].mxu0 %v1933
        %v2082 = vpop.f32.mrb[0].mxu0
        %v2083 = vadd.f32 %v1992, %v2082
        %v2084 = vpop.f32.mrb[0].mxu0
        %v2085 = vadd.f32 %v1996, %v2084
        %2086 = vmatprep.mubr.f32.mxu0 0.0
        %2087 = vmatmul.mubr.f32.gmra.mrb[0].mxu0 %v1934
        %v2088 = vpop.f32.mrb[0].mxu0
        %v2089 = vadd.f32 %v1992, %v2088
        %v2090 = vpop.f32.mrb[0].mxu0
        %v2091 = vadd.f32 %v1996, %v2090
        %2092 = vdwg.mxu0
        %2093 = vmatprep.subr.mxu0 0.0
        %2094 = vmatpush1.msra.mxu0 %v1940
        %2095 = vmatprep.subr.mxu0 0.0
        %2096 = vmatpush1.msra.mxu0 %v1943
        %2097 = vmatprep.subr.mxu0 0.0
        %2098 = vmatpush1.msra.mxu0 %v1946
        %2099 = vmatprep.subr.mxu0 0.0
        %2100 = vmatpush1.msra.mxu0 %v1949
        %2101 = vmatprep.subr.mxu0 0.0
        %2102 = vmatpush1.msra.mxu0 %v1952
        %2103 = vmatprep.subr.mxu0 0.0
        %2104 = vmatpush1.msra.mxu0 %v1955
        %2105 = vmatprep.subr.mxu0 0.0
        %2106 = vmatpush1.msra.mxu0 %v1958
        %2107 = vmatprep.subr.mxu0 0.0
        %2108 = vmatpush1.msra.mxu0 %v1961
        %2109 = vmatprep.subr.mxu0 0.0
        %2110 = vmatpush1.msra.mxu0 %v1964
        %2111 = vmatprep.subr.mxu0 0.0
        %2112 = vmatpush1.msra.mxu0 %v1967
        %2113 = vmatprep.subr.mxu0 0.0
        %2114 = vmatpush1.msra.mxu0 %v1970
        %2115 = vmatprep.subr.mxu0 0.0
        %2116 = vmatpush1.msra.mxu0 %v1973
        %2117 = vmatprep.subr.mxu0 0.0
        %2118 = vmatpush1.msra.mxu0 %v1976
        %2119 = vmatprep.subr.mxu0 0.0
        %2120 = vmatpush1.msra.mxu0 %v1979
        %2121 = vmatprep.subr.mxu0 0.0
        %2122 = vmatpush1.msra.mxu0 %v1982
        %2123 = vmatprep.subr.mxu0 0.0
        %2124 = vmatpush1.msra.mxu0 %v1985
        %2125 = vmatprep.subr.mxu0 0.0
        %2126 = vmatpush1.msra.mxu0 0.0
        %2127 = vmatprep.subr.mxu0 0.0
        %2128 = vmatpush1.msra.mxu0 0.0
        %2129 = vmatprep.subr.mxu0 0.0
        %2130 = vmatpush1.msra.mxu0 0.0
        %2131 = vmatprep.subr.mxu0 0.0
        %2132 = vmatpush1.msra.mxu0 0.0
        %2133 = vmatprep.subr.mxu0 0.0
        %2134 = vmatpush1.msra.mxu0 0.0
        %2135 = vmatprep.subr.mxu0 0.0
        %2136 = vmatpush1.msra.mxu0 0.0
        %2137 = vmatprep.subr.mxu0 0.0
        %2138 = vmatpush1.msra.mxu0 0.0
        %2139 = vmatprep.subr.mxu0 0.0
        %2140 = vmatpush1.msra.mxu0 0.0
        %2141 = vmatprep.subr.mxu0 0.0
        %2142 = vmatpush1.msra.mxu0 0.0
        %2143 = vmatprep.subr.mxu0 0.0
        %2144 = vmatpush1.msra.mxu0 0.0
        %2145 = vmatprep.subr.mxu0 0.0
        %2146 = vmatpush1.msra.mxu0 0.0
        %2147 = vmatprep.subr.mxu0 0.0
        %2148 = vmatpush1.msra.mxu0 0.0
        %2149 = vmatprep.subr.mxu0 0.0
        %2150 = vmatpush1.msra.mxu0 0.0
        %2151 = vmatprep.subr.mxu0 0.0
        %2152 = vmatpush1.msra.mxu0 0.0
        %2153 = vmatprep.subr.mxu0 0.0
        %2154 = vmatpush1.msra.mxu0 0.0
        %2155 = vmatprep.subr.mxu0 0.0
        %2156 = vmatpush1.msra.mxu0 0.0
        %2157 = vmatprep.mubr.f32.mxu0 0.0
        %2158 = vmatmul.mubr.f32.gmra.mrb[0].mxu0 %v1931
        %v2159 = vpop.f32.mrb[0].mxu0
        %v2160 = vadd.f32 %v2000, %v2159
        %v2161 = vpop.f32.mrb[0].mxu0
        %2162 = vmatprep.mubr.f32.mxu0 0.0
        %2163 = vmatmul.mubr.f32.gmra.mrb[0].mxu0 %v1932
        %v2164 = vpop.f32.mrb[0].mxu0
        %v2165 = vadd.f32 %v2000, %v2164
        %v2166 = vpop.f32.mrb[0].mxu0
        %2167 = vmatprep.mubr.f32.mxu0 0.0
        %2168 = vmatmul.mubr.f32.gmra.mrb[0].mxu0 %v1933
        %v2169 = vpop.f32.mrb[0].mxu0
        %v2170 = vadd.f32 %v2000, %v2169
        %v2171 = vpop.f32.mrb[0].mxu0
        %2172 = vmatprep.mubr.f32.mxu0 0.0
        %2173 = vmatmul.mubr.f32.gmra.mrb[0].mxu0 %v1934
        %v2174 = vpop.f32.mrb[0].mxu0
        %v2175 = vadd.f32 %v2000, %v2174
        %v2176 = vpop.f32.mrb[0].mxu0
        %2177 = vdwg.mxu0
        %2178 = vmatprep.subr.mxu0 0.0
        %2179 = vmatpush1.xpose.msra.mxu0 %v2073
        %2180 = vmatprep.subr.mxu0 0.0
        %2181 = vmatpush1.xpose.msra.mxu0 %v2079
        %2182 = vmatprep.subr.mxu0 0.0
        %2183 = vmatpush1.xpose.msra.mxu0 0.0
        %2184 = vmatprep.subr.mxu0 0.0
        %2185 = vmatpush1.xpose.msra.mxu0 0.0
        %2186 = vmatprep.subr.mxu0 0.0
        %2187 = vmatpush1.xpose.msra.mxu0 0.0
        %2188 = vmatprep.subr.mxu0 0.0
        %2189 = vmatpush1.xpose.msra.mxu0 0.0
        %2190 = vmatprep.subr.mxu0 0.0
        %2191 = vmatpush1.xpose.msra.mxu0 0.0
        %2192 = vmatprep.subr.mxu0 0.0
        %2193 = vmatpush1.xpose.msra.mxu0 0.0
        %2194 = vmatprep.subr.mxu0 0.0
        %2195 = vmatpush1.xpose.msra.mxu0 0.0
        %2196 = vmatprep.subr.mxu0 0.0
        %2197 = vmatpush1.xpose.msra.mxu0 0.0
        %2198 = vmatprep.subr.mxu0 0.0
        %2199 = vmatpush1.xpose.msra.mxu0 0.0
        %2200 = vmatprep.subr.mxu0 0.0
        %2201 = vmatpush1.xpose.msra.mxu0 0.0
        %2202 = vmatprep.subr.mxu0 0.0
        %2203 = vmatpush1.xpose.msra.mxu0 0.0
        %2204 = vmatprep.subr.mxu0 0.0
        %2205 = vmatpush1.xpose.msra.mxu0 0.0
        %2206 = vmatprep.subr.mxu0 0.0
        %2207 = vmatpush1.xpose.msra.mxu0 0.0
        %2208 = vmatprep.subr.mxu0 0.0
        %2209 = vmatpush1.xpose.msra.mxu0 0.0
        %2210 = vmatprep.subr.mxu0 0.0
        %2211 = vmatpush1.xpose.msra.mxu0 0.0
        %2212 = vmatprep.subr.mxu0 0.0
        %2213 = vmatpush1.xpose.msra.mxu0 0.0
        %2214 = vmatprep.subr.mxu0 0.0
        %2215 = vmatpush1.xpose.msra.mxu0 0.0
        %2216 = vmatprep.subr.mxu0 0.0
        %2217 = vmatpush1.xpose.msra.mxu0 0.0
        %2218 = vmatprep.subr.mxu0 0.0
        %2219 = vmatpush1.xpose.msra.mxu0 0.0
        %2220 = vmatprep.subr.mxu0 0.0
        %2221 = vmatpush1.xpose.msra.mxu0 0.0
        %2222 = vmatprep.subr.mxu0 0.0
        %2223 = vmatpush1.xpose.msra.mxu0 0.0
        %2224 = vmatprep.subr.mxu0 0.0
        %2225 = vmatpush1.xpose.msra.mxu0 0.0
        %2226 = vmatprep.subr.mxu0 0.0
        %2227 = vmatpush1.xpose.msra.mxu0 0.0
        %2228 = vmatprep.subr.mxu0 0.0
        %2229 = vmatpush1.xpose.msra.mxu0 0.0
        %2230 = vmatprep.subr.mxu0 0.0
        %2231 = vmatpush1.xpose.msra.mxu0 0.0
        %2232 = vmatprep.subr.mxu0 0.0
        %2233 = vmatpush1.xpose.msra.mxu0 0.0
        %2234 = vmatprep.subr.mxu0 0.0
        %2235 = vmatpush1.xpose.msra.mxu0 0.0
        %2236 = vmatprep.subr.mxu0 0.0
        %2237 = vmatpush1.xpose.msra.mxu0 0.0
        %2238 = vmatprep.subr.mxu0 0.0
        %2239 = vmatpush1.xpose.msra.mxu0 0.0
        %2240 = vmatprep.subr.mxu0 0.0
        %2241 = vmatpush1.xpose.msra.mxu0 0.0
        %2242 = vmatprep.mubr.f32.mxu0 0.0
        %2243 = vmatmul.mubr.f32.gmra.mrb[0].mxu0 %v2071
        %v2244 = vpop.f32.mrb[0].mxu0
        %v2245 = vadd.f32 0.0, %v2244
        %v2246 = vpop.f32.mrb[0].mxu0
        %2247 = vmatprep.mubr.f32.mxu0 0.0
        %2248 = vmatmul.mubr.f32.gmra.mrb[0].mxu0 %v2077
        %v2249 = vpop.f32.mrb[0].mxu0
        %v2250 = vadd.f32 0.0, %v2249
        %v2251 = vpop.f32.mrb[0].mxu0
        %2252 = vdwg.mxu0
        %2253 = vmatprep.subr.mxu0 0.0
        %2254 = vmatpush1.xpose.msra.mxu0 %v2085
        %2255 = vmatprep.subr.mxu0 0.0
        %2256 = vmatpush1.xpose.msra.mxu0 %v2091
        %2257 = vmatprep.subr.mxu0 0.0
        %2258 = vmatpush1.xpose.msra.mxu0 0.0
        %2259 = vmatprep.subr.mxu0 0.0
        %2260 = vmatpush1.xpose.msra.mxu0 0.0
        %2261 = vmatprep.subr.mxu0 0.0
        %2262 = vmatpush1.xpose.msra.mxu0 0.0
        %2263 = vmatprep.subr.mxu0 0.0
        %2264 = vmatpush1.xpose.msra.mxu0 0.0
        %2265 = vmatprep.subr.mxu0 0.0
        %2266 = vmatpush1.xpose.msra.mxu0 0.0
        %2267 = vmatprep.subr.mxu0 0.0
        %2268 = vmatpush1.xpose.msra.mxu0 0.0
        %2269 = vmatprep.subr.mxu0 0.0
        %2270 = vmatpush1.xpose.msra.mxu0 0.0
        %2271 = vmatprep.subr.mxu0 0.0
        %2272 = vmatpush1.xpose.msra.mxu0 0.0
        %2273 = vmatprep.subr.mxu0 0.0
        %2274 = vmatpush1.xpose.msra.mxu0 0.0
        %2275 = vmatprep.subr.mxu0 0.0
        %2276 = vmatpush1.xpose.msra.mxu0 0.0
        %2277 = vmatprep.subr.mxu0 0.0
        %2278 = vmatpush1.xpose.msra.mxu0 0.0
        %2279 = vmatprep.subr.mxu0 0.0
        %2280 = vmatpush1.xpose.msra.mxu0 0.0
        %2281 = vmatprep.subr.mxu0 0.0
        %2282 = vmatpush1.xpose.msra.mxu0 0.0
        %2283 = vmatprep.subr.mxu0 0.0
        %2284 = vmatpush1.xpose.msra.mxu0 0.0
        %2285 = vmatprep.subr.mxu0 0.0
        %2286 = vmatpush1.xpose.msra.mxu0 0.0
        %2287 = vmatprep.subr.mxu0 0.0
        %2288 = vmatpush1.xpose.msra.mxu0 0.0
        %2289 = vmatprep.subr.mxu0 0.0
        %2290 = vmatpush1.xpose.msra.mxu0 0.0
        %2291 = vmatprep.subr.mxu0 0.0
        %2292 = vmatpush1.xpose.msra.mxu0 0.0
        %2293 = vmatprep.subr.mxu0 0.0
        %2294 = vmatpush1.xpose.msra.mxu0 0.0
        %2295 = vmatprep.subr.mxu0 0.0
        %2296 = vmatpush1.xpose.msra.mxu0 0.0
        %2297 = vmatprep.subr.mxu0 0.0
        %2298 = vmatpush1.xpose.msra.mxu0 0.0
        %2299 = vmatprep.subr.mxu0 0.0
        %2300 = vmatpush1.xpose.msra.mxu0 0.0
        %2301 = vmatprep.subr.mxu0 0.0
        %2302 = vmatpush1.xpose.msra.mxu0 0.0
        %2303 = vmatprep.subr.mxu0 0.0
        %2304 = vmatpush1.xpose.msra.mxu0 0.0
        %2305 = vmatprep.subr.mxu0 0.0
        %2306 = vmatpush1.xpose.msra.mxu0 0.0
        %2307 = vmatprep.subr.mxu0 0.0
        %2308 = vmatpush1.xpose.msra.mxu0 0.0
        %2309 = vmatprep.subr.mxu0 0.0
        %2310 = vmatpush1.xpose.msra.mxu0 0.0
        %2311 = vmatprep.subr.mxu0 0.0
        %2312 = vmatpush1.xpose.msra.mxu0 0.0
        %2313 = vmatprep.subr.mxu0 0.0
        %2314 = vmatpush1.xpose.msra.mxu0 0.0
        %2315 = vmatprep.subr.mxu0 0.0
        %2316 = vmatpush1.xpose.msra.mxu0 0.0
        %2317 = vmatprep.mubr.f32.mxu0 0.0
        %2318 = vmatmul.mubr.f32.gmra.mrb[0].mxu0 %v2083
        %v2319 = vpop.f32.mrb[0].mxu0
        %v2320 = vadd.f32 0.0, %v2319
        %v2321 = vpop.f32.mrb[0].mxu0
        %2322 = vmatprep.mubr.f32.mxu0 0.0
        %2323 = vmatmul.mubr.f32.gmra.mrb[0].mxu0 %v2089
        %v2324 = vpop.f32.mrb[0].mxu0
        %v2325 = vadd.f32 0.0, %v2324
        %v2326 = vpop.f32.mrb[0].mxu0
        %2327 = vdwg.mxu0
        %v2328 = vmul.f32 %v2245, 0.088388346
        %v2329 = vmul.f32 %v2250, 0.088388346
        %v2330 = vmul.f32 %v2320, 0.088388346
        %v2331 = vmul.f32 %v2325, 0.088388346
        %v2332 = vsel %vm849, %v2328, -inf
        %2333 = vmax.xlane.f32.xlu0 %v2332
        %v2334 = vpop.xlane.xlu0 %2333
        %v2335 = vsel %vm849, %v2329, -inf
        %2336 = vmax.xlane.f32.xlu0 %v2335
        %v2337 = vpop.xlane.xlu0 %2336
        %v2338 = vsel %vm849, %v2330, -inf
        %2339 = vmax.xlane.f32.xlu0 %v2338
        %v2340 = vpop.xlane.xlu0 %2339
        %v2341 = vsel %vm849, %v2331, -inf
        %2342 = vmax.xlane.f32.xlu0 %v2341
        %v2343 = vpop.xlane.xlu0 %2342
        %v2344 = vsub.f32 %v2328, %v2334
        %v2345 = vsub.f32 %v2329, %v2337
        %v2346 = vsub.f32 %v2330, %v2340
        %v2347 = vsub.f32 %v2331, %v2343
        %v2348 = vmul.f32 %v2344, 1.442695
        %v2349 = vpow.pop %v2348
        %v2350 = vmul.f32 %v2345, 1.442695
        %v2351 = vpow.pop %v2350
        %v2352 = vmul.f32 %v2346, 1.442695
        %v2353 = vpow.pop %v2352
        %v2354 = vmul.f32 %v2347, 1.442695
        %v2355 = vpow.pop %v2354
        %v2356 = vsel %vm849, %v2349, 0.0
        %2357 = vadd.xlane.f32.xlu0 %v2356
        %v2358 = vpop.xlane.xlu0 %2357
        %v2359 = vsel %vm849, %v2351, 0.0
        %2360 = vadd.xlane.f32.xlu0 %v2359
        %v2361 = vpop.xlane.xlu0 %2360
        %v2362 = vsel %vm849, %v2353, 0.0
        %2363 = vadd.xlane.f32.xlu0 %v2362
        %v2364 = vpop.xlane.xlu0 %2363
        %v2365 = vsel %vm849, %v2355, 0.0
        %2366 = vadd.xlane.f32.xlu0 %v2365
        %v2367 = vpop.xlane.xlu0 %2366
        %v2368 = vrcp.pop %v2358
        %v2369 = vrcp.pop %v2361
        %v2370 = vrcp.pop %v2364
        %v2371 = vrcp.pop %v2367
        %v2372 = vmul.f32 %v2349, %v2368
        %v2373 = vmul.f32 %v2351, %v2369
        %v2374 = vmul.f32 %v2353, %v2370
        %v2375 = vmul.f32 %v2355, %v2371
        %v2377 = vsel %vm849, %v2372, 0
        %v2380 = vsel %vm849, %v2373, 0
        %2382 = vmatprep.subr.mxu0 0.0
        %2383 = vmatpush1.msra.mxu0 %v2160
        %2384 = vmatprep.subr.mxu0 0.0
        %2385 = vmatpush1.msra.mxu0 %v2165
        %2386 = vmatprep.subr.mxu0 0.0
        %2387 = vmatpush1.msra.mxu0 0.0
        %2388 = vmatprep.subr.mxu0 0.0
        %2389 = vmatpush1.msra.mxu0 0.0
        %2390 = vmatprep.subr.mxu0 0.0
        %2391 = vmatpush1.msra.mxu0 0.0
        %2392 = vmatprep.subr.mxu0 0.0
        %2393 = vmatpush1.msra.mxu0 0.0
        %2394 = vmatprep.subr.mxu0 0.0
        %2395 = vmatpush1.msra.mxu0 0.0
        %2396 = vmatprep.subr.mxu0 0.0
        %2397 = vmatpush1.msra.mxu0 0.0
        %2398 = vmatprep.subr.mxu0 0.0
        %2399 = vmatpush1.msra.mxu0 0.0
        %2400 = vmatprep.subr.mxu0 0.0
        %2401 = vmatpush1.msra.mxu0 0.0
        %2402 = vmatprep.subr.mxu0 0.0
        %2403 = vmatpush1.msra.mxu0 0.0
        %2404 = vmatprep.subr.mxu0 0.0
        %2405 = vmatpush1.msra.mxu0 0.0
        %2406 = vmatprep.subr.mxu0 0.0
        %2407 = vmatpush1.msra.mxu0 0.0
        %2408 = vmatprep.subr.mxu0 0.0
        %2409 = vmatpush1.msra.mxu0 0.0
        %2410 = vmatprep.subr.mxu0 0.0
        %2411 = vmatpush1.msra.mxu0 0.0
        %2412 = vmatprep.subr.mxu0 0.0
        %2413 = vmatpush1.msra.mxu0 0.0
        %2414 = vmatprep.subr.mxu0 0.0
        %2415 = vmatpush1.msra.mxu0 0.0
        %2416 = vmatprep.subr.mxu0 0.0
        %2417 = vmatpush1.msra.mxu0 0.0
        %2418 = vmatprep.subr.mxu0 0.0
        %2419 = vmatpush1.msra.mxu0 0.0
        %2420 = vmatprep.subr.mxu0 0.0
        %2421 = vmatpush1.msra.mxu0 0.0
        %2422 = vmatprep.subr.mxu0 0.0
        %2423 = vmatpush1.msra.mxu0 0.0
        %2424 = vmatprep.subr.mxu0 0.0
        %2425 = vmatpush1.msra.mxu0 0.0
        %2426 = vmatprep.subr.mxu0 0.0
        %2427 = vmatpush1.msra.mxu0 0.0
        %2428 = vmatprep.subr.mxu0 0.0
        %2429 = vmatpush1.msra.mxu0 0.0
        %2430 = vmatprep.subr.mxu0 0.0
        %2431 = vmatpush1.msra.mxu0 0.0
        %2432 = vmatprep.subr.mxu0 0.0
        %2433 = vmatpush1.msra.mxu0 0.0
        %2434 = vmatprep.subr.mxu0 0.0
        %2435 = vmatpush1.msra.mxu0 0.0
        %2436 = vmatprep.subr.mxu0 0.0
        %2437 = vmatpush1.msra.mxu0 0.0
        %2438 = vmatprep.subr.mxu0 0.0
        %2439 = vmatpush1.msra.mxu0 0.0
        %2440 = vmatprep.subr.mxu0 0.0
        %2441 = vmatpush1.msra.mxu0 0.0
        %2442 = vmatprep.subr.mxu0 0.0
        %2443 = vmatpush1.msra.mxu0 0.0
        %2444 = vmatprep.subr.mxu0 0.0
        %2445 = vmatpush1.msra.mxu0 0.0
        %2446 = vmatprep.mubr.f32.mxu0 0.0
        %2447 = vmatmul.mubr.f32.gmra.mrb[0].mxu0 %v2377
        %v2448 = vpop.f32.mrb[0].mxu0
        %v2449 = vadd.f32 0.0, %v2448
        %v2450 = vpop.f32.mrb[0].mxu0
        %2451 = vmatprep.mubr.f32.mxu0 0.0
        %2452 = vmatmul.mubr.f32.gmra.mrb[0].mxu0 %v2380
        %v2453 = vpop.f32.mrb[0].mxu0
        %v2454 = vadd.f32 0.0, %v2453
        %v2455 = vpop.f32.mrb[0].mxu0
        %2456 = vdwg.mxu0
        %v2458 = vsel %vm849, %v2374, 0
        %v2461 = vsel %vm849, %v2375, 0
        %2463 = vmatprep.subr.mxu0 0.0
        %2464 = vmatpush1.msra.mxu0 %v2170
        %2465 = vmatprep.subr.mxu0 0.0
        %2466 = vmatpush1.msra.mxu0 %v2175
        %2467 = vmatprep.subr.mxu0 0.0
        %2468 = vmatpush1.msra.mxu0 0.0
        %2469 = vmatprep.subr.mxu0 0.0
        %2470 = vmatpush1.msra.mxu0 0.0
        %2471 = vmatprep.subr.mxu0 0.0
        %2472 = vmatpush1.msra.mxu0 0.0
        %2473 = vmatprep.subr.mxu0 0.0
        %2474 = vmatpush1.msra.mxu0 0.0
        %2475 = vmatprep.subr.mxu0 0.0
        %2476 = vmatpush1.msra.mxu0 0.0
        %2477 = vmatprep.subr.mxu0 0.0
        %2478 = vmatpush1.msra.mxu0 0.0
        %2479 = vmatprep.subr.mxu0 0.0
        %2480 = vmatpush1.msra.mxu0 0.0
        %2481 = vmatprep.subr.mxu0 0.0
        %2482 = vmatpush1.msra.mxu0 0.0
        %2483 = vmatprep.subr.mxu0 0.0
        %2484 = vmatpush1.msra.mxu0 0.0
        %2485 = vmatprep.subr.mxu0 0.0
        %2486 = vmatpush1.msra.mxu0 0.0
        %2487 = vmatprep.subr.mxu0 0.0
        %2488 = vmatpush1.msra.mxu0 0.0
        %2489 = vmatprep.subr.mxu0 0.0
        %2490 = vmatpush1.msra.mxu0 0.0
        %2491 = vmatprep.subr.mxu0 0.0
        %2492 = vmatpush1.msra.mxu0 0.0
        %2493 = vmatprep.subr.mxu0 0.0
        %2494 = vmatpush1.msra.mxu0 0.0
        %2495 = vmatprep.subr.mxu0 0.0
        %2496 = vmatpush1.msra.mxu0 0.0
        %2497 = vmatprep.subr.mxu0 0.0
        %2498 = vmatpush1.msra.mxu0 0.0
        %2499 = vmatprep.subr.mxu0 0.0
        %2500 = vmatpush1.msra.mxu0 0.0
        %2501 = vmatprep.subr.mxu0 0.0
        %2502 = vmatpush1.msra.mxu0 0.0
        %2503 = vmatprep.subr.mxu0 0.0
        %2504 = vmatpush1.msra.mxu0 0.0
        %2505 = vmatprep.subr.mxu0 0.0
        %2506 = vmatpush1.msra.mxu0 0.0
        %2507 = vmatprep.subr.mxu0 0.0
        %2508 = vmatpush1.msra.mxu0 0.0
        %2509 = vmatprep.subr.mxu0 0.0
        %2510 = vmatpush1.msra.mxu0 0.0
        %2511 = vmatprep.subr.mxu0 0.0
        %2512 = vmatpush1.msra.mxu0 0.0
        %2513 = vmatprep.subr.mxu0 0.0
        %2514 = vmatpush1.msra.mxu0 0.0
        %2515 = vmatprep.subr.mxu0 0.0
        %2516 = vmatpush1.msra.mxu0 0.0
        %2517 = vmatprep.subr.mxu0 0.0
        %2518 = vmatpush1.msra.mxu0 0.0
        %2519 = vmatprep.subr.mxu0 0.0
        %2520 = vmatpush1.msra.mxu0 0.0
        %2521 = vmatprep.subr.mxu0 0.0
        %2522 = vmatpush1.msra.mxu0 0.0
        %2523 = vmatprep.subr.mxu0 0.0
        %2524 = vmatpush1.msra.mxu0 0.0
        %2525 = vmatprep.subr.mxu0 0.0
        %2526 = vmatpush1.msra.mxu0 0.0
        %2527 = vmatprep.mubr.f32.mxu0 0.0
        %2528 = vmatmul.mubr.f32.gmra.mrb[0].mxu0 %v2458
        %v2529 = vpop.f32.mrb[0].mxu0
        %v2530 = vadd.f32 0.0, %v2529
        %v2531 = vpop.f32.mrb[0].mxu0
        %2532 = vmatprep.mubr.f32.mxu0 0.0
        %2533 = vmatmul.mubr.f32.gmra.mrb[0].mxu0 %v2461
        %v2534 = vpop.f32.mrb[0].mxu0
        %v2535 = vadd.f32 0.0, %v2534
        %v2536 = vpop.f32.mrb[0].mxu0
        %2537 = vdwg.mxu0
        %s2538 = scalar_lea.vmem [#allocation4], 128
        %v2539 = vld [vmem:[%s2538] sm:$0xff]
        %v2540 = vld [vmem:[%s2538 + $0x8] sm:$0xff]
        %v2541 = vld [vmem:[%s2538 + $0x10] sm:$0xff]
        %v2542 = vld [vmem:[%s2538 + $0x18] sm:$0xff]
        %v2543 = vld [vmem:[%s2538 + $0x20] sm:$0xff]
        %v2544 = vld [vmem:[%s2538 + $0x28] sm:$0xff]
        %v2545 = vld [vmem:[%s2538 + $0x30] sm:$0xff]
        %v2546 = vld [vmem:[%s2538 + $0x38] sm:$0xff]
        %v2547 = vld [vmem:[%s2538 + $0x40] sm:$0xff]
        %v2548 = vld [vmem:[%s2538 + $0x48] sm:$0xff]
        %v2549 = vld [vmem:[%s2538 + $0x50] sm:$0xff]
        %v2550 = vld [vmem:[%s2538 + $0x58] sm:$0xff]
        %v2551 = vld [vmem:[%s2538 + $0x60] sm:$0xff]
        %v2552 = vld [vmem:[%s2538 + $0x68] sm:$0xff]
        %v2553 = vld [vmem:[%s2538 + $0x70] sm:$0xff]
        %v2554 = vld [vmem:[%s2538 + $0x78] sm:$0xff]
        %v2555 = vlaneseq
        %v2556 = vshrl.u32 %v2555, 7
        %v2557 = vsub.s32 0, %v2556
        %v2558 = vrot.slane %v1936, %v2557
        %2559 = vmatprep.subr.mxu0 0.0
        %2560 = vmatpush1.msra.mxu0 %v2539
        %2561 = vmatprep.subr.mxu0 0.0
        %2562 = vmatpush1.msra.mxu0 %v2540
        %2563 = vmatprep.subr.mxu0 0.0
        %2564 = vmatpush1.msra.mxu0 %v2541
        %2565 = vmatprep.subr.mxu0 0.0
        %2566 = vmatpush1.msra.mxu0 %v2542
        %2567 = vmatprep.subr.mxu0 0.0
        %2568 = vmatpush1.msra.mxu0 %v2543
        %2569 = vmatprep.subr.mxu0 0.0
        %2570 = vmatpush1.msra.mxu0 %v2544
        %2571 = vmatprep.subr.mxu0 0.0
        %2572 = vmatpush1.msra.mxu0 %v2545
        %2573 = vmatprep.subr.mxu0 0.0
        %2574 = vmatpush1.msra.mxu0 %v2546
        %2575 = vmatprep.subr.mxu0 0.0
        %2576 = vmatpush1.msra.mxu0 %v2547
        %2577 = vmatprep.subr.mxu0 0.0
        %2578 = vmatpush1.msra.mxu0 %v2548
        %2579 = vmatprep.subr.mxu0 0.0
        %2580 = vmatpush1.msra.mxu0 %v2549
        %2581 = vmatprep.subr.mxu0 0.0
        %2582 = vmatpush1.msra.mxu0 %v2550
        %2583 = vmatprep.subr.mxu0 0.0
        %2584 = vmatpush1.msra.mxu0 %v2551
        %2585 = vmatprep.subr.mxu0 0.0
        %2586 = vmatpush1.msra.mxu0 %v2552
        %2587 = vmatprep.subr.mxu0 0.0
        %2588 = vmatpush1.msra.mxu0 %v2553
        %2589 = vmatprep.subr.mxu0 0.0
        %2590 = vmatpush1.msra.mxu0 %v2554
        %2591 = vmatprep.subr.mxu0 0.0
        %2592 = vmatpush1.msra.mxu0 0.0
        %2593 = vmatprep.subr.mxu0 0.0
        %2594 = vmatpush1.msra.mxu0 0.0
        %2595 = vmatprep.subr.mxu0 0.0
        %2596 = vmatpush1.msra.mxu0 0.0
        %2597 = vmatprep.subr.mxu0 0.0
        %2598 = vmatpush1.msra.mxu0 0.0
        %2599 = vmatprep.subr.mxu0 0.0
        %2600 = vmatpush1.msra.mxu0 0.0
        %2601 = vmatprep.subr.mxu0 0.0
        %2602 = vmatpush1.msra.mxu0 0.0
        %2603 = vmatprep.subr.mxu0 0.0
        %2604 = vmatpush1.msra.mxu0 0.0
        %2605 = vmatprep.subr.mxu0 0.0
        %2606 = vmatpush1.msra.mxu0 0.0
        %2607 = vmatprep.subr.mxu0 0.0
        %2608 = vmatpush1.msra.mxu0 0.0
        %2609 = vmatprep.subr.mxu0 0.0
        %2610 = vmatpush1.msra.mxu0 0.0
        %2611 = vmatprep.subr.mxu0 0.0
        %2612 = vmatpush1.msra.mxu0 0.0
        %2613 = vmatprep.subr.mxu0 0.0
        %2614 = vmatpush1.msra.mxu0 0.0
        %2615 = vmatprep.subr.mxu0 0.0
        %2616 = vmatpush1.msra.mxu0 0.0
        %2617 = vmatprep.subr.mxu0 0.0
        %2618 = vmatpush1.msra.mxu0 0.0
        %2619 = vmatprep.subr.mxu0 0.0
        %2620 = vmatpush1.msra.mxu0 0.0
        %2621 = vmatprep.subr.mxu0 0.0
        %2622 = vmatpush1.msra.mxu0 0.0
        %2623 = vmatprep.mubr.f32.mxu0 0.0
        %2624 = vmatmul.mubr.f32.gmra.mrb[0].mxu0 %v2449
        %v2625 = vpop.f32.mrb[0].mxu0
        %v2626 = vadd.f32 %v2558, %v2625
        %v2627 = vpop.f32.mrb[0].mxu0
        %2628 = vmatprep.mubr.f32.mxu0 0.0
        %2629 = vmatmul.mubr.f32.gmra.mrb[0].mxu0 %v2454
        %v2630 = vpop.f32.mrb[0].mxu0
        %v2631 = vadd.f32 %v2558, %v2630
        %v2632 = vpop.f32.mrb[0].mxu0
        %2633 = vmatprep.mubr.f32.mxu0 0.0
        %2634 = vmatmul.mubr.f32.gmra.mrb[0].mxu0 %v2530
        %v2635 = vpop.f32.mrb[0].mxu0
        %v2636 = vadd.f32 %v2558, %v2635
        %v2637 = vpop.f32.mrb[0].mxu0
        %2638 = vmatprep.mubr.f32.mxu0 0.0
        %2639 = vmatmul.mubr.f32.gmra.mrb[0].mxu0 %v2535
        %v2640 = vpop.f32.mrb[0].mxu0
        %v2641 = vadd.f32 %v2558, %v2640
        %v2642 = vpop.f32.mrb[0].mxu0
        %2643 = vdwg.mxu0
        %v2644 = vadd.f32 %v1931, %v2626
        %v2645 = vadd.f32 %v1932, %v2631
        %v2646 = vadd.f32 %v1933, %v2636
        %v2647 = vadd.f32 %v1934, %v2641
        %2648 = vadd.xlane.f32.xlu0 %v2644
        %v2649 = vpop.xlane.xlu0 %2648
        %2650 = vadd.xlane.f32.xlu0 %v2645
        %v2651 = vpop.xlane.xlu0 %2650
        %2652 = vadd.xlane.f32.xlu0 %v2646
        %v2653 = vpop.xlane.xlu0 %2652
        %2654 = vadd.xlane.f32.xlu0 %v2647
        %v2655 = vpop.xlane.xlu0 %2654
        %v2656 = vmul.f32 %v2649, %v402
        %v2657 = vmul.f32 %v2651, %v402
        %v2658 = vmul.f32 %v2653, %v402
        %v2659 = vmul.f32 %v2655, %v402
        %v2660 = vsub.f32 %v2644, %v2656
        %v2661 = vsub.f32 %v2645, %v2657
        %v2662 = vsub.f32 %v2646, %v2658
        %v2663 = vsub.f32 %v2647, %v2659
        %v2664 = vmul.f32 %v2660, %v2660
        %v2665 = vmul.f32 %v2661, %v2661
        %v2666 = vmul.f32 %v2662, %v2662
        %v2667 = vmul.f32 %v2663, %v2663
        %2668 = vadd.xlane.f32.xlu0 %v2664
        %v2669 = vpop.xlane.xlu0 %2668
        %2670 = vadd.xlane.f32.xlu0 %v2665
        %v2671 = vpop.xlane.xlu0 %2670
        %2672 = vadd.xlane.f32.xlu0 %v2666
        %v2673 = vpop.xlane.xlu0 %2672
        %2674 = vadd.xlane.f32.xlu0 %v2667
        %v2675 = vpop.xlane.xlu0 %2674
        %v2676 = vmul.f32 %v2669, %v402
        %v2677 = vmul.f32 %v2671, %v402
        %v2678 = vmul.f32 %v2673, %v402
        %v2679 = vmul.f32 %v2675, %v402
        %v2680 = vadd.f32 %v2676, 1e-12
        %v2681 = vadd.f32 %v2677, 1e-12
        %v2682 = vadd.f32 %v2678, 1e-12
        %v2683 = vadd.f32 %v2679, 1e-12
        %v2684 = vrsqrt.pop %v2680
        %v2685 = vrsqrt.pop %v2681
        %v2686 = vrsqrt.pop %v2682
        %v2687 = vrsqrt.pop %v2683
        %v2688 = vmul.f32 %v2660, %v2684
        %v2689 = vmul.f32 %v2661, %v2685
        %v2690 = vmul.f32 %v2662, %v2686
        %v2691 = vmul.f32 %v2663, %v2687
        %v2692 = vlaneseq
        %v2693 = vshrl.u32 %v2692, 7
        %v2694 = vsub.s32 1, %v2693
        %v2695 = vrot.slane %v1936, %v2694
        %v2696 = vmul.f32 %v2688, %v2695
        %v2697 = vmul.f32 %v2689, %v2695
        %v2698 = vmul.f32 %v2690, %v2695
        %v2699 = vmul.f32 %v2691, %v2695
        %v2700 = vlaneseq
        %v2701 = vshrl.u32 %v2700, 7
        %v2702 = vsub.s32 2, %v2701
        %v2703 = vrot.slane %v1936, %v2702
        %v2704 = vadd.f32 %v2696, %v2703
        %v2705 = vadd.f32 %v2697, %v2703
        %v2706 = vadd.f32 %v2698, %v2703
        %v2707 = vadd.f32 %v2699, %v2703
        %s2708 = scalar_lea.vmem [#allocation6], 512
        %v2709 = vld [vmem:[%s2708] sm:$0xff]
        %v2710 = vld [vmem:[%s2708 + $0x8] sm:$0xff]
        %v2711 = vld [vmem:[%s2708 + $0x10] sm:$0xff]
        %v2712 = vld [vmem:[%s2708 + $0x18] sm:$0xff]
        %v2713 = vld [vmem:[%s2708 + $0x20] sm:$0xff]
        %v2714 = vld [vmem:[%s2708 + $0x28] sm:$0xff]
        %v2715 = vld [vmem:[%s2708 + $0x30] sm:$0xff]
        %v2716 = vld [vmem:[%s2708 + $0x38] sm:$0xff]
        %v2717 = vld [vmem:[%s2708 + $0x40] sm:$0xff]
        %v2718 = vld [vmem:[%s2708 + $0x48] sm:$0xff]
        %v2719 = vld [vmem:[%s2708 + $0x50] sm:$0xff]
        %v2720 = vld [vmem:[%s2708 + $0x58] sm:$0xff]
        %v2721 = vld [vmem:[%s2708 + $0x60] sm:$0xff]
        %v2722 = vld [vmem:[%s2708 + $0x68] sm:$0xff]
        %v2723 = vld [vmem:[%s2708 + $0x70] sm:$0xff]
        %v2724 = vld [vmem:[%s2708 + $0x78] sm:$0xff]
        %v2725 = vld [vmem:[%s2708 + $0x80] sm:$0xff]
        %v2726 = vld [vmem:[%s2708 + $0x88] sm:$0xff]
        %v2727 = vld [vmem:[%s2708 + $0x90] sm:$0xff]
        %v2728 = vld [vmem:[%s2708 + $0x98] sm:$0xff]
        %v2729 = vld [vmem:[%s2708 + $0xa0] sm:$0xff]
        %v2730 = vld [vmem:[%s2708 + $0xa8] sm:$0xff]
        %v2731 = vld [vmem:[%s2708 + $0xb0] sm:$0xff]
        %v2732 = vld [vmem:[%s2708 + $0xb8] sm:$0xff]
        %v2733 = vld [vmem:[%s2708 + $0xc0] sm:$0xff]
        %v2734 = vld [vmem:[%s2708 + $0xc8] sm:$0xff]
        %v2735 = vld [vmem:[%s2708 + $0xd0] sm:$0xff]
        %v2736 = vld [vmem:[%s2708 + $0xd8] sm:$0xff]
        %v2737 = vld [vmem:[%s2708 + $0xe0] sm:$0xff]
        %v2738 = vld [vmem:[%s2708 + $0xe8] sm:$0xff]
        %v2739 = vld [vmem:[%s2708 + $0xf0] sm:$0xff]
        %v2740 = vld [vmem:[%s2708 + $0xf8] sm:$0xff]
        %v2741 = vld [vmem:[%s2708 + $0x100] sm:$0xff]
        %v2742 = vld [vmem:[%s2708 + $0x108] sm:$0xff]
        %v2743 = vld [vmem:[%s2708 + $0x110] sm:$0xff]
        %v2744 = vld [vmem:[%s2708 + $0x118] sm:$0xff]
        %v2745 = vld [vmem:[%s2708 + $0x120] sm:$0xff]
        %v2746 = vld [vmem:[%s2708 + $0x128] sm:$0xff]
        %v2747 = vld [vmem:[%s2708 + $0x130] sm:$0xff]
        %v2748 = vld [vmem:[%s2708 + $0x138] sm:$0xff]
        %v2749 = vld [vmem:[%s2708 + $0x140] sm:$0xff]
        %v2750 = vld [vmem:[%s2708 + $0x148] sm:$0xff]
        %v2751 = vld [vmem:[%s2708 + $0x150] sm:$0xff]
        %v2752 = vld [vmem:[%s2708 + $0x158] sm:$0xff]
        %v2753 = vld [vmem:[%s2708 + $0x160] sm:$0xff]
        %v2754 = vld [vmem:[%s2708 + $0x168] sm:$0xff]
        %v2755 = vld [vmem:[%s2708 + $0x170] sm:$0xff]
        %v2756 = vld [vmem:[%s2708 + $0x178] sm:$0xff]
        %v2757 = vld [vmem:[%s2708 + $0x180] sm:$0xff]
        %v2758 = vld [vmem:[%s2708 + $0x188] sm:$0xff]
        %v2759 = vld [vmem:[%s2708 + $0x190] sm:$0xff]
        %v2760 = vld [vmem:[%s2708 + $0x198] sm:$0xff]
        %v2761 = vld [vmem:[%s2708 + $0x1a0] sm:$0xff]
        %v2762 = vld [vmem:[%s2708 + $0x1a8] sm:$0xff]
        %v2763 = vld [vmem:[%s2708 + $0x1b0] sm:$0xff]
        %v2764 = vld [vmem:[%s2708 + $0x1b8] sm:$0xff]
        %v2765 = vld [vmem:[%s2708 + $0x1c0] sm:$0xff]
        %v2766 = vld [vmem:[%s2708 + $0x1c8] sm:$0xff]
        %v2767 = vld [vmem:[%s2708 + $0x1d0] sm:$0xff]
        %v2768 = vld [vmem:[%s2708 + $0x1d8] sm:$0xff]
        %v2769 = vld [vmem:[%s2708 + $0x1e0] sm:$0xff]
        %v2770 = vld [vmem:[%s2708 + $0x1e8] sm:$0xff]
        %v2771 = vld [vmem:[%s2708 + $0x1f0] sm:$0xff]
        %v2772 = vld [vmem:[%s2708 + $0x1f8] sm:$0xff]
        %s2773 = scalar_lea.vmem %s6, 4
        %v2774 = vld [vmem:[%s2773] sm:$0xf]
        %v2776 = vlaneseq
        %v2777 = vshrl.u32 %v2776, 7
        %v2778 = vsub.s32 0, %v2777
        %v2779 = vrot.slane %v2774, %v2778
        %v2780 = vlaneseq
        %v2781 = vshrl.u32 %v2780, 7
        %v2782 = vsub.s32 1, %v2781
        %v2783 = vrot.slane %v2774, %v2782
        %v2784 = vlaneseq
        %v2785 = vshrl.u32 %v2784, 7
        %v2786 = vsub.s32 2, %v2785
        %v2787 = vrot.slane %v2774, %v2786
        %v2788 = vlaneseq
        %v2789 = vshrl.u32 %v2788, 7
        %v2790 = vsub.s32 3, %v2789
        %v2791 = vrot.slane %v2774, %v2790
        %2796 = vmatprep.subr.mxu0 %v2710
        %2797 = vmatpush1.msra.mxu0 %v2709
        %2798 = vmatprep.subr.mxu0 %v2714
        %2799 = vmatpush1.msra.mxu0 %v2713
        %2800 = vmatprep.subr.mxu0 %v2718
        %2801 = vmatpush1.msra.mxu0 %v2717
        %2802 = vmatprep.subr.mxu0 %v2722
        %2803 = vmatpush1.msra.mxu0 %v2721
        %2804 = vmatprep.subr.mxu0 %v2726
        %2805 = vmatpush1.msra.mxu0 %v2725
        %2806 = vmatprep.subr.mxu0 %v2730
        %2807 = vmatpush1.msra.mxu0 %v2729
        %2808 = vmatprep.subr.mxu0 %v2734
        %2809 = vmatpush1.msra.mxu0 %v2733
        %2810 = vmatprep.subr.mxu0 %v2738
        %2811 = vmatpush1.msra.mxu0 %v2737
        %2812 = vmatprep.subr.mxu0 %v2742
        %2813 = vmatpush1.msra.mxu0 %v2741
        %2814 = vmatprep.subr.mxu0 %v2746
        %2815 = vmatpush1.msra.mxu0 %v2745
        %2816 = vmatprep.subr.mxu0 %v2750
        %2817 = vmatpush1.msra.mxu0 %v2749
        %2818 = vmatprep.subr.mxu0 %v2754
        %2819 = vmatpush1.msra.mxu0 %v2753
        %2820 = vmatprep.subr.mxu0 %v2758
        %2821 = vmatpush1.msra.mxu0 %v2757
        %2822 = vmatprep.subr.mxu0 %v2762
        %2823 = vmatpush1.msra.mxu0 %v2761
        %2824 = vmatprep.subr.mxu0 %v2766
        %2825 = vmatpush1.msra.mxu0 %v2765
        %2826 = vmatprep.subr.mxu0 %v2770
        %2827 = vmatpush1.msra.mxu0 %v2769
        %2828 = vmatprep.subr.mxu0 0.0
        %2829 = vmatpush1.msra.mxu0 0.0
        %2830 = vmatprep.subr.mxu0 0.0
        %2831 = vmatpush1.msra.mxu0 0.0
        %2832 = vmatprep.subr.mxu0 0.0
        %2833 = vmatpush1.msra.mxu0 0.0
        %2834 = vmatprep.subr.mxu0 0.0
        %2835 = vmatpush1.msra.mxu0 0.0
        %2836 = vmatprep.subr.mxu0 0.0
        %2837 = vmatpush1.msra.mxu0 0.0
        %2838 = vmatprep.subr.mxu0 0.0
        %2839 = vmatpush1.msra.mxu0 0.0
        %2840 = vmatprep.subr.mxu0 0.0
        %2841 = vmatpush1.msra.mxu0 0.0
        %2842 = vmatprep.subr.mxu0 0.0
        %2843 = vmatpush1.msra.mxu0 0.0
        %2844 = vmatprep.subr.mxu0 0.0
        %2845 = vmatpush1.msra.mxu0 0.0
        %2846 = vmatprep.subr.mxu0 0.0
        %2847 = vmatpush1.msra.mxu0 0.0
        %2848 = vmatprep.subr.mxu0 0.0
        %2849 = vmatpush1.msra.mxu0 0.0
        %2850 = vmatprep.subr.mxu0 0.0
        %2851 = vmatpush1.msra.mxu0 0.0
        %2852 = vmatprep.subr.mxu0 0.0
        %2853 = vmatpush1.msra.mxu0 0.0
        %2854 = vmatprep.subr.mxu0 0.0
        %2855 = vmatpush1.msra.mxu0 0.0
        %2856 = vmatprep.subr.mxu0 0.0
        %2857 = vmatpush1.msra.mxu0 0.0
        %2858 = vmatprep.subr.mxu0 0.0
        %2859 = vmatpush1.msra.mxu0 0.0
        %2860 = vmatprep.mubr.f32.mxu0 0.0
        %2861 = vmatmul.mubr.f32.gmra.mrb[0].mxu0 %v2704
        %v2862 = vpop.f32.mrb[0].mxu0
        %v2863 = vadd.f32 %v2779, %v2862
        %v2864 = vpop.f32.mrb[0].mxu0
        %v2865 = vadd.f32 %v2783, %v2864
        %2866 = vmatprep.mubr.f32.mxu0 0.0
        %2867 = vmatmul.mubr.f32.gmra.mrb[0].mxu0 %v2705
        %v2868 = vpop.f32.mrb[0].mxu0
        %v2869 = vadd.f32 %v2779, %v2868
        %v2870 = vpop.f32.mrb[0].mxu0
        %v2871 = vadd.f32 %v2783, %v2870
        %2872 = vmatprep.mubr.f32.mxu0 0.0
        %2873 = vmatmul.mubr.f32.gmra.mrb[0].mxu0 %v2706
        %v2874 = vpop.f32.mrb[0].mxu0
        %v2875 = vadd.f32 %v2779, %v2874
        %v2876 = vpop.f32.mrb[0].mxu0
        %v2877 = vadd.f32 %v2783, %v2876
        %2878 = vmatprep.mubr.f32.mxu0 0.0
        %2879 = vmatmul.mubr.f32.gmra.mrb[0].mxu0 %v2707
        %v2880 = vpop.f32.mrb[0].mxu0
        %v2881 = vadd.f32 %v2779, %v2880
        %v2882 = vpop.f32.mrb[0].mxu0
        %v2883 = vadd.f32 %v2783, %v2882
        %2884 = vdwg.mxu0
        %2885 = vmatprep.subr.mxu0 %v2712
        %2886 = vmatpush1.msra.mxu0 %v2711
        %2887 = vmatprep.subr.mxu0 %v2716
        %2888 = vmatpush1.msra.mxu0 %v2715
        %2889 = vmatprep.subr.mxu0 %v2720
        %2890 = vmatpush1.msra.mxu0 %v2719
        %2891 = vmatprep.subr.mxu0 %v2724
        %2892 = vmatpush1.msra.mxu0 %v2723
        %2893 = vmatprep.subr.mxu0 %v2728
        %2894 = vmatpush1.msra.mxu0 %v2727
        %2895 = vmatprep.subr.mxu0 %v2732
        %2896 = vmatpush1.msra.mxu0 %v2731
        %2897 = vmatprep.subr.mxu0 %v2736
        %2898 = vmatpush1.msra.mxu0 %v2735
        %2899 = vmatprep.subr.mxu0 %v2740
        %2900 = vmatpush1.msra.mxu0 %v2739
        %2901 = vmatprep.subr.mxu0 %v2744
        %2902 = vmatpush1.msra.mxu0 %v2743
        %2903 = vmatprep.subr.mxu0 %v2748
        %2904 = vmatpush1.msra.mxu0 %v2747
        %2905 = vmatprep.subr.mxu0 %v2752
        %2906 = vmatpush1.msra.mxu0 %v2751
        %2907 = vmatprep.subr.mxu0 %v2756
        %2908 = vmatpush1.msra.mxu0 %v2755
        %2909 = vmatprep.subr.mxu0 %v2760
        %2910 = vmatpush1.msra.mxu0 %v2759
        %2911 = vmatprep.subr.mxu0 %v2764
        %2912 = vmatpush1.msra.mxu0 %v2763
        %2913 = vmatprep.subr.mxu0 %v2768
        %2914 = vmatpush1.msra.mxu0 %v2767
        %2915 = vmatprep.subr.mxu0 %v2772
        %2916 = vmatpush1.msra.mxu0 %v2771
        %2917 = vmatprep.subr.mxu0 0.0
        %2918 = vmatpush1.msra.mxu0 0.0
        %2919 = vmatprep.subr.mxu0 0.0
        %2920 = vmatpush1.msra.mxu0 0.0
        %2921 = vmatprep.subr.mxu0 0.0
        %2922 = vmatpush1.msra.mxu0 0.0
        %2923 = vmatprep.subr.mxu0 0.0
        %2924 = vmatpush1.msra.mxu0 0.0
        %2925 = vmatprep.subr.mxu0 0.0
        %2926 = vmatpush1.msra.mxu0 0.0
        %2927 = vmatprep.subr.mxu0 0.0
        %2928 = vmatpush1.msra.mxu0 0.0
        %2929 = vmatprep.subr.mxu0 0.0
        %2930 = vmatpush1.msra.mxu0 0.0
        %2931 = vmatprep.subr.mxu0 0.0
        %2932 = vmatpush1.msra.mxu0 0.0
        %2933 = vmatprep.subr.mxu0 0.0
        %2934 = vmatpush1.msra.mxu0 0.0
        %2935 = vmatprep.subr.mxu0 0.0
        %2936 = vmatpush1.msra.mxu0 0.0
        %2937 = vmatprep.subr.mxu0 0.0
        %2938 = vmatpush1.msra.mxu0 0.0
        %2939 = vmatprep.subr.mxu0 0.0
        %2940 = vmatpush1.msra.mxu0 0.0
        %2941 = vmatprep.subr.mxu0 0.0
        %2942 = vmatpush1.msra.mxu0 0.0
        %2943 = vmatprep.subr.mxu0 0.0
        %2944 = vmatpush1.msra.mxu0 0.0
        %2945 = vmatprep.subr.mxu0 0.0
        %2946 = vmatpush1.msra.mxu0 0.0
        %2947 = vmatprep.subr.mxu0 0.0
        %2948 = vmatpush1.msra.mxu0 0.0
        %2949 = vmatprep.mubr.f32.mxu0 0.0
        %2950 = vmatmul.mubr.f32.gmra.mrb[0].mxu0 %v2704
        %v2951 = vpop.f32.mrb[0].mxu0
        %v2952 = vadd.f32 %v2787, %v2951
        %v2953 = vpop.f32.mrb[0].mxu0
        %v2954 = vadd.f32 %v2791, %v2953
        %2955 = vmatprep.mubr.f32.mxu0 0.0
        %2956 = vmatmul.mubr.f32.gmra.mrb[0].mxu0 %v2705
        %v2957 = vpop.f32.mrb[0].mxu0
        %v2958 = vadd.f32 %v2787, %v2957
        %v2959 = vpop.f32.mrb[0].mxu0
        %v2960 = vadd.f32 %v2791, %v2959
        %2961 = vmatprep.mubr.f32.mxu0 0.0
        %2962 = vmatmul.mubr.f32.gmra.mrb[0].mxu0 %v2706
        %v2963 = vpop.f32.mrb[0].mxu0
        %v2964 = vadd.f32 %v2787, %v2963
        %v2965 = vpop.f32.mrb[0].mxu0
        %v2966 = vadd.f32 %v2791, %v2965
        %2967 = vmatprep.mubr.f32.mxu0 0.0
        %2968 = vmatmul.mubr.f32.gmra.mrb[0].mxu0 %v2707
        %v2969 = vpop.f32.mrb[0].mxu0
        %v2970 = vadd.f32 %v2787, %v2969
        %v2971 = vpop.f32.mrb[0].mxu0
        %v2972 = vadd.f32 %v2791, %v2971
        %2973 = vdwg.mxu0
        %v2974 = vmul.f32 %v2863, %v2863
        %v2975 = vmul.f32 %v2865, %v2865
        %v2976 = vmul.f32 %v2952, %v2952
        %v2977 = vmul.f32 %v2954, %v2954
        %v2978 = vmul.f32 %v2869, %v2869
        %v2979 = vmul.f32 %v2871, %v2871
        %v2980 = vmul.f32 %v2958, %v2958
        %v2981 = vmul.f32 %v2960, %v2960
        %v2982 = vmul.f32 %v2875, %v2875
        %v2983 = vmul.f32 %v2877, %v2877
        %v2984 = vmul.f32 %v2964, %v2964
        %v2985 = vmul.f32 %v2966, %v2966
        %v2986 = vmul.f32 %v2881, %v2881
        %v2987 = vmul.f32 %v2883, %v2883
        %v2988 = vmul.f32 %v2970, %v2970
        %v2989 = vmul.f32 %v2972, %v2972
        %v2990 = vmul.f32 %v2863, %v2974
        %v2991 = vmul.f32 %v2865, %v2975
        %v2992 = vmul.f32 %v2952, %v2976
        %v2993 = vmul.f32 %v2954, %v2977
        %v2994 = vmul.f32 %v2869, %v2978
        %v2995 = vmul.f32 %v2871, %v2979
        %v2996 = vmul.f32 %v2958, %v2980
        %v2997 = vmul.f32 %v2960, %v2981
        %v2998 = vmul.f32 %v2875, %v2982
        %v2999 = vmul.f32 %v2877, %v2983
        %v3000 = vmul.f32 %v2964, %v2984
        %v3001 = vmul.f32 %v2966, %v2985
        %v3002 = vmul.f32 %v2881, %v2986
        %v3003 = vmul.f32 %v2883, %v2987
        %v3004 = vmul.f32 %v2970, %v2988
        %v3005 = vmul.f32 %v2972, %v2989
        %v3006 = vmul.f32 %v2990, 0.044715
        %v3007 = vmul.f32 %v2991, 0.044715
        %v3008 = vmul.f32 %v2992, 0.044715
        %v3009 = vmul.f32 %v2993, 0.044715
        %v3010 = vmul.f32 %v2994, 0.044715
        %v3011 = vmul.f32 %v2995, 0.044715
        %v3012 = vmul.f32 %v2996, 0.044715
        %v3013 = vmul.f32 %v2997, 0.044715
        %v3014 = vmul.f32 %v2998, 0.044715
        %v3015 = vmul.f32 %v2999, 0.044715
        %v3016 = vmul.f32 %v3000, 0.044715
        %v3017 = vmul.f32 %v3001, 0.044715
        %v3018 = vmul.f32 %v3002, 0.044715
        %v3019 = vmul.f32 %v3003, 0.044715
        %v3020 = vmul.f32 %v3004, 0.044715
        %v3021 = vmul.f32 %v3005, 0.044715
        %v3022 = vadd.f32 %v2863, %v3006
        %v3023 = vadd.f32 %v2865, %v3007
        %v3024 = vadd.f32 %v2952, %v3008
        %v3025 = vadd.f32 %v2954, %v3009
        %v3026 = vadd.f32 %v2869, %v3010
        %v3027 = vadd.f32 %v2871, %v3011
        %v3028 = vadd.f32 %v2958, %v3012
        %v3029 = vadd.f32 %v2960, %v3013
        %v3030 = vadd.f32 %v2875, %v3014
        %v3031 = vadd.f32 %v2877, %v3015
        %v3032 = vadd.f32 %v2964, %v3016
        %v3033 = vadd.f32 %v2966, %v3017
        %v3034 = vadd.f32 %v2881, %v3018
        %v3035 = vadd.f32 %v2883, %v3019
        %v3036 = vadd.f32 %v2970, %v3020
        %v3037 = vadd.f32 %v2972, %v3021
        %v3038 = vmul.f32 %v3022, 0.7978846
        %v3039 = vmul.f32 %v3023, 0.7978846
        %v3040 = vmul.f32 %v3024, 0.7978846
        %v3041 = vmul.f32 %v3025, 0.7978846
        %v3042 = vmul.f32 %v3026, 0.7978846
        %v3043 = vmul.f32 %v3027, 0.7978846
        %v3044 = vmul.f32 %v3028, 0.7978846
        %v3045 = vmul.f32 %v3029, 0.7978846
        %v3046 = vmul.f32 %v3030, 0.7978846
        %v3047 = vmul.f32 %v3031, 0.7978846
        %v3048 = vmul.f32 %v3032, 0.7978846
        %v3049 = vmul.f32 %v3033, 0.7978846
        %v3050 = vmul.f32 %v3034, 0.7978846
        %v3051 = vmul.f32 %v3035, 0.7978846
        %v3052 = vmul.f32 %v3036, 0.7978846
        %v3053 = vmul.f32 %v3037, 0.7978846
        %v3054 = vtanh.pop %v3038
        %v3055 = vtanh.pop %v3039
        %v3056 = vtanh.pop %v3040
        %v3057 = vtanh.pop %v3041
        %v3058 = vtanh.pop %v3042
        %v3059 = vtanh.pop %v3043
        %v3060 = vtanh.pop %v3044
        %v3061 = vtanh.pop %v3045
        %v3062 = vtanh.pop %v3046
        %v3063 = vtanh.pop %v3047
        %v3064 = vtanh.pop %v3048
        %v3065 = vtanh.pop %v3049
        %v3066 = vtanh.pop %v3050
        %v3067 = vtanh.pop %v3051
        %v3068 = vtanh.pop %v3052
        %v3069 = vtanh.pop %v3053
        %v3070 = vadd.f32 %v3054, 1.0
        %v3071 = vadd.f32 %v3055, 1.0
        %v3072 = vadd.f32 %v3056, 1.0
        %v3073 = vadd.f32 %v3057, 1.0
        %v3074 = vadd.f32 %v3058, 1.0
        %v3075 = vadd.f32 %v3059, 1.0
        %v3076 = vadd.f32 %v3060, 1.0
        %v3077 = vadd.f32 %v3061, 1.0
        %v3078 = vadd.f32 %v3062, 1.0
        %v3079 = vadd.f32 %v3063, 1.0
        %v3080 = vadd.f32 %v3064, 1.0
        %v3081 = vadd.f32 %v3065, 1.0
        %v3082 = vadd.f32 %v3066, 1.0
        %v3083 = vadd.f32 %v3067, 1.0
        %v3084 = vadd.f32 %v3068, 1.0
        %v3085 = vadd.f32 %v3069, 1.0
        %v3086 = vmul.f32 %v3070, 0.5
        %v3087 = vmul.f32 %v3071, 0.5
        %v3088 = vmul.f32 %v3072, 0.5
        %v3089 = vmul.f32 %v3073, 0.5
        %v3090 = vmul.f32 %v3074, 0.5
        %v3091 = vmul.f32 %v3075, 0.5
        %v3092 = vmul.f32 %v3076, 0.5
        %v3093 = vmul.f32 %v3077, 0.5
        %v3094 = vmul.f32 %v3078, 0.5
        %v3095 = vmul.f32 %v3079, 0.5
        %v3096 = vmul.f32 %v3080, 0.5
        %v3097 = vmul.f32 %v3081, 0.5
        %v3098 = vmul.f32 %v3082, 0.5
        %v3099 = vmul.f32 %v3083, 0.5
        %v3100 = vmul.f32 %v3084, 0.5
        %v3101 = vmul.f32 %v3085, 0.5
        %v3102 = vmul.f32 %v2863, %v3086
        %v3103 = vmul.f32 %v2865, %v3087
        %v3104 = vmul.f32 %v2952, %v3088
        %v3105 = vmul.f32 %v2954, %v3089
        %v3106 = vmul.f32 %v2869, %v3090
        %v3107 = vmul.f32 %v2871, %v3091
        %v3108 = vmul.f32 %v2958, %v3092
        %v3109 = vmul.f32 %v2960, %v3093
        %v3110 = vmul.f32 %v2875, %v3094
        %v3111 = vmul.f32 %v2877, %v3095
        %v3112 = vmul.f32 %v2964, %v3096
        %v3113 = vmul.f32 %v2966, %v3097
        %v3114 = vmul.f32 %v2881, %v3098
        %v3115 = vmul.f32 %v2883, %v3099
        %v3116 = vmul.f32 %v2970, %v3100
        %v3117 = vmul.f32 %v2972, %v3101
        %s3118 = scalar_lea.vmem [#allocation7], 512
        %v3119 = vld [vmem:[%s3118] sm:$0xff]
        %v3120 = vld [vmem:[%s3118 + $0x8] sm:$0xff]
        %v3121 = vld [vmem:[%s3118 + $0x10] sm:$0xff]
        %v3122 = vld [vmem:[%s3118 + $0x18] sm:$0xff]
        %v3123 = vld [vmem:[%s3118 + $0x20] sm:$0xff]
        %v3124 = vld [vmem:[%s3118 + $0x28] sm:$0xff]
        %v3125 = vld [vmem:[%s3118 + $0x30] sm:$0xff]
        %v3126 = vld [vmem:[%s3118 + $0x38] sm:$0xff]
        %v3127 = vld [vmem:[%s3118 + $0x40] sm:$0xff]
        %v3128 = vld [vmem:[%s3118 + $0x48] sm:$0xff]
        %v3129 = vld [vmem:[%s3118 + $0x50] sm:$0xff]
        %v3130 = vld [vmem:[%s3118 + $0x58] sm:$0xff]
        %v3131 = vld [vmem:[%s3118 + $0x60] sm:$0xff]
        %v3132 = vld [vmem:[%s3118 + $0x68] sm:$0xff]
        %v3133 = vld [vmem:[%s3118 + $0x70] sm:$0xff]
        %v3134 = vld [vmem:[%s3118 + $0x78] sm:$0xff]
        %v3135 = vld [vmem:[%s3118 + $0x80] sm:$0xff]
        %v3136 = vld [vmem:[%s3118 + $0x88] sm:$0xff]
        %v3137 = vld [vmem:[%s3118 + $0x90] sm:$0xff]
        %v3138 = vld [vmem:[%s3118 + $0x98] sm:$0xff]
        %v3139 = vld [vmem:[%s3118 + $0xa0] sm:$0xff]
        %v3140 = vld [vmem:[%s3118 + $0xa8] sm:$0xff]
        %v3141 = vld [vmem:[%s3118 + $0xb0] sm:$0xff]
        %v3142 = vld [vmem:[%s3118 + $0xb8] sm:$0xff]
        %v3143 = vld [vmem:[%s3118 + $0xc0] sm:$0xff]
        %v3144 = vld [vmem:[%s3118 + $0xc8] sm:$0xff]
        %v3145 = vld [vmem:[%s3118 + $0xd0] sm:$0xff]
        %v3146 = vld [vmem:[%s3118 + $0xd8] sm:$0xff]
        %v3147 = vld [vmem:[%s3118 + $0xe0] sm:$0xff]
        %v3148 = vld [vmem:[%s3118 + $0xe8] sm:$0xff]
        %v3149 = vld [vmem:[%s3118 + $0xf0] sm:$0xff]
        %v3150 = vld [vmem:[%s3118 + $0xf8] sm:$0xff]
        %v3151 = vld [vmem:[%s3118 + $0x100] sm:$0xff]
        %v3152 = vld [vmem:[%s3118 + $0x108] sm:$0xff]
        %v3153 = vld [vmem:[%s3118 + $0x110] sm:$0xff]
        %v3154 = vld [vmem:[%s3118 + $0x118] sm:$0xff]
        %v3155 = vld [vmem:[%s3118 + $0x120] sm:$0xff]
        %v3156 = vld [vmem:[%s3118 + $0x128] sm:$0xff]
        %v3157 = vld [vmem:[%s3118 + $0x130] sm:$0xff]
        %v3158 = vld [vmem:[%s3118 + $0x138] sm:$0xff]
        %v3159 = vld [vmem:[%s3118 + $0x140] sm:$0xff]
        %v3160 = vld [vmem:[%s3118 + $0x148] sm:$0xff]
        %v3161 = vld [vmem:[%s3118 + $0x150] sm:$0xff]
        %v3162 = vld [vmem:[%s3118 + $0x158] sm:$0xff]
        %v3163 = vld [vmem:[%s3118 + $0x160] sm:$0xff]
        %v3164 = vld [vmem:[%s3118 + $0x168] sm:$0xff]
        %v3165 = vld [vmem:[%s3118 + $0x170] sm:$0xff]
        %v3166 = vld [vmem:[%s3118 + $0x178] sm:$0xff]
        %v3167 = vld [vmem:[%s3118 + $0x180] sm:$0xff]
        %v3168 = vld [vmem:[%s3118 + $0x188] sm:$0xff]
        %v3169 = vld [vmem:[%s3118 + $0x190] sm:$0xff]
        %v3170 = vld [vmem:[%s3118 + $0x198] sm:$0xff]
        %v3171 = vld [vmem:[%s3118 + $0x1a0] sm:$0xff]
        %v3172 = vld [vmem:[%s3118 + $0x1a8] sm:$0xff]
        %v3173 = vld [vmem:[%s3118 + $0x1b0] sm:$0xff]
        %v3174 = vld [vmem:[%s3118 + $0x1b8] sm:$0xff]
        %v3175 = vld [vmem:[%s3118 + $0x1c0] sm:$0xff]
        %v3176 = vld [vmem:[%s3118 + $0x1c8] sm:$0xff]
        %v3177 = vld [vmem:[%s3118 + $0x1d0] sm:$0xff]
        %v3178 = vld [vmem:[%s3118 + $0x1d8] sm:$0xff]
        %v3179 = vld [vmem:[%s3118 + $0x1e0] sm:$0xff]
        %v3180 = vld [vmem:[%s3118 + $0x1e8] sm:$0xff]
        %v3181 = vld [vmem:[%s3118 + $0x1f0] sm:$0xff]
        %v3182 = vld [vmem:[%s3118 + $0x1f8] sm:$0xff]
        %v3183 = vlaneseq
        %v3184 = vshrl.u32 %v3183, 7
        %v3185 = vsub.s32 3, %v3184
        %v3186 = vrot.slane %v1936, %v3185
        %3187 = vmatprep.subr.mxu0 0.0
        %3188 = vmatpush1.msra.mxu0 %v3119
        %3189 = vmatprep.subr.mxu0 0.0
        %3190 = vmatpush1.msra.mxu0 %v3120
        %3191 = vmatprep.subr.mxu0 0.0
        %3192 = vmatpush1.msra.mxu0 %v3121
        %3193 = vmatprep.subr.mxu0 0.0
        %3194 = vmatpush1.msra.mxu0 %v3122
        %3195 = vmatprep.subr.mxu0 0.0
        %3196 = vmatpush1.msra.mxu0 %v3123
        %3197 = vmatprep.subr.mxu0 0.0
        %3198 = vmatpush1.msra.mxu0 %v3124
        %3199 = vmatprep.subr.mxu0 0.0
        %3200 = vmatpush1.msra.mxu0 %v3125
        %3201 = vmatprep.subr.mxu0 0.0
        %3202 = vmatpush1.msra.mxu0 %v3126
        %3203 = vmatprep.subr.mxu0 0.0
        %3204 = vmatpush1.msra.mxu0 %v3127
        %3205 = vmatprep.subr.mxu0 0.0
        %3206 = vmatpush1.msra.mxu0 %v3128
        %3207 = vmatprep.subr.mxu0 0.0
        %3208 = vmatpush1.msra.mxu0 %v3129
        %3209 = vmatprep.subr.mxu0 0.0
        %3210 = vmatpush1.msra.mxu0 %v3130
        %3211 = vmatprep.subr.mxu0 0.0
        %3212 = vmatpush1.msra.mxu0 %v3131
        %3213 = vmatprep.subr.mxu0 0.0
        %3214 = vmatpush1.msra.mxu0 %v3132
        %3215 = vmatprep.subr.mxu0 0.0
        %3216 = vmatpush1.msra.mxu0 %v3133
        %3217 = vmatprep.subr.mxu0 0.0
        %3218 = vmatpush1.msra.mxu0 %v3134
        %3219 = vmatprep.subr.mxu0 0.0
        %3220 = vmatpush1.msra.mxu0 %v3135
        %3221 = vmatprep.subr.mxu0 0.0
        %3222 = vmatpush1.msra.mxu0 %v3136
        %3223 = vmatprep.subr.mxu0 0.0
        %3224 = vmatpush1.msra.mxu0 %v3137
        %3225 = vmatprep.subr.mxu0 0.0
        %3226 = vmatpush1.msra.mxu0 %v3138
        %3227 = vmatprep.subr.mxu0 0.0
        %3228 = vmatpush1.msra.mxu0 %v3139
        %3229 = vmatprep.subr.mxu0 0.0
        %3230 = vmatpush1.msra.mxu0 %v3140
        %3231 = vmatprep.subr.mxu0 0.0
        %3232 = vmatpush1.msra.mxu0 %v3141
        %3233 = vmatprep.subr.mxu0 0.0
        %3234 = vmatpush1.msra.mxu0 %v3142
        %3235 = vmatprep.subr.mxu0 0.0
        %3236 = vmatpush1.msra.mxu0 %v3143
        %3237 = vmatprep.subr.mxu0 0.0
        %3238 = vmatpush1.msra.mxu0 %v3144
        %3239 = vmatprep.subr.mxu0 0.0
        %3240 = vmatpush1.msra.mxu0 %v3145
        %3241 = vmatprep.subr.mxu0 0.0
        %3242 = vmatpush1.msra.mxu0 %v3146
        %3243 = vmatprep.subr.mxu0 0.0
        %3244 = vmatpush1.msra.mxu0 %v3147
        %3245 = vmatprep.subr.mxu0 0.0
        %3246 = vmatpush1.msra.mxu0 %v3148
        %3247 = vmatprep.subr.mxu0 0.0
        %3248 = vmatpush1.msra.mxu0 %v3149
        %3249 = vmatprep.subr.mxu0 0.0
        %3250 = vmatpush1.msra.mxu0 %v3150
        %3251 = vmatprep.mubr.f32.mxu0 %v3103
        %3252 = vmatmul.mubr.f32.gmra.mrb[0].mxu0 %v3102
        %v3253 = vpop.f32.mrb[0].mxu0
        %v3254 = vadd.f32 %v3186, %v3253
        %v3255 = vpop.f32.mrb[0].mxu0
        %3256 = vmatprep.mubr.f32.mxu0 %v3107
        %3257 = vmatmul.mubr.f32.gmra.mrb[0].mxu0 %v3106
        %v3258 = vpop.f32.mrb[0].mxu0
        %v3259 = vadd.f32 %v3186, %v3258
        %v3260 = vpop.f32.mrb[0].mxu0
        %3261 = vmatprep.mubr.f32.mxu0 %v3111
        %3262 = vmatmul.mubr.f32.gmra.mrb[0].mxu0 %v3110
        %v3263 = vpop.f32.mrb[0].mxu0
        %v3264 = vadd.f32 %v3186, %v3263
        %v3265 = vpop.f32.mrb[0].mxu0
        %3266 = vmatprep.mubr.f32.mxu0 %v3115
        %3267 = vmatmul.mubr.f32.gmra.mrb[0].mxu0 %v3114
        %v3268 = vpop.f32.mrb[0].mxu0
        %v3269 = vadd.f32 %v3186, %v3268
        %v3270 = vpop.f32.mrb[0].mxu0
        %3271 = vdwg.mxu0
        %3272 = vmatprep.subr.mxu0 0.0
        %3273 = vmatpush1.msra.mxu0 %v3151
        %3274 = vmatprep.subr.mxu0 0.0
        %3275 = vmatpush1.msra.mxu0 %v3152
        %3276 = vmatprep.subr.mxu0 0.0
        %3277 = vmatpush1.msra.mxu0 %v3153
        %3278 = vmatprep.subr.mxu0 0.0
        %3279 = vmatpush1.msra.mxu0 %v3154
        %3280 = vmatprep.subr.mxu0 0.0
        %3281 = vmatpush1.msra.mxu0 %v3155
        %3282 = vmatprep.subr.mxu0 0.0
        %3283 = vmatpush1.msra.mxu0 %v3156
        %3284 = vmatprep.subr.mxu0 0.0
        %3285 = vmatpush1.msra.mxu0 %v3157
        %3286 = vmatprep.subr.mxu0 0.0
        %3287 = vmatpush1.msra.mxu0 %v3158
        %3288 = vmatprep.subr.mxu0 0.0
        %3289 = vmatpush1.msra.mxu0 %v3159
        %3290 = vmatprep.subr.mxu0 0.0
        %3291 = vmatpush1.msra.mxu0 %v3160
        %3292 = vmatprep.subr.mxu0 0.0
        %3293 = vmatpush1.msra.mxu0 %v3161
        %3294 = vmatprep.subr.mxu0 0.0
        %3295 = vmatpush1.msra.mxu0 %v3162
        %3296 = vmatprep.subr.mxu0 0.0
        %3297 = vmatpush1.msra.mxu0 %v3163
        %3298 = vmatprep.subr.mxu0 0.0
        %3299 = vmatpush1.msra.mxu0 %v3164
        %3300 = vmatprep.subr.mxu0 0.0
        %3301 = vmatpush1.msra.mxu0 %v3165
        %3302 = vmatprep.subr.mxu0 0.0
        %3303 = vmatpush1.msra.mxu0 %v3166
        %3304 = vmatprep.subr.mxu0 0.0
        %3305 = vmatpush1.msra.mxu0 %v3167
        %3306 = vmatprep.subr.mxu0 0.0
        %3307 = vmatpush1.msra.mxu0 %v3168
        %3308 = vmatprep.subr.mxu0 0.0
        %3309 = vmatpush1.msra.mxu0 %v3169
        %3310 = vmatprep.subr.mxu0 0.0
        %3311 = vmatpush1.msra.mxu0 %v3170
        %3312 = vmatprep.subr.mxu0 0.0
        %3313 = vmatpush1.msra.mxu0 %v3171
        %3314 = vmatprep.subr.mxu0 0.0
        %3315 = vmatpush1.msra.mxu0 %v3172
        %3316 = vmatprep.subr.mxu0 0.0
        %3317 = vmatpush1.msra.mxu0 %v3173
        %3318 = vmatprep.subr.mxu0 0.0
        %3319 = vmatpush1.msra.mxu0 %v3174
        %3320 = vmatprep.subr.mxu0 0.0
        %3321 = vmatpush1.msra.mxu0 %v3175
        %3322 = vmatprep.subr.mxu0 0.0
        %3323 = vmatpush1.msra.mxu0 %v3176
        %3324 = vmatprep.subr.mxu0 0.0
        %3325 = vmatpush1.msra.mxu0 %v3177
        %3326 = vmatprep.subr.mxu0 0.0
        %3327 = vmatpush1.msra.mxu0 %v3178
        %3328 = vmatprep.subr.mxu0 0.0
        %3329 = vmatpush1.msra.mxu0 %v3179
        %3330 = vmatprep.subr.mxu0 0.0
        %3331 = vmatpush1.msra.mxu0 %v3180
        %3332 = vmatprep.subr.mxu0 0.0
        %3333 = vmatpush1.msra.mxu0 %v3181
        %3334 = vmatprep.subr.mxu0 0.0
        %3335 = vmatpush1.msra.mxu0 %v3182
        %3336 = vmatprep.mubr.f32.mxu0 %v3105
        %3337 = vmatmul.mubr.f32.gmra.mrb[0].mxu0 %v3104
        %v3338 = vpop.f32.mrb[0].mxu0
        %v3339 = vadd.f32 %v3254, %v3338
        %v3340 = vpop.f32.mrb[0].mxu0
        %3341 = vmatprep.mubr.f32.mxu0 %v3109
        %3342 = vmatmul.mubr.f32.gmra.mrb[0].mxu0 %v3108
        %v3343 = vpop.f32.mrb[0].mxu0
        %v3344 = vadd.f32 %v3259, %v3343
        %v3345 = vpop.f32.mrb[0].mxu0
        %3346 = vmatprep.mubr.f32.mxu0 %v3113
        %3347 = vmatmul.mubr.f32.gmra.mrb[0].mxu0 %v3112
        %v3348 = vpop.f32.mrb[0].mxu0
        %v3349 = vadd.f32 %v3264, %v3348
        %v3350 = vpop.f32.mrb[0].mxu0
        %3351 = vmatprep.mubr.f32.mxu0 %v3117
        %3352 = vmatmul.mubr.f32.gmra.mrb[0].mxu0 %v3116
        %v3353 = vpop.f32.mrb[0].mxu0
        %v3354 = vadd.f32 %v3269, %v3353
        %v3355 = vpop.f32.mrb[0].mxu0
        %3356 = vdwg.mxu0
        %v3357 = vadd.f32 %v2704, %v3339
        %v3358 = vadd.f32 %v2705, %v3344
        %v3359 = vadd.f32 %v2706, %v3349
        %v3360 = vadd.f32 %v2707, %v3354
        %3361 = vadd.xlane.f32.xlu0 %v3357
        %v3362 = vpop.xlane.xlu0 %3361
        %3363 = vadd.xlane.f32.xlu0 %v3358
        %v3364 = vpop.xlane.xlu0 %3363
        %3365 = vadd.xlane.f32.xlu0 %v3359
        %v3366 = vpop.xlane.xlu0 %3365
        %3367 = vadd.xlane.f32.xlu0 %v3360
        %v3368 = vpop.xlane.xlu0 %3367
        %v3369 = vmul.f32 %v3362, %v402
        %v3370 = vmul.f32 %v3364, %v402
        %v3371 = vmul.f32 %v3366, %v402
        %v3372 = vmul.f32 %v3368, %v402
        %v3373 = vsub.f32 %v3357, %v3369
        %v3374 = vsub.f32 %v3358, %v3370
        %v3375 = vsub.f32 %v3359, %v3371
        %v3376 = vsub.f32 %v3360, %v3372
        %v3377 = vmul.f32 %v3373, %v3373
        %v3378 = vmul.f32 %v3374, %v3374
        %v3379 = vmul.f32 %v3375, %v3375
        %v3380 = vmul.f32 %v3376, %v3376
        %3381 = vadd.xlane.f32.xlu0 %v3377
        %v3382 = vpop.xlane.xlu0 %3381
        %3383 = vadd.xlane.f32.xlu0 %v3378
        %v3384 = vpop.xlane.xlu0 %3383
        %3385 = vadd.xlane.f32.xlu0 %v3379
        %v3386 = vpop.xlane.xlu0 %3385
        %3387 = vadd.xlane.f32.xlu0 %v3380
        %v3388 = vpop.xlane.xlu0 %3387
        %v3389 = vmul.f32 %v3382, %v402
        %v3390 = vmul.f32 %v3384, %v402
        %v3391 = vmul.f32 %v3386, %v402
        %v3392 = vmul.f32 %v3388, %v402
        %v3393 = vadd.f32 %v3389, 1e-12
        %v3394 = vadd.f32 %v3390, 1e-12
        %v3395 = vadd.f32 %v3391, 1e-12
        %v3396 = vadd.f32 %v3392, 1e-12
        %v3397 = vrsqrt.pop %v3393
        %v3398 = vrsqrt.pop %v3394
        %v3399 = vrsqrt.pop %v3395
        %v3400 = vrsqrt.pop %v3396
        %v3401 = vmul.f32 %v3373, %v3397
        %v3402 = vmul.f32 %v3374, %v3398
        %v3403 = vmul.f32 %v3375, %v3399
        %v3404 = vmul.f32 %v3376, %v3400
        %v3405 = vlaneseq
        %v3406 = vshrl.u32 %v3405, 7
        %v3407 = vsub.s32 4, %v3406
        %v3408 = vrot.slane %v1936, %v3407
        %v3409 = vmul.f32 %v3401, %v3408
        %v3410 = vmul.f32 %v3402, %v3408
        %v3411 = vmul.f32 %v3403, %v3408
        %v3412 = vmul.f32 %v3404, %v3408
        %v3413 = vlaneseq
        %v3414 = vshrl.u32 %v3413, 7
        %v3415 = vsub.s32 5, %v3414
        %v3416 = vrot.slane %v1936, %v3415
        %v3417 = vadd.f32 %v3409, %v3416
        %v3418 = vadd.f32 %v3410, %v3416
        %v3419 = vadd.f32 %v3411, %v3416
        %v3420 = vadd.f32 %v3412, %v3416
        %v3421 = vadd.f32 %v3417, %v3418
        %v3422 = vrot.slane %v3421, 4
        %v3423 = vadd.f32 %v3421, %v3422
        %v3424 = vrot.slane %v3423, 2
        %v3425 = vadd.f32 %v3423, %v3424
        %v3426 = vrot.slane %v3425, 1
        %v3427 = vadd.f32 %v3425, %v3426
        %v3428 = vadd.f32 %v3419, %v3420
        %v3429 = vrot.slane %v3428, 4
        %v3430 = vadd.f32 %v3428, %v3429
        %v3431 = vrot.slane %v3430, 2
        %v3432 = vadd.f32 %v3430, %v3431
        %v3433 = vrot.slane %v3432, 1
        %v3434 = vadd.f32 %v3432, %v3433
        %v3435 = vmul.f32 %v3427, 0.0625
        %v3436 = vmul.f32 %v3434, 0.0625
        %vm3439 = vcmask 1041409
        %v3440 = vsel %vm3439, %v3436, %v3435
        %3442 = vst [vmem:[%s387] sm:$0x3] %v3440
        %p3443 = scmp.lt.s32.totalorder %s23, 1
        %s3444 = scalar_select %p3443, %s23, 1
        %s3445 = smul.addr %s3444, 2
        %s3446 = scalar_lea.vmem %s9, %s3445
        // Predicated region
        $region73: #{network_forward.1} parent=55 // pred_check
          %p3447 = pneg %p235
        $region74: #{network_forward.1} parent=55 // pred_check_branch
          %3449 = sbr.rel (%p3447) target = $region76
        $region75: #{network_forward.1} parent=55 // pred_region
          _
        $region76: #{network_forward.1} parent=55 // pred_fallthru
          _
      $region56: #{network_forward.1} parent=5 // pred_fallthru
        _
      %p3450 = scmp.le.s32.totalorder 2, %s18
      // Predicated region
      $region77: #{network_forward.1} parent=5 // pred_check
        %p3451 = pneg %p3450
      $region78: #{network_forward.1} parent=5 // pred_check_branch
        %3453 = sbr.rel (%p3451) target = $region80
      $region79: #{network_forward.1} parent=5 // pred_region
        %s3454 = ssub.s32 %s18, 2
        // Predicated region
        $region81: #{network_forward.1} parent=79 // pred_check
          %p3455 = pneg %p241
        $region82: #{network_forward.1} parent=79 // pred_check_branch
          %3457 = sbr.rel (%p3455) target = $region84
        $region83: #{network_forward.1} parent=79 // pred_region
          %p3458 = scmp.lt.s32.totalorder %s24, 1
          %s3459 = scalar_select %p3458, %s24, 1
          %s3460 = smul.addr %s3459, 2
          %s3461 = scalar_lea.vmem %s9, %s3460
        $region84: #{network_forward.1} parent=79 // pred_fallthru
          _
      $region80: #{network_forward.1} parent=5 // pred_fallthru
        _
    $region6: #{network_forward.1} parent=1 // loop_footer
      %s22 = sadd.s32 1, %s18
    $region7: #{network_forward.1} parent=1 // loop_footer_branch
      %17 = sbr.rel target = $region3
    $region8: #{network_forward.1} parent=1 // loop_exit
      _
    %3462 = vsyncpa [#allocation3], 1
    %s3463 = scalar_lea.sflag [#allocation3], 1
    %3464 = vsyncpa %s3463, 1
    %3465 = vsyncpa [#allocation5], 1
    %3466 = vsyncpa [#allocation8], 1

</llo_original>
